<compile_context>
chip_gen: v7x
topology: tpu7x:2x2x1
jax: 0.10.0
libtpu: 0.0.40
codegen_flags: <defaults>
</compile_context>

<pallas_src>
import functools

import numpy as np

import jax
import jax.numpy as jnp
from jax.experimental import pallas as pl
from jax.experimental.pallas import tpu as pltpu

EPS = 1e-5
MXU_DTYPE = jnp.bfloat16   # MXU operand dtype; accumulation / epilogue are f32.


# ------------------------------ Pallas kernel -------------------------------

def _tfc_kernel(x_ref, w1_ref, b1_ref, w2_ref, b2_ref, w3_ref, b3_ref,
                s1e_ref, s1o_ref, s2e_ref, s2o_ref, s3e_ref, s3o_ref,
                w1p_ref, b1p_ref, w2p_ref, b2p_ref,
                h_ref, z_ref):
    f32 = jnp.float32

    def conv_relu(a, w_ref, b_ref):
        # a: (B*Lpad, C_in) f32 zero-padded batch-major slab (VMEM value).
        # w_ref: (K, C_in, C_out) ref with BN scale pre-folded.
        # Conv1d as K shifted matmuls over the whole slab; rows that straddle a
        # batch boundary are garbage and are never selected by the pool step.
        K = w_ref.shape[0]
        r = a.shape[0] - K + 1
        ac = a.astype(w_ref.dtype)            # one cast per stage, not K casts
        acc = jnp.dot(ac[0:r, :], w_ref[0], preferred_element_type=f32)
        for k in range(1, K):
            acc = acc + jnp.dot(ac[k:k + r, :], w_ref[k],
                                preferred_element_type=f32)
        return jnp.maximum(acc + b_ref[...], 0.0)      # folded BN bias + ReLU

    def maxpool(y, se_ref, so_ref):
        # MaxPool1d(kernel=2, stride=2, padding=1) via two one-hot row-selection
        # matmuls + elementwise max.  All-zero selector rows realise the zero
        # padding of the *next* conv stage (valid because y >= 0 after ReLU).
        yc = y.astype(se_ref.dtype)
        e = jnp.dot(se_ref[...], yc, preferred_element_type=f32)
        o = jnp.dot(so_ref[...], yc, preferred_element_type=f32)
        return jnp.maximum(e, o)

    a0 = x_ref[...]                                     # (B*Lpad1, C_in) f32
    a1 = maxpool(conv_relu(a0, w1_ref, b1_ref), s1e_ref, s1o_ref)
    # TODO(synk): nn.Dropout after the first pool is identity at inference.
    a2 = maxpool(conv_relu(a1, w2_ref, b2_ref), s2e_ref, s2o_ref)
    p3 = maxpool(conv_relu(a2, w3_ref, b3_ref), s3e_ref, s3o_ref)
    h_ref[...] = p3                                     # (L3p*B, C3), l-major

    # Projector: relu(h @ (W1*s)^T + b1) @ W2^T + b2, entirely in VMEM.  The
    # first linear is a sum over L3p position blocks so the channels-last
    # flattening never needs an in-kernel reshape (W1 was permuted to match).
    B = z_ref.shape[0]
    L3p = w1p_ref.shape[0]
    p3c = p3.astype(w1p_ref.dtype)                      # single cast
    acc = jnp.dot(p3c[0:B, :], w1p_ref[0], preferred_element_type=f32)
    for l in range(1, L3p):
        acc = acc + jnp.dot(p3c[l * B:(l + 1) * B, :], w1p_ref[l],
                            preferred_element_type=f32)
    z1 = jnp.maximum(acc + b1p_ref[...], 0.0)
    z_ref[...] = (jnp.dot(z1.astype(w2p_ref.dtype), w2p_ref[...],
                          preferred_element_type=f32) + b2p_ref[...])


# ----------------------- trace-time folding / selectors ---------------------

def _fold_conv_bn(w, g, b, m, v):
    """Conv1d(bias=False) + BatchNorm1d(eval): fold scale into the weights."""
    s = g / jnp.sqrt(v + EPS)
    wk = jnp.transpose(w, (2, 1, 0)) * s[None, None, :]     # (K, C_in, C_out)
    bias = (b - m * s).reshape(1, -1)
    return wk.astype(MXU_DTYPE), bias.astype(jnp.float32)


def _fold_projector(p, L3p, C3):
    N1 = p["W1"].shape[0]
    s = p["g"] / jnp.sqrt(p["v"] + EPS)
    w1 = p["W1"] * s[:, None]                               # (N1, C3*L3p)
    # permute columns from PyTorch's (C, L) flatten to the kernel's l-major rows
    w1 = jnp.transpose(w1.reshape(N1, C3, L3p), (2, 1, 0))  # (L3p, C3, N1)
    b1 = ((p["lb1"] - p["m"]) * s + p["b"]).reshape(1, -1)
    w2 = jnp.transpose(p["W2"])                             # (N1, N2)
    b2 = p["lb2"].reshape(1, -1)
    return (w1.astype(MXU_DTYPE), b1.astype(jnp.float32),
            w2.astype(MXU_DTYPE), b2.astype(jnp.float32))


def _pool_selectors(B, Lpad_in, conv_stride, L_conv, n_in, n_out, row_of):
    """One-hot matrices picking the even/odd element of each MaxPool1d(2,2,1)
    window from the conv-output slab (conv position l of batch b sits at row
    b*Lpad_in + l*conv_stride).  Rows not written stay zero -> zero padding."""
    se = np.zeros((n_out, n_in), np.float32)
    so = np.zeros((n_out, n_in), np.float32)
    for b in range(B):
        for w in range(L_conv // 2 + 1):
            r = row_of(b, w)
            if 2 * w < L_conv:                    # right window element
                se[r, b * Lpad_in + 2 * w * conv_stride] = 1.0
            if 2 * w - 1 >= 0:                    # left window element
                so[r, b * Lpad_in + (2 * w - 1) * conv_stride] = 1.0
    return jnp.asarray(se, MXU_DTYPE), jnp.asarray(so, MXU_DTYPE)


# --------------------------------- forward ----------------------------------

@functools.partial(jax.jit, static_argnums=(3,))
def tfc_forward(x_in_t, x_in_f, params, stride):
    B, C_in, L0 = x_in_t.shape
    pt, pf = params["conv_t"], params["conv_f"]
    C1, _, K1 = pt["w1"].shape
    C2, _, K2 = pt["w2"].shape
    C3, _, K3 = pt["w3"].shape
    pd1, pd2, pd3 = K1 // 2, K2 // 2, K3 // 2

    # PyTorch length bookkeeping: conv(pad=K//2) then MaxPool1d(2,2,1).
    L1 = (L0 + 2 * pd1 - K1) // stride + 1; L1p = L1 // 2 + 1
    L2 = (L1p + 2 * pd2 - K2) + 1;          L2p = L2 // 2 + 1
    L3 = (L2p + 2 * pd3 - K3) + 1;          L3p = L3 // 2 + 1

    Lpad1, Lpad2, Lpad3 = L0 + 2 * pd1, L1p + 2 * pd2, L2p + 2 * pd3
    R1 = B * Lpad1 - K1 + 1
    R2 = B * Lpad2 - K2 + 1
    R3 = B * Lpad3 - K3 + 1
    N1 = params["proj_t"]["W1"].shape[0]
    N2 = params["proj_t"]["W2"].shape[0]

    # -- trace-time prep (all tiny): padded channels-last input slabs, folded
    # -- weights, and the pool-selection matrices (shared by both branches).
    def slab(x):                        # (B, C, L) -> (B*Lpad1, C), zero padded
        xp = jnp.pad(x, ((0, 0), (0, 0), (pd1, pd1)))
        return jnp.transpose(xp, (0, 2, 1)).reshape(B * Lpad1, C_in)
    x_slab = jnp.stack([slab(x_in_t), slab(x_in_f)]).astype(jnp.float32)

    def conv_branch(p):
        return (*_fold_conv_bn(p["w1"], p["g1"], p["b1"], p["m1"], p["v1"]),
                *_fold_conv_bn(p["w2"], p["g2"], p["b2"], p["m2"], p["v2"]),
                *_fold_conv_bn(p["w3"], p["g3"], p["b3"], p["m3"], p["v3"]))
    w1s, b1s, w2s, b2s, w3s, b3s = [
        jnp.stack(ab) for ab in zip(conv_branch(pt), conv_branch(pf))]

    w1ps, b1ps, w2ps, b2ps = [
        jnp.stack(ab) for ab in zip(_fold_projector(params["proj_t"], L3p, C3),
                                    _fold_projector(params["proj_f"], L3p, C3))]

    s1e, s1o = _pool_selectors(B, Lpad1, stride, L1, R1, B * Lpad2,
                               lambda b, w: b * Lpad2 + pd2 + w)
    s2e, s2o = _pool_selectors(B, Lpad2, 1, L2, R2, B * Lpad3,
                               lambda b, w: b * Lpad3 + pd3 + w)
    s3e, s3o = _pool_selectors(B, Lpad3, 1, L3, R3, L3p * B,
                               lambda b, w: w * B + b)   # l-major stage-3 rows

    # -- one fused pallas_call for the whole forward, grid over {time, freq}.
    def per_branch(*shape):             # leading branch dim picked by grid idx
        return pl.BlockSpec((None,) + shape,
                            lambda br: (br,) + (0,) * len(shape))

    def shared(*shape):                 # branch-independent (pool selectors)
        return pl.BlockSpec(shape, lambda br: (0,) * len(shape))

    grid_spec = pltpu.PrefetchScalarGridSpec(
        num_scalar_prefetch=0,
        grid=(2,),
        in_specs=[
            per_branch(B * Lpad1, C_in),
            per_branch(K1, C_in, C1), per_branch(1, C1),
            per_branch(K2, C1, C2),   per_branch(1, C2),
            per_branch(K3, C2, C3),   per_branch(1, C3),
            shared(B * Lpad2, R1), shared(B * Lpad2, R1),
            shared(B * Lpad3, R2), shared(B * Lpad3, R2),
            shared(L3p * B, R3),   shared(L3p * B, R3),
            per_branch(L3p, C3, N1), per_branch(1, N1),
            per_branch(N1, N2),      per_branch(1, N2),
        ],
        out_specs=(
            per_branch(L3p * B, C3),
            per_branch(B, N2),
        ),
    )

    p3_out, z_out = pl.pallas_call(
        _tfc_kernel,
        out_shape=(jax.ShapeDtypeStruct((2, L3p * B, C3), jnp.float32),
                   jax.ShapeDtypeStruct((2, B, N2), jnp.float32)),
        grid_spec=grid_spec,
        compiler_params=pltpu.CompilerParams(
            dimension_semantics=("parallel",)),
    )(x_slab, w1s, b1s, w2s, b2s, w3s, b3s,
      s1e, s1o, s2e, s2o, s3e, s3o,
      w1ps, b1ps, w2ps, b2ps)

    def to_h(p3):  # (L3p*B, C3) l-major -> PyTorch (B, C3*L3p) NCL flatten
        return jnp.transpose(p3.reshape(L3p, B, C3), (1, 2, 0)).reshape(B, C3 * L3p)

    return to_h(p3_out[0]), z_out[0], to_h(p3_out[1]), z_out[1]


# --------------------------- deterministic init -----------------------------

def _conv_len(L, K, stride):
    return (L + 2 * (K // 2) - K) // stride + 1


def _pool_len(L):
    return L // 2 + 1


def _init_bn(key, C):
    k1, k2, k3, k4 = jax.random.split(key, 4)
    return dict(
        g=1.0 + 0.1 * jax.random.normal(k1, (C,), jnp.float32),
        b=0.1 * jax.random.normal(k2, (C,), jnp.float32),
        m=0.1 * jax.random.normal(k3, (C,), jnp.float32),
        v=jax.random.uniform(k4, (C,), jnp.float32, 0.5, 1.5),
    )


def _init_conv_block(key, c_in, kernel_size, final_out):
    k1, k2, k3, k4, k5, k6 = jax.random.split(key, 6)
    bn1, bn2, bn3 = _init_bn(k4, 32), _init_bn(k5, 64), _init_bn(k6, final_out)
    return dict(
        w1=0.1 * jax.random.normal(k1, (32, c_in, kernel_size), jnp.float32),
        g1=bn1["g"], b1=bn1["b"], m1=bn1["m"], v1=bn1["v"],
        w2=0.1 * jax.random.normal(k2, (64, 32, 8), jnp.float32),
        g2=bn2["g"], b2=bn2["b"], m2=bn2["m"], v2=bn2["v"],
        w3=0.1 * jax.random.normal(k3, (final_out, 64, 8), jnp.float32),
        g3=bn3["g"], b3=bn3["b"], m3=bn3["m"], v3=bn3["v"],
    )


def _init_projector(key, feat):
    k1, k2, k3, k4, k5 = jax.random.split(key, 5)
    bn = _init_bn(k5, 256)
    return dict(
        W1=0.05 * jax.random.normal(k1, (256, feat), jnp.float32),
        lb1=0.05 * jax.random.normal(k2, (256,), jnp.float32),
        g=bn["g"], b=bn["b"], m=bn["m"], v=bn["v"],
        W2=0.05 * jax.random.normal(k3, (128, 256), jnp.float32),
        lb2=0.05 * jax.random.normal(k4, (128,), jnp.float32),
    )


# --------------------------------- main --------------------------------------

if __name__ == "__main__":
    B = 2
    input_channels = 4
    kernel_size = 8
    stride = 1
    final_out_channels = 64
    TSlength_aligned = 32

    # Feature count after the conv backbone (same math PyTorch would trace).
    L = TSlength_aligned
    L = _pool_len(_conv_len(L, kernel_size, stride))
    L = _pool_len(_conv_len(L, 8, 1))
    L = _pool_len(_conv_len(L, 8, 1))
    feat = final_out_channels * L

    key = jax.random.PRNGKey(0)
    k_ct, k_cf, k_pt, k_pf, k_xt, k_xf = jax.random.split(key, 6)
    params = dict(
        conv_t=_init_conv_block(k_ct, input_channels, kernel_size,
                                final_out_channels),
        conv_f=_init_conv_block(k_cf, input_channels, kernel_size,
                                final_out_channels),
        proj_t=_init_projector(k_pt, feat),
        proj_f=_init_projector(k_pf, feat),
    )

    x_in_t = jax.random.normal(k_xt, (B, input_channels, TSlength_aligned),
                               jnp.float32)
    x_in_f = jax.random.normal(k_xf, (B, input_channels, TSlength_aligned),
                               jnp.float32)

    h_time, z_time, h_freq, z_freq = tfc_forward(x_in_t, x_in_f, params, stride)
    jax.block_until_ready((h_time, z_time, h_freq, z_freq))

    assert h_time.shape == (B, feat), h_time.shape
    assert z_time.shape == (B, 128), z_time.shape
    assert h_freq.shape == (B, feat), h_freq.shape
    assert z_freq.shape == (B, 128), z_freq.shape
    print("KERNEL_OK")
</pallas_src>

<mosaic_0001>
module attributes {stable_mosaic.version = 11 : i64} {
  func.func @_tfc_kernel(%arg0: i32, %arg1: memref<1x80x4xf32, #tpu.memory_space<vmem>>, %arg2: memref<1x8x4x32xbf16, #tpu.memory_space<vmem>>, %arg3: memref<1x1x32xf32, #tpu.memory_space<vmem>>, %arg4: memref<1x8x32x64xbf16, #tpu.memory_space<vmem>>, %arg5: memref<1x1x64xf32, #tpu.memory_space<vmem>>, %arg6: memref<1x8x64x64xbf16, #tpu.memory_space<vmem>>, %arg7: memref<1x1x64xf32, #tpu.memory_space<vmem>>, %arg8: memref<50x73xbf16, #tpu.memory_space<vmem>>, %arg9: memref<50x73xbf16, #tpu.memory_space<vmem>>, %arg10: memref<36x43xbf16, #tpu.memory_space<vmem>>, %arg11: memref<36x43xbf16, #tpu.memory_space<vmem>>, %arg12: memref<12x29xbf16, #tpu.memory_space<vmem>>, %arg13: memref<12x29xbf16, #tpu.memory_space<vmem>>, %arg14: memref<1x6x64x256xbf16, #tpu.memory_space<vmem>>, %arg15: memref<1x1x256xf32, #tpu.memory_space<vmem>>, %arg16: memref<1x256x128xbf16, #tpu.memory_space<vmem>>, %arg17: memref<1x1x128xf32, #tpu.memory_space<vmem>>, %arg18: memref<1x12x64xf32, #tpu.memory_space<vmem>>, %arg19: memref<1x2x128xf32, #tpu.memory_space<vmem>>) attributes {dimension_semantics = [#tpu.dimension_semantics<parallel>], iteration_bounds = array<i64: 2>, scalar_prefetch = 0 : i64, scratch_operands = 0 : i64, tpu.core_type = #tpu.core_type<tc>, window_params = [{transform_indices = @transform_0, window_bounds = array<i64: 1, 80, 4>}, {transform_indices = @transform_1, window_bounds = array<i64: 1, 8, 4, 32>}, {transform_indices = @transform_2, window_bounds = array<i64: 1, 1, 32>}, {transform_indices = @transform_3, window_bounds = array<i64: 1, 8, 32, 64>}, {transform_indices = @transform_4, window_bounds = array<i64: 1, 1, 64>}, {transform_indices = @transform_5, window_bounds = array<i64: 1, 8, 64, 64>}, {transform_indices = @transform_6, window_bounds = array<i64: 1, 1, 64>}, {pipeline_mode = #tpu.pipeline_mode<synchronous>, transform_indices = @transform_7, window_bounds = array<i64: 50, 73>}, {pipeline_mode = #tpu.pipeline_mode<synchronous>, transform_indices = @transform_8, window_bounds = array<i64: 50, 73>}, {pipeline_mode = #tpu.pipeline_mode<synchronous>, transform_indices = @transform_9, window_bounds = array<i64: 36, 43>}, {pipeline_mode = #tpu.pipeline_mode<synchronous>, transform_indices = @transform_10, window_bounds = array<i64: 36, 43>}, {pipeline_mode = #tpu.pipeline_mode<synchronous>, transform_indices = @transform_11, window_bounds = array<i64: 12, 29>}, {pipeline_mode = #tpu.pipeline_mode<synchronous>, transform_indices = @transform_12, window_bounds = array<i64: 12, 29>}, {transform_indices = @transform_13, window_bounds = array<i64: 1, 6, 64, 256>}, {transform_indices = @transform_14, window_bounds = array<i64: 1, 1, 256>}, {transform_indices = @transform_15, window_bounds = array<i64: 1, 256, 128>}, {transform_indices = @transform_16, window_bounds = array<i64: 1, 1, 128>}, {transform_indices = @transform_17, window_bounds = array<i64: 1, 12, 64>}, {transform_indices = @transform_18, window_bounds = array<i64: 1, 2, 128>}]} {
    %c0 = arith.constant 0 : index
    %c0_0 = arith.constant 0 : index
    %c0_1 = arith.constant 0 : index
    %0 = vector.load %arg1[%c0, %c0_0, %c0_1] : memref<1x80x4xf32, #tpu.memory_space<vmem>>, vector<1x80x4xf32>
    %1 = vector.shape_cast %0 : vector<1x80x4xf32> to vector<80x4xf32>
    %2 = arith.truncf %1 : vector<80x4xf32> to vector<80x4xbf16>
    %3 = vector.extract_strided_slice %2 {offsets = [0, 0], sizes = [73, 4], strides = [1, 1]} : vector<80x4xbf16> to vector<73x4xbf16>
    %c0_2 = arith.constant 0 : index
    %c0_3 = arith.constant 0 : index
    %c0_4 = arith.constant 0 : index
    %c0_5 = arith.constant 0 : index
    %4 = vector.load %arg2[%c0_2, %c0_3, %c0_4, %c0_5] : memref<1x8x4x32xbf16, #tpu.memory_space<vmem>>, vector<1x1x4x32xbf16>
    %5 = vector.shape_cast %4 : vector<1x1x4x32xbf16> to vector<4x32xbf16>
    %cst = arith.constant dense<0.000000e+00> : vector<73x32xf32>
    %6 = tpu.matmul %3, %5, %cst {dimension_numbers = #tpu.dot_dimension_numbers<[1], [0], [0], [1], [0, 0, 1, 1], [], []>} : vector<73x4xbf16>, vector<4x32xbf16>, vector<73x32xf32> -> vector<73x32xf32>
    %7 = vector.extract_strided_slice %2 {offsets = [1, 0], sizes = [73, 4], strides = [1, 1]} : vector<80x4xbf16> to vector<73x4xbf16>
    %c0_6 = arith.constant 0 : index
    %c1 = arith.constant 1 : index
    %c0_7 = arith.constant 0 : index
    %c0_8 = arith.constant 0 : index
    %8 = vector.load %arg2[%c0_6, %c1, %c0_7, %c0_8] : memref<1x8x4x32xbf16, #tpu.memory_space<vmem>>, vector<1x1x4x32xbf16>
    %9 = vector.shape_cast %8 : vector<1x1x4x32xbf16> to vector<4x32xbf16>
    %cst_9 = arith.constant dense<0.000000e+00> : vector<73x32xf32>
    %10 = tpu.matmul %7, %9, %cst_9 {dimension_numbers = #tpu.dot_dimension_numbers<[1], [0], [0], [1], [0, 0, 1, 1], [], []>} : vector<73x4xbf16>, vector<4x32xbf16>, vector<73x32xf32> -> vector<73x32xf32>
    %11 = arith.addf %6, %10 : vector<73x32xf32>
    %12 = vector.extract_strided_slice %2 {offsets = [2, 0], sizes = [73, 4], strides = [1, 1]} : vector<80x4xbf16> to vector<73x4xbf16>
    %c0_10 = arith.constant 0 : index
    %c2 = arith.constant 2 : index
    %c0_11 = arith.constant 0 : index
    %c0_12 = arith.constant 0 : index
    %13 = vector.load %arg2[%c0_10, %c2, %c0_11, %c0_12] : memref<1x8x4x32xbf16, #tpu.memory_space<vmem>>, vector<1x1x4x32xbf16>
    %14 = vector.shape_cast %13 : vector<1x1x4x32xbf16> to vector<4x32xbf16>
    %cst_13 = arith.constant dense<0.000000e+00> : vector<73x32xf32>
    %15 = tpu.matmul %12, %14, %cst_13 {dimension_numbers = #tpu.dot_dimension_numbers<[1], [0], [0], [1], [0, 0, 1, 1], [], []>} : vector<73x4xbf16>, vector<4x32xbf16>, vector<73x32xf32> -> vector<73x32xf32>
    %16 = arith.addf %11, %15 : vector<73x32xf32>
    %17 = vector.extract_strided_slice %2 {offsets = [3, 0], sizes = [73, 4], strides = [1, 1]} : vector<80x4xbf16> to vector<73x4xbf16>
    %c0_14 = arith.constant 0 : index
    %c3 = arith.constant 3 : index
    %c0_15 = arith.constant 0 : index
    %c0_16 = arith.constant 0 : index
    %18 = vector.load %arg2[%c0_14, %c3, %c0_15, %c0_16] : memref<1x8x4x32xbf16, #tpu.memory_space<vmem>>, vector<1x1x4x32xbf16>
    %19 = vector.shape_cast %18 : vector<1x1x4x32xbf16> to vector<4x32xbf16>
    %cst_17 = arith.constant dense<0.000000e+00> : vector<73x32xf32>
    %20 = tpu.matmul %17, %19, %cst_17 {dimension_numbers = #tpu.dot_dimension_numbers<[1], [0], [0], [1], [0, 0, 1, 1], [], []>} : vector<73x4xbf16>, vector<4x32xbf16>, vector<73x32xf32> -> vector<73x32xf32>
    %21 = arith.addf %16, %20 : vector<73x32xf32>
    %22 = vector.extract_strided_slice %2 {offsets = [4, 0], sizes = [73, 4], strides = [1, 1]} : vector<80x4xbf16> to vector<73x4xbf16>
    %c0_18 = arith.constant 0 : index
    %c4 = arith.constant 4 : index
    %c0_19 = arith.constant 0 : index
    %c0_20 = arith.constant 0 : index
    %23 = vector.load %arg2[%c0_18, %c4, %c0_19, %c0_20] : memref<1x8x4x32xbf16, #tpu.memory_space<vmem>>, vector<1x1x4x32xbf16>
    %24 = vector.shape_cast %23 : vector<1x1x4x32xbf16> to vector<4x32xbf16>
    %cst_21 = arith.constant dense<0.000000e+00> : vector<73x32xf32>
    %25 = tpu.matmul %22, %24, %cst_21 {dimension_numbers = #tpu.dot_dimension_numbers<[1], [0], [0], [1], [0, 0, 1, 1], [], []>} : vector<73x4xbf16>, vector<4x32xbf16>, vector<73x32xf32> -> vector<73x32xf32>
    %26 = arith.addf %21, %25 : vector<73x32xf32>
    %27 = vector.extract_strided_slice %2 {offsets = [5, 0], sizes = [73, 4], strides = [1, 1]} : vector<80x4xbf16> to vector<73x4xbf16>
    %c0_22 = arith.constant 0 : index
    %c5 = arith.constant 5 : index
    %c0_23 = arith.constant 0 : index
    %c0_24 = arith.constant 0 : index
    %28 = vector.load %arg2[%c0_22, %c5, %c0_23, %c0_24] : memref<1x8x4x32xbf16, #tpu.memory_space<vmem>>, vector<1x1x4x32xbf16>
    %29 = vector.shape_cast %28 : vector<1x1x4x32xbf16> to vector<4x32xbf16>
    %cst_25 = arith.constant dense<0.000000e+00> : vector<73x32xf32>
    %30 = tpu.matmul %27, %29, %cst_25 {dimension_numbers = #tpu.dot_dimension_numbers<[1], [0], [0], [1], [0, 0, 1, 1], [], []>} : vector<73x4xbf16>, vector<4x32xbf16>, vector<73x32xf32> -> vector<73x32xf32>
    %31 = arith.addf %26, %30 : vector<73x32xf32>
    %32 = vector.extract_strided_slice %2 {offsets = [6, 0], sizes = [73, 4], strides = [1, 1]} : vector<80x4xbf16> to vector<73x4xbf16>
    %c0_26 = arith.constant 0 : index
    %c6 = arith.constant 6 : index
    %c0_27 = arith.constant 0 : index
    %c0_28 = arith.constant 0 : index
    %33 = vector.load %arg2[%c0_26, %c6, %c0_27, %c0_28] : memref<1x8x4x32xbf16, #tpu.memory_space<vmem>>, vector<1x1x4x32xbf16>
    %34 = vector.shape_cast %33 : vector<1x1x4x32xbf16> to vector<4x32xbf16>
    %cst_29 = arith.constant dense<0.000000e+00> : vector<73x32xf32>
    %35 = tpu.matmul %32, %34, %cst_29 {dimension_numbers = #tpu.dot_dimension_numbers<[1], [0], [0], [1], [0, 0, 1, 1], [], []>} : vector<73x4xbf16>, vector<4x32xbf16>, vector<73x32xf32> -> vector<73x32xf32>
    %36 = arith.addf %31, %35 : vector<73x32xf32>
    %37 = vector.extract_strided_slice %2 {offsets = [7, 0], sizes = [73, 4], strides = [1, 1]} : vector<80x4xbf16> to vector<73x4xbf16>
    %c0_30 = arith.constant 0 : index
    %c7 = arith.constant 7 : index
    %c0_31 = arith.constant 0 : index
    %c0_32 = arith.constant 0 : index
    %38 = vector.load %arg2[%c0_30, %c7, %c0_31, %c0_32] : memref<1x8x4x32xbf16, #tpu.memory_space<vmem>>, vector<1x1x4x32xbf16>
    %39 = vector.shape_cast %38 : vector<1x1x4x32xbf16> to vector<4x32xbf16>
    %cst_33 = arith.constant dense<0.000000e+00> : vector<73x32xf32>
    %40 = tpu.matmul %37, %39, %cst_33 {dimension_numbers = #tpu.dot_dimension_numbers<[1], [0], [0], [1], [0, 0, 1, 1], [], []>} : vector<73x4xbf16>, vector<4x32xbf16>, vector<73x32xf32> -> vector<73x32xf32>
    %41 = arith.addf %36, %40 : vector<73x32xf32>
    %c0_34 = arith.constant 0 : index
    %c0_35 = arith.constant 0 : index
    %c0_36 = arith.constant 0 : index
    %42 = vector.load %arg3[%c0_34, %c0_35, %c0_36] : memref<1x1x32xf32, #tpu.memory_space<vmem>>, vector<1x1x32xf32>
    %43 = vector.shape_cast %42 : vector<1x1x32xf32> to vector<1x32xf32>
    %44 = vector.broadcast %43 : vector<1x32xf32> to vector<73x32xf32>
    %45 = arith.addf %41, %44 : vector<73x32xf32>
    %cst_37 = arith.constant 0.000000e+00 : f32
    %46 = vector.broadcast %cst_37 : f32 to vector<73x32xf32>
    %47 = arith.maximumf %45, %46 : vector<73x32xf32>
    %48 = arith.truncf %47 : vector<73x32xf32> to vector<73x32xbf16>
    %c0_38 = arith.constant 0 : index
    %c0_39 = arith.constant 0 : index
    %49 = vector.load %arg8[%c0_38, %c0_39] : memref<50x73xbf16, #tpu.memory_space<vmem>>, vector<50x73xbf16>
    %cst_40 = arith.constant dense<0.000000e+00> : vector<50x32xf32>
    %50 = tpu.matmul %49, %48, %cst_40 {dimension_numbers = #tpu.dot_dimension_numbers<[1], [0], [0], [1], [0, 0, 1, 1], [], []>} : vector<50x73xbf16>, vector<73x32xbf16>, vector<50x32xf32> -> vector<50x32xf32>
    %c0_41 = arith.constant 0 : index
    %c0_42 = arith.constant 0 : index
    %51 = vector.load %arg9[%c0_41, %c0_42] : memref<50x73xbf16, #tpu.memory_space<vmem>>, vector<50x73xbf16>
    %cst_43 = arith.constant dense<0.000000e+00> : vector<50x32xf32>
    %52 = tpu.matmul %51, %48, %cst_43 {dimension_numbers = #tpu.dot_dimension_numbers<[1], [0], [0], [1], [0, 0, 1, 1], [], []>} : vector<50x73xbf16>, vector<73x32xbf16>, vector<50x32xf32> -> vector<50x32xf32>
    %53 = arith.maximumf %50, %52 : vector<50x32xf32>
    %54 = arith.truncf %53 : vector<50x32xf32> to vector<50x32xbf16>
    %55 = vector.extract_strided_slice %54 {offsets = [0, 0], sizes = [43, 32], strides = [1, 1]} : vector<50x32xbf16> to vector<43x32xbf16>
    %c0_44 = arith.constant 0 : index
    %c0_45 = arith.constant 0 : index
    %c0_46 = arith.constant 0 : index
    %c0_47 = arith.constant 0 : index
    %56 = vector.load %arg4[%c0_44, %c0_45, %c0_46, %c0_47] : memref<1x8x32x64xbf16, #tpu.memory_space<vmem>>, vector<1x1x32x64xbf16>
    %57 = vector.shape_cast %56 : vector<1x1x32x64xbf16> to vector<32x64xbf16>
    %cst_48 = arith.constant dense<0.000000e+00> : vector<43x64xf32>
    %58 = tpu.matmul %55, %57, %cst_48 {dimension_numbers = #tpu.dot_dimension_numbers<[1], [0], [0], [1], [0, 0, 1, 1], [], []>} : vector<43x32xbf16>, vector<32x64xbf16>, vector<43x64xf32> -> vector<43x64xf32>
    %59 = vector.extract_strided_slice %54 {offsets = [1, 0], sizes = [43, 32], strides = [1, 1]} : vector<50x32xbf16> to vector<43x32xbf16>
    %c0_49 = arith.constant 0 : index
    %c1_50 = arith.constant 1 : index
    %c0_51 = arith.constant 0 : index
    %c0_52 = arith.constant 0 : index
    %60 = vector.load %arg4[%c0_49, %c1_50, %c0_51, %c0_52] : memref<1x8x32x64xbf16, #tpu.memory_space<vmem>>, vector<1x1x32x64xbf16>
    %61 = vector.shape_cast %60 : vector<1x1x32x64xbf16> to vector<32x64xbf16>
    %cst_53 = arith.constant dense<0.000000e+00> : vector<43x64xf32>
    %62 = tpu.matmul %59, %61, %cst_53 {dimension_numbers = #tpu.dot_dimension_numbers<[1], [0], [0], [1], [0, 0, 1, 1], [], []>} : vector<43x32xbf16>, vector<32x64xbf16>, vector<43x64xf32> -> vector<43x64xf32>
    %63 = arith.addf %58, %62 : vector<43x64xf32>
    %64 = vector.extract_strided_slice %54 {offsets = [2, 0], sizes = [43, 32], strides = [1, 1]} : vector<50x32xbf16> to vector<43x32xbf16>
    %c0_54 = arith.constant 0 : index
    %c2_55 = arith.constant 2 : index
    %c0_56 = arith.constant 0 : index
    %c0_57 = arith.constant 0 : index
    %65 = vector.load %arg4[%c0_54, %c2_55, %c0_56, %c0_57] : memref<1x8x32x64xbf16, #tpu.memory_space<vmem>>, vector<1x1x32x64xbf16>
    %66 = vector.shape_cast %65 : vector<1x1x32x64xbf16> to vector<32x64xbf16>
    %cst_58 = arith.constant dense<0.000000e+00> : vector<43x64xf32>
    %67 = tpu.matmul %64, %66, %cst_58 {dimension_numbers = #tpu.dot_dimension_numbers<[1], [0], [0], [1], [0, 0, 1, 1], [], []>} : vector<43x32xbf16>, vector<32x64xbf16>, vector<43x64xf32> -> vector<43x64xf32>
    %68 = arith.addf %63, %67 : vector<43x64xf32>
    %69 = vector.extract_strided_slice %54 {offsets = [3, 0], sizes = [43, 32], strides = [1, 1]} : vector<50x32xbf16> to vector<43x32xbf16>
    %c0_59 = arith.constant 0 : index
    %c3_60 = arith.constant 3 : index
    %c0_61 = arith.constant 0 : index
    %c0_62 = arith.constant 0 : index
    %70 = vector.load %arg4[%c0_59, %c3_60, %c0_61, %c0_62] : memref<1x8x32x64xbf16, #tpu.memory_space<vmem>>, vector<1x1x32x64xbf16>
    %71 = vector.shape_cast %70 : vector<1x1x32x64xbf16> to vector<32x64xbf16>
    %cst_63 = arith.constant dense<0.000000e+00> : vector<43x64xf32>
    %72 = tpu.matmul %69, %71, %cst_63 {dimension_numbers = #tpu.dot_dimension_numbers<[1], [0], [0], [1], [0, 0, 1, 1], [], []>} : vector<43x32xbf16>, vector<32x64xbf16>, vector<43x64xf32> -> vector<43x64xf32>
    %73 = arith.addf %68, %72 : vector<43x64xf32>
    %74 = vector.extract_strided_slice %54 {offsets = [4, 0], sizes = [43, 32], strides = [1, 1]} : vector<50x32xbf16> to vector<43x32xbf16>
    %c0_64 = arith.constant 0 : index
    %c4_65 = arith.constant 4 : index
    %c0_66 = arith.constant 0 : index
    %c0_67 = arith.constant 0 : index
    %75 = vector.load %arg4[%c0_64, %c4_65, %c0_66, %c0_67] : memref<1x8x32x64xbf16, #tpu.memory_space<vmem>>, vector<1x1x32x64xbf16>
    %76 = vector.shape_cast %75 : vector<1x1x32x64xbf16> to vector<32x64xbf16>
    %cst_68 = arith.constant dense<0.000000e+00> : vector<43x64xf32>
    %77 = tpu.matmul %74, %76, %cst_68 {dimension_numbers = #tpu.dot_dimension_numbers<[1], [0], [0], [1], [0, 0, 1, 1], [], []>} : vector<43x32xbf16>, vector<32x64xbf16>, vector<43x64xf32> -> vector<43x64xf32>
    %78 = arith.addf %73, %77 : vector<43x64xf32>
    %79 = vector.extract_strided_slice %54 {offsets = [5, 0], sizes = [43, 32], strides = [1, 1]} : vector<50x32xbf16> to vector<43x32xbf16>
    %c0_69 = arith.constant 0 : index
    %c5_70 = arith.constant 5 : index
    %c0_71 = arith.constant 0 : index
    %c0_72 = arith.constant 0 : index
    %80 = vector.load %arg4[%c0_69, %c5_70, %c0_71, %c0_72] : memref<1x8x32x64xbf16, #tpu.memory_space<vmem>>, vector<1x1x32x64xbf16>
    %81 = vector.shape_cast %80 : vector<1x1x32x64xbf16> to vector<32x64xbf16>
    %cst_73 = arith.constant dense<0.000000e+00> : vector<43x64xf32>
    %82 = tpu.matmul %79, %81, %cst_73 {dimension_numbers = #tpu.dot_dimension_numbers<[1], [0], [0], [1], [0, 0, 1, 1], [], []>} : vector<43x32xbf16>, vector<32x64xbf16>, vector<43x64xf32> -> vector<43x64xf32>
    %83 = arith.addf %78, %82 : vector<43x64xf32>
    %84 = vector.extract_strided_slice %54 {offsets = [6, 0], sizes = [43, 32], strides = [1, 1]} : vector<50x32xbf16> to vector<43x32xbf16>
    %c0_74 = arith.constant 0 : index
    %c6_75 = arith.constant 6 : index
    %c0_76 = arith.constant 0 : index
    %c0_77 = arith.constant 0 : index
    %85 = vector.load %arg4[%c0_74, %c6_75, %c0_76, %c0_77] : memref<1x8x32x64xbf16, #tpu.memory_space<vmem>>, vector<1x1x32x64xbf16>
    %86 = vector.shape_cast %85 : vector<1x1x32x64xbf16> to vector<32x64xbf16>
    %cst_78 = arith.constant dense<0.000000e+00> : vector<43x64xf32>
    %87 = tpu.matmul %84, %86, %cst_78 {dimension_numbers = #tpu.dot_dimension_numbers<[1], [0], [0], [1], [0, 0, 1, 1], [], []>} : vector<43x32xbf16>, vector<32x64xbf16>, vector<43x64xf32> -> vector<43x64xf32>
    %88 = arith.addf %83, %87 : vector<43x64xf32>
    %89 = vector.extract_strided_slice %54 {offsets = [7, 0], sizes = [43, 32], strides = [1, 1]} : vector<50x32xbf16> to vector<43x32xbf16>
    %c0_79 = arith.constant 0 : index
    %c7_80 = arith.constant 7 : index
    %c0_81 = arith.constant 0 : index
    %c0_82 = arith.constant 0 : index
    %90 = vector.load %arg4[%c0_79, %c7_80, %c0_81, %c0_82] : memref<1x8x32x64xbf16, #tpu.memory_space<vmem>>, vector<1x1x32x64xbf16>
    %91 = vector.shape_cast %90 : vector<1x1x32x64xbf16> to vector<32x64xbf16>
    %cst_83 = arith.constant dense<0.000000e+00> : vector<43x64xf32>
    %92 = tpu.matmul %89, %91, %cst_83 {dimension_numbers = #tpu.dot_dimension_numbers<[1], [0], [0], [1], [0, 0, 1, 1], [], []>} : vector<43x32xbf16>, vector<32x64xbf16>, vector<43x64xf32> -> vector<43x64xf32>
    %93 = arith.addf %88, %92 : vector<43x64xf32>
    %c0_84 = arith.constant 0 : index
    %c0_85 = arith.constant 0 : index
    %c0_86 = arith.constant 0 : index
    %94 = vector.load %arg5[%c0_84, %c0_85, %c0_86] : memref<1x1x64xf32, #tpu.memory_space<vmem>>, vector<1x1x64xf32>
    %95 = vector.shape_cast %94 : vector<1x1x64xf32> to vector<1x64xf32>
    %96 = vector.broadcast %95 : vector<1x64xf32> to vector<43x64xf32>
    %97 = arith.addf %93, %96 : vector<43x64xf32>
    %cst_87 = arith.constant 0.000000e+00 : f32
    %98 = vector.broadcast %cst_87 : f32 to vector<43x64xf32>
    %99 = arith.maximumf %97, %98 : vector<43x64xf32>
    %100 = arith.truncf %99 : vector<43x64xf32> to vector<43x64xbf16>
    %c0_88 = arith.constant 0 : index
    %c0_89 = arith.constant 0 : index
    %101 = vector.load %arg10[%c0_88, %c0_89] : memref<36x43xbf16, #tpu.memory_space<vmem>>, vector<36x43xbf16>
    %cst_90 = arith.constant dense<0.000000e+00> : vector<36x64xf32>
    %102 = tpu.matmul %101, %100, %cst_90 {dimension_numbers = #tpu.dot_dimension_numbers<[1], [0], [0], [1], [0, 0, 1, 1], [], []>} : vector<36x43xbf16>, vector<43x64xbf16>, vector<36x64xf32> -> vector<36x64xf32>
    %c0_91 = arith.constant 0 : index
    %c0_92 = arith.constant 0 : index
    %103 = vector.load %arg11[%c0_91, %c0_92] : memref<36x43xbf16, #tpu.memory_space<vmem>>, vector<36x43xbf16>
    %cst_93 = arith.constant dense<0.000000e+00> : vector<36x64xf32>
    %104 = tpu.matmul %103, %100, %cst_93 {dimension_numbers = #tpu.dot_dimension_numbers<[1], [0], [0], [1], [0, 0, 1, 1], [], []>} : vector<36x43xbf16>, vector<43x64xbf16>, vector<36x64xf32> -> vector<36x64xf32>
    %105 = arith.maximumf %102, %104 : vector<36x64xf32>
    %106 = arith.truncf %105 : vector<36x64xf32> to vector<36x64xbf16>
    %107 = vector.extract_strided_slice %106 {offsets = [0, 0], sizes = [29, 64], strides = [1, 1]} : vector<36x64xbf16> to vector<29x64xbf16>
    %c0_94 = arith.constant 0 : index
    %c0_95 = arith.constant 0 : index
    %c0_96 = arith.constant 0 : index
    %c0_97 = arith.constant 0 : index
    %108 = vector.load %arg6[%c0_94, %c0_95, %c0_96, %c0_97] : memref<1x8x64x64xbf16, #tpu.memory_space<vmem>>, vector<1x1x64x64xbf16>
    %109 = vector.shape_cast %108 : vector<1x1x64x64xbf16> to vector<64x64xbf16>
    %cst_98 = arith.constant dense<0.000000e+00> : vector<29x64xf32>
    %110 = tpu.matmul %107, %109, %cst_98 {dimension_numbers = #tpu.dot_dimension_numbers<[1], [0], [0], [1], [0, 0, 1, 1], [], []>} : vector<29x64xbf16>, vector<64x64xbf16>, vector<29x64xf32> -> vector<29x64xf32>
    %111 = vector.extract_strided_slice %106 {offsets = [1, 0], sizes = [29, 64], strides = [1, 1]} : vector<36x64xbf16> to vector<29x64xbf16>
    %c0_99 = arith.constant 0 : index
    %c1_100 = arith.constant 1 : index
    %c0_101 = arith.constant 0 : index
    %c0_102 = arith.constant 0 : index
    %112 = vector.load %arg6[%c0_99, %c1_100, %c0_101, %c0_102] : memref<1x8x64x64xbf16, #tpu.memory_space<vmem>>, vector<1x1x64x64xbf16>
    %113 = vector.shape_cast %112 : vector<1x1x64x64xbf16> to vector<64x64xbf16>
    %cst_103 = arith.constant dense<0.000000e+00> : vector<29x64xf32>
    %114 = tpu.matmul %111, %113, %cst_103 {dimension_numbers = #tpu.dot_dimension_numbers<[1], [0], [0], [1], [0, 0, 1, 1], [], []>} : vector<29x64xbf16>, vector<64x64xbf16>, vector<29x64xf32> -> vector<29x64xf32>
    %115 = arith.addf %110, %114 : vector<29x64xf32>
    %116 = vector.extract_strided_slice %106 {offsets = [2, 0], sizes = [29, 64], strides = [1, 1]} : vector<36x64xbf16> to vector<29x64xbf16>
    %c0_104 = arith.constant 0 : index
    %c2_105 = arith.constant 2 : index
    %c0_106 = arith.constant 0 : index
    %c0_107 = arith.constant 0 : index
    %117 = vector.load %arg6[%c0_104, %c2_105, %c0_106, %c0_107] : memref<1x8x64x64xbf16, #tpu.memory_space<vmem>>, vector<1x1x64x64xbf16>
    %118 = vector.shape_cast %117 : vector<1x1x64x64xbf16> to vector<64x64xbf16>
    %cst_108 = arith.constant dense<0.000000e+00> : vector<29x64xf32>
    %119 = tpu.matmul %116, %118, %cst_108 {dimension_numbers = #tpu.dot_dimension_numbers<[1], [0], [0], [1], [0, 0, 1, 1], [], []>} : vector<29x64xbf16>, vector<64x64xbf16>, vector<29x64xf32> -> vector<29x64xf32>
    %120 = arith.addf %115, %119 : vector<29x64xf32>
    %121 = vector.extract_strided_slice %106 {offsets = [3, 0], sizes = [29, 64], strides = [1, 1]} : vector<36x64xbf16> to vector<29x64xbf16>
    %c0_109 = arith.constant 0 : index
    %c3_110 = arith.constant 3 : index
    %c0_111 = arith.constant 0 : index
    %c0_112 = arith.constant 0 : index
    %122 = vector.load %arg6[%c0_109, %c3_110, %c0_111, %c0_112] : memref<1x8x64x64xbf16, #tpu.memory_space<vmem>>, vector<1x1x64x64xbf16>
    %123 = vector.shape_cast %122 : vector<1x1x64x64xbf16> to vector<64x64xbf16>
    %cst_113 = arith.constant dense<0.000000e+00> : vector<29x64xf32>
    %124 = tpu.matmul %121, %123, %cst_113 {dimension_numbers = #tpu.dot_dimension_numbers<[1], [0], [0], [1], [0, 0, 1, 1], [], []>} : vector<29x64xbf16>, vector<64x64xbf16>, vector<29x64xf32> -> vector<29x64xf32>
    %125 = arith.addf %120, %124 : vector<29x64xf32>
    %126 = vector.extract_strided_slice %106 {offsets = [4, 0], sizes = [29, 64], strides = [1, 1]} : vector<36x64xbf16> to vector<29x64xbf16>
    %c0_114 = arith.constant 0 : index
    %c4_115 = arith.constant 4 : index
    %c0_116 = arith.constant 0 : index
    %c0_117 = arith.constant 0 : index
    %127 = vector.load %arg6[%c0_114, %c4_115, %c0_116, %c0_117] : memref<1x8x64x64xbf16, #tpu.memory_space<vmem>>, vector<1x1x64x64xbf16>
    %128 = vector.shape_cast %127 : vector<1x1x64x64xbf16> to vector<64x64xbf16>
    %cst_118 = arith.constant dense<0.000000e+00> : vector<29x64xf32>
    %129 = tpu.matmul %126, %128, %cst_118 {dimension_numbers = #tpu.dot_dimension_numbers<[1], [0], [0], [1], [0, 0, 1, 1], [], []>} : vector<29x64xbf16>, vector<64x64xbf16>, vector<29x64xf32> -> vector<29x64xf32>
    %130 = arith.addf %125, %129 : vector<29x64xf32>
    %131 = vector.extract_strided_slice %106 {offsets = [5, 0], sizes = [29, 64], strides = [1, 1]} : vector<36x64xbf16> to vector<29x64xbf16>
    %c0_119 = arith.constant 0 : index
    %c5_120 = arith.constant 5 : index
    %c0_121 = arith.constant 0 : index
    %c0_122 = arith.constant 0 : index
    %132 = vector.load %arg6[%c0_119, %c5_120, %c0_121, %c0_122] : memref<1x8x64x64xbf16, #tpu.memory_space<vmem>>, vector<1x1x64x64xbf16>
    %133 = vector.shape_cast %132 : vector<1x1x64x64xbf16> to vector<64x64xbf16>
    %cst_123 = arith.constant dense<0.000000e+00> : vector<29x64xf32>
    %134 = tpu.matmul %131, %133, %cst_123 {dimension_numbers = #tpu.dot_dimension_numbers<[1], [0], [0], [1], [0, 0, 1, 1], [], []>} : vector<29x64xbf16>, vector<64x64xbf16>, vector<29x64xf32> -> vector<29x64xf32>
    %135 = arith.addf %130, %134 : vector<29x64xf32>
    %136 = vector.extract_strided_slice %106 {offsets = [6, 0], sizes = [29, 64], strides = [1, 1]} : vector<36x64xbf16> to vector<29x64xbf16>
    %c0_124 = arith.constant 0 : index
    %c6_125 = arith.constant 6 : index
    %c0_126 = arith.constant 0 : index
    %c0_127 = arith.constant 0 : index
    %137 = vector.load %arg6[%c0_124, %c6_125, %c0_126, %c0_127] : memref<1x8x64x64xbf16, #tpu.memory_space<vmem>>, vector<1x1x64x64xbf16>
    %138 = vector.shape_cast %137 : vector<1x1x64x64xbf16> to vector<64x64xbf16>
    %cst_128 = arith.constant dense<0.000000e+00> : vector<29x64xf32>
    %139 = tpu.matmul %136, %138, %cst_128 {dimension_numbers = #tpu.dot_dimension_numbers<[1], [0], [0], [1], [0, 0, 1, 1], [], []>} : vector<29x64xbf16>, vector<64x64xbf16>, vector<29x64xf32> -> vector<29x64xf32>
    %140 = arith.addf %135, %139 : vector<29x64xf32>
    %141 = vector.extract_strided_slice %106 {offsets = [7, 0], sizes = [29, 64], strides = [1, 1]} : vector<36x64xbf16> to vector<29x64xbf16>
    %c0_129 = arith.constant 0 : index
    %c7_130 = arith.constant 7 : index
    %c0_131 = arith.constant 0 : index
    %c0_132 = arith.constant 0 : index
    %142 = vector.load %arg6[%c0_129, %c7_130, %c0_131, %c0_132] : memref<1x8x64x64xbf16, #tpu.memory_space<vmem>>, vector<1x1x64x64xbf16>
    %143 = vector.shape_cast %142 : vector<1x1x64x64xbf16> to vector<64x64xbf16>
    %cst_133 = arith.constant dense<0.000000e+00> : vector<29x64xf32>
    %144 = tpu.matmul %141, %143, %cst_133 {dimension_numbers = #tpu.dot_dimension_numbers<[1], [0], [0], [1], [0, 0, 1, 1], [], []>} : vector<29x64xbf16>, vector<64x64xbf16>, vector<29x64xf32> -> vector<29x64xf32>
    %145 = arith.addf %140, %144 : vector<29x64xf32>
    %c0_134 = arith.constant 0 : index
    %c0_135 = arith.constant 0 : index
    %c0_136 = arith.constant 0 : index
    %146 = vector.load %arg7[%c0_134, %c0_135, %c0_136] : memref<1x1x64xf32, #tpu.memory_space<vmem>>, vector<1x1x64xf32>
    %147 = vector.shape_cast %146 : vector<1x1x64xf32> to vector<1x64xf32>
    %148 = vector.broadcast %147 : vector<1x64xf32> to vector<29x64xf32>
    %149 = arith.addf %145, %148 : vector<29x64xf32>
    %cst_137 = arith.constant 0.000000e+00 : f32
    %150 = vector.broadcast %cst_137 : f32 to vector<29x64xf32>
    %151 = arith.maximumf %149, %150 : vector<29x64xf32>
    %152 = arith.truncf %151 : vector<29x64xf32> to vector<29x64xbf16>
    %c0_138 = arith.constant 0 : index
    %c0_139 = arith.constant 0 : index
    %153 = vector.load %arg12[%c0_138, %c0_139] : memref<12x29xbf16, #tpu.memory_space<vmem>>, vector<12x29xbf16>
    %cst_140 = arith.constant dense<0.000000e+00> : vector<12x64xf32>
    %154 = tpu.matmul %153, %152, %cst_140 {dimension_numbers = #tpu.dot_dimension_numbers<[1], [0], [0], [1], [0, 0, 1, 1], [], []>} : vector<12x29xbf16>, vector<29x64xbf16>, vector<12x64xf32> -> vector<12x64xf32>
    %c0_141 = arith.constant 0 : index
    %c0_142 = arith.constant 0 : index
    %155 = vector.load %arg13[%c0_141, %c0_142] : memref<12x29xbf16, #tpu.memory_space<vmem>>, vector<12x29xbf16>
    %cst_143 = arith.constant dense<0.000000e+00> : vector<12x64xf32>
    %156 = tpu.matmul %155, %152, %cst_143 {dimension_numbers = #tpu.dot_dimension_numbers<[1], [0], [0], [1], [0, 0, 1, 1], [], []>} : vector<12x29xbf16>, vector<29x64xbf16>, vector<12x64xf32> -> vector<12x64xf32>
    %157 = arith.maximumf %154, %156 : vector<12x64xf32>
    %c0_144 = arith.constant 0 : index
    %c0_145 = arith.constant 0 : index
    %c0_146 = arith.constant 0 : index
    %158 = vector.load %arg18[%c0_144, %c0_145, %c0_146] : memref<1x12x64xf32, #tpu.memory_space<vmem>>, vector<1x12x64xf32>
    %159 = vector.shape_cast %158 : vector<1x12x64xf32> to vector<12x64xf32>
    %160 = vector.shape_cast %157 : vector<12x64xf32> to vector<1x12x64xf32>
    tpu.vector_store %arg18[%c0_144, %c0_145, %c0_146], %160 {strides = array<i32>} : memref<1x12x64xf32, #tpu.memory_space<vmem>>, vector<1x12x64xf32>,
    %161 = arith.truncf %157 : vector<12x64xf32> to vector<12x64xbf16>
    %162 = vector.extract_strided_slice %161 {offsets = [0, 0], sizes = [2, 64], strides = [1, 1]} : vector<12x64xbf16> to vector<2x64xbf16>
    %c0_147 = arith.constant 0 : index
    %c0_148 = arith.constant 0 : index
    %c0_149 = arith.constant 0 : index
    %c0_150 = arith.constant 0 : index
    %163 = vector.load %arg14[%c0_147, %c0_148, %c0_149, %c0_150] : memref<1x6x64x256xbf16, #tpu.memory_space<vmem>>, vector<1x1x64x256xbf16>
    %164 = vector.shape_cast %163 : vector<1x1x64x256xbf16> to vector<64x256xbf16>
    %cst_151 = arith.constant dense<0.000000e+00> : vector<2x256xf32>
    %165 = tpu.matmul %162, %164, %cst_151 {dimension_numbers = #tpu.dot_dimension_numbers<[1], [0], [0], [1], [0, 0, 1, 1], [], []>} : vector<2x64xbf16>, vector<64x256xbf16>, vector<2x256xf32> -> vector<2x256xf32>
    %166 = vector.extract_strided_slice %161 {offsets = [2, 0], sizes = [2, 64], strides = [1, 1]} : vector<12x64xbf16> to vector<2x64xbf16>
    %c0_152 = arith.constant 0 : index
    %c1_153 = arith.constant 1 : index
    %c0_154 = arith.constant 0 : index
    %c0_155 = arith.constant 0 : index
    %167 = vector.load %arg14[%c0_152, %c1_153, %c0_154, %c0_155] : memref<1x6x64x256xbf16, #tpu.memory_space<vmem>>, vector<1x1x64x256xbf16>
    %168 = vector.shape_cast %167 : vector<1x1x64x256xbf16> to vector<64x256xbf16>
    %cst_156 = arith.constant dense<0.000000e+00> : vector<2x256xf32>
    %169 = tpu.matmul %166, %168, %cst_156 {dimension_numbers = #tpu.dot_dimension_numbers<[1], [0], [0], [1], [0, 0, 1, 1], [], []>} : vector<2x64xbf16>, vector<64x256xbf16>, vector<2x256xf32> -> vector<2x256xf32>
    %170 = arith.addf %165, %169 : vector<2x256xf32>
    %171 = vector.extract_strided_slice %161 {offsets = [4, 0], sizes = [2, 64], strides = [1, 1]} : vector<12x64xbf16> to vector<2x64xbf16>
    %c0_157 = arith.constant 0 : index
    %c2_158 = arith.constant 2 : index
    %c0_159 = arith.constant 0 : index
    %c0_160 = arith.constant 0 : index
    %172 = vector.load %arg14[%c0_157, %c2_158, %c0_159, %c0_160] : memref<1x6x64x256xbf16, #tpu.memory_space<vmem>>, vector<1x1x64x256xbf16>
    %173 = vector.shape_cast %172 : vector<1x1x64x256xbf16> to vector<64x256xbf16>
    %cst_161 = arith.constant dense<0.000000e+00> : vector<2x256xf32>
    %174 = tpu.matmul %171, %173, %cst_161 {dimension_numbers = #tpu.dot_dimension_numbers<[1], [0], [0], [1], [0, 0, 1, 1], [], []>} : vector<2x64xbf16>, vector<64x256xbf16>, vector<2x256xf32> -> vector<2x256xf32>
    %175 = arith.addf %170, %174 : vector<2x256xf32>
    %176 = vector.extract_strided_slice %161 {offsets = [6, 0], sizes = [2, 64], strides = [1, 1]} : vector<12x64xbf16> to vector<2x64xbf16>
    %c0_162 = arith.constant 0 : index
    %c3_163 = arith.constant 3 : index
    %c0_164 = arith.constant 0 : index
    %c0_165 = arith.constant 0 : index
    %177 = vector.load %arg14[%c0_162, %c3_163, %c0_164, %c0_165] : memref<1x6x64x256xbf16, #tpu.memory_space<vmem>>, vector<1x1x64x256xbf16>
    %178 = vector.shape_cast %177 : vector<1x1x64x256xbf16> to vector<64x256xbf16>
    %cst_166 = arith.constant dense<0.000000e+00> : vector<2x256xf32>
    %179 = tpu.matmul %176, %178, %cst_166 {dimension_numbers = #tpu.dot_dimension_numbers<[1], [0], [0], [1], [0, 0, 1, 1], [], []>} : vector<2x64xbf16>, vector<64x256xbf16>, vector<2x256xf32> -> vector<2x256xf32>
    %180 = arith.addf %175, %179 : vector<2x256xf32>
    %181 = vector.extract_strided_slice %161 {offsets = [8, 0], sizes = [2, 64], strides = [1, 1]} : vector<12x64xbf16> to vector<2x64xbf16>
    %c0_167 = arith.constant 0 : index
    %c4_168 = arith.constant 4 : index
    %c0_169 = arith.constant 0 : index
    %c0_170 = arith.constant 0 : index
    %182 = vector.load %arg14[%c0_167, %c4_168, %c0_169, %c0_170] : memref<1x6x64x256xbf16, #tpu.memory_space<vmem>>, vector<1x1x64x256xbf16>
    %183 = vector.shape_cast %182 : vector<1x1x64x256xbf16> to vector<64x256xbf16>
    %cst_171 = arith.constant dense<0.000000e+00> : vector<2x256xf32>
    %184 = tpu.matmul %181, %183, %cst_171 {dimension_numbers = #tpu.dot_dimension_numbers<[1], [0], [0], [1], [0, 0, 1, 1], [], []>} : vector<2x64xbf16>, vector<64x256xbf16>, vector<2x256xf32> -> vector<2x256xf32>
    %185 = arith.addf %180, %184 : vector<2x256xf32>
    %186 = vector.extract_strided_slice %161 {offsets = [10, 0], sizes = [2, 64], strides = [1, 1]} : vector<12x64xbf16> to vector<2x64xbf16>
    %c0_172 = arith.constant 0 : index
    %c5_173 = arith.constant 5 : index
    %c0_174 = arith.constant 0 : index
    %c0_175 = arith.constant 0 : index
    %187 = vector.load %arg14[%c0_172, %c5_173, %c0_174, %c0_175] : memref<1x6x64x256xbf16, #tpu.memory_space<vmem>>, vector<1x1x64x256xbf16>
    %188 = vector.shape_cast %187 : vector<1x1x64x256xbf16> to vector<64x256xbf16>
    %cst_176 = arith.constant dense<0.000000e+00> : vector<2x256xf32>
    %189 = tpu.matmul %186, %188, %cst_176 {dimension_numbers = #tpu.dot_dimension_numbers<[1], [0], [0], [1], [0, 0, 1, 1], [], []>} : vector<2x64xbf16>, vector<64x256xbf16>, vector<2x256xf32> -> vector<2x256xf32>
    %190 = arith.addf %185, %189 : vector<2x256xf32>
    %c0_177 = arith.constant 0 : index
    %c0_178 = arith.constant 0 : index
    %c0_179 = arith.constant 0 : index
    %191 = vector.load %arg15[%c0_177, %c0_178, %c0_179] : memref<1x1x256xf32, #tpu.memory_space<vmem>>, vector<1x1x256xf32>
    %192 = vector.shape_cast %191 : vector<1x1x256xf32> to vector<1x256xf32>
    %193 = vector.broadcast %192 : vector<1x256xf32> to vector<2x256xf32>
    %194 = arith.addf %190, %193 : vector<2x256xf32>
    %cst_180 = arith.constant 0.000000e+00 : f32
    %195 = vector.broadcast %cst_180 : f32 to vector<2x256xf32>
    %196 = arith.maximumf %194, %195 : vector<2x256xf32>
    %197 = arith.truncf %196 : vector<2x256xf32> to vector<2x256xbf16>
    %c0_181 = arith.constant 0 : index
    %c0_182 = arith.constant 0 : index
    %c0_183 = arith.constant 0 : index
    %198 = vector.load %arg16[%c0_181, %c0_182, %c0_183] : memref<1x256x128xbf16, #tpu.memory_space<vmem>>, vector<1x256x128xbf16>
    %199 = vector.shape_cast %198 : vector<1x256x128xbf16> to vector<256x128xbf16>
    %cst_184 = arith.constant dense<0.000000e+00> : vector<2x128xf32>
    %200 = tpu.matmul %197, %199, %cst_184 {dimension_numbers = #tpu.dot_dimension_numbers<[1], [0], [0], [1], [0, 0, 1, 1], [], []>} : vector<2x256xbf16>, vector<256x128xbf16>, vector<2x128xf32> -> vector<2x128xf32>
    %c0_185 = arith.constant 0 : index
    %c0_186 = arith.constant 0 : index
    %c0_187 = arith.constant 0 : index
    %201 = vector.load %arg17[%c0_185, %c0_186, %c0_187] : memref<1x1x128xf32, #tpu.memory_space<vmem>>, vector<1x1x128xf32>
    %202 = vector.shape_cast %201 : vector<1x1x128xf32> to vector<1x128xf32>
    %203 = vector.broadcast %202 : vector<1x128xf32> to vector<2x128xf32>
    %204 = arith.addf %200, %203 : vector<2x128xf32>
    %c0_188 = arith.constant 0 : index
    %c0_189 = arith.constant 0 : index
    %c0_190 = arith.constant 0 : index
    %205 = vector.load %arg19[%c0_188, %c0_189, %c0_190] : memref<1x2x128xf32, #tpu.memory_space<vmem>>, vector<1x2x128xf32>
    %206 = vector.shape_cast %205 : vector<1x2x128xf32> to vector<2x128xf32>
    %207 = vector.shape_cast %204 : vector<2x128xf32> to vector<1x2x128xf32>
    tpu.vector_store %arg19[%c0_188, %c0_189, %c0_190], %207 {strides = array<i32>} : memref<1x2x128xf32, #tpu.memory_space<vmem>>, vector<1x2x128xf32>,
    return
  }
  func.func @transform_0(%arg0: i32) -> (i32, i32, i32) {
    %c0_i32 = arith.constant 0 : i32
    %c0_i32_0 = arith.constant 0 : i32
    %c0_i32_1 = arith.constant 0 : i32
    return %arg0, %c0_i32, %c0_i32_0 : i32, i32, i32
  }
  func.func @transform_1(%arg0: i32) -> (i32, i32, i32, i32) {
    %c0_i32 = arith.constant 0 : i32
    %c0_i32_0 = arith.constant 0 : i32
    %c0_i32_1 = arith.constant 0 : i32
    %c0_i32_2 = arith.constant 0 : i32
    return %arg0, %c0_i32, %c0_i32_0, %c0_i32_1 : i32, i32, i32, i32
  }
  func.func @transform_2(%arg0: i32) -> (i32, i32, i32) {
    %c0_i32 = arith.constant 0 : i32
    %c0_i32_0 = arith.constant 0 : i32
    %c0_i32_1 = arith.constant 0 : i32
    return %arg0, %c0_i32, %c0_i32_0 : i32, i32, i32
  }
  func.func @transform_3(%arg0: i32) -> (i32, i32, i32, i32) {
    %c0_i32 = arith.constant 0 : i32
    %c0_i32_0 = arith.constant 0 : i32
    %c0_i32_1 = arith.constant 0 : i32
    %c0_i32_2 = arith.constant 0 : i32
    return %arg0, %c0_i32, %c0_i32_0, %c0_i32_1 : i32, i32, i32, i32
  }
  func.func @transform_4(%arg0: i32) -> (i32, i32, i32) {
    %c0_i32 = arith.constant 0 : i32
    %c0_i32_0 = arith.constant 0 : i32
    %c0_i32_1 = arith.constant 0 : i32
    return %arg0, %c0_i32, %c0_i32_0 : i32, i32, i32
  }
  func.func @transform_5(%arg0: i32) -> (i32, i32, i32, i32) {
    %c0_i32 = arith.constant 0 : i32
    %c0_i32_0 = arith.constant 0 : i32
    %c0_i32_1 = arith.constant 0 : i32
    %c0_i32_2 = arith.constant 0 : i32
    return %arg0, %c0_i32, %c0_i32_0, %c0_i32_1 : i32, i32, i32, i32
  }
  func.func @transform_6(%arg0: i32) -> (i32, i32, i32) {
    %c0_i32 = arith.constant 0 : i32
    %c0_i32_0 = arith.constant 0 : i32
    %c0_i32_1 = arith.constant 0 : i32
    return %arg0, %c0_i32, %c0_i32_0 : i32, i32, i32
  }
  func.func @transform_7(%arg0: i32) -> (i32, i32) {
    %c0_i32 = arith.constant 0 : i32
    %c0_i32_0 = arith.constant 0 : i32
    %c0_i32_1 = arith.constant 0 : i32
    return %c0_i32, %c0_i32_0 : i32, i32
  }
  func.func @transform_8(%arg0: i32) -> (i32, i32) {
    %c0_i32 = arith.constant 0 : i32
    %c0_i32_0 = arith.constant 0 : i32
    %c0_i32_1 = arith.constant 0 : i32
    return %c0_i32, %c0_i32_0 : i32, i32
  }
  func.func @transform_9(%arg0: i32) -> (i32, i32) {
    %c0_i32 = arith.constant 0 : i32
    %c0_i32_0 = arith.constant 0 : i32
    %c0_i32_1 = arith.constant 0 : i32
    return %c0_i32, %c0_i32_0 : i32, i32
  }
  func.func @transform_10(%arg0: i32) -> (i32, i32) {
    %c0_i32 = arith.constant 0 : i32
    %c0_i32_0 = arith.constant 0 : i32
    %c0_i32_1 = arith.constant 0 : i32
    return %c0_i32, %c0_i32_0 : i32, i32
  }
  func.func @transform_11(%arg0: i32) -> (i32, i32) {
    %c0_i32 = arith.constant 0 : i32
    %c0_i32_0 = arith.constant 0 : i32
    %c0_i32_1 = arith.constant 0 : i32
    return %c0_i32, %c0_i32_0 : i32, i32
  }
  func.func @transform_12(%arg0: i32) -> (i32, i32) {
    %c0_i32 = arith.constant 0 : i32
    %c0_i32_0 = arith.constant 0 : i32
    %c0_i32_1 = arith.constant 0 : i32
    return %c0_i32, %c0_i32_0 : i32, i32
  }
  func.func @transform_13(%arg0: i32) -> (i32, i32, i32, i32) {
    %c0_i32 = arith.constant 0 : i32
    %c0_i32_0 = arith.constant 0 : i32
    %c0_i32_1 = arith.constant 0 : i32
    %c0_i32_2 = arith.constant 0 : i32
    return %arg0, %c0_i32, %c0_i32_0, %c0_i32_1 : i32, i32, i32, i32
  }
  func.func @transform_14(%arg0: i32) -> (i32, i32, i32) {
    %c0_i32 = arith.constant 0 : i32
    %c0_i32_0 = arith.constant 0 : i32
    %c0_i32_1 = arith.constant 0 : i32
    return %arg0, %c0_i32, %c0_i32_0 : i32, i32, i32
  }
  func.func @transform_15(%arg0: i32) -> (i32, i32, i32) {
    %c0_i32 = arith.constant 0 : i32
    %c0_i32_0 = arith.constant 0 : i32
    %c0_i32_1 = arith.constant 0 : i32
    return %arg0, %c0_i32, %c0_i32_0 : i32, i32, i32
  }
  func.func @transform_16(%arg0: i32) -> (i32, i32, i32) {
    %c0_i32 = arith.constant 0 : i32
    %c0_i32_0 = arith.constant 0 : i32
    %c0_i32_1 = arith.constant 0 : i32
    return %arg0, %c0_i32, %c0_i32_0 : i32, i32, i32
  }
  func.func @transform_17(%arg0: i32) -> (i32, i32, i32) {
    %c0_i32 = arith.constant 0 : i32
    %c0_i32_0 = arith.constant 0 : i32
    %c0_i32_1 = arith.constant 0 : i32
    return %arg0, %c0_i32, %c0_i32_0 : i32, i32, i32
  }
  func.func @transform_18(%arg0: i32) -> (i32, i32, i32) {
    %c0_i32 = arith.constant 0 : i32
    %c0_i32_0 = arith.constant 0 : i32
    %c0_i32_1 = arith.constant 0 : i32
    return %arg0, %c0_i32, %c0_i32_0 : i32, i32, i32
  }
}

</mosaic_0001>

<llo_original>
// kernel: squeeze.4
$region0: #{squeeze.4}
  %s0 = inlined_call_operand.vmem [shape: f32[1,12,64], index: 0, kind: input, shape index: {}]
  %s1 = inlined_call_operand.vmem [shape: f32[6,2,64], index: 1, kind: output, shape index: {}]
  $region1: #{squeeze.4} parent=0
    #allocation0 [shape = 'u8[24576]{0}', space=vmem, size = 0x6000, scoped, tag = 'scoped mem for output reshape']
    %v2 = vld [vmem:[%s0] sm:$0xff]
    %vm3 = vcmask 523264
    %4 = vst.msk [vmem:[#allocation0] sm:$0x3] %vm3, %v2
    %s5 = scalar_lea.vmem [#allocation0], 6
    %6 = vst.msk [vmem:[%s5] sm:$0xc] %vm3, %v2
    %s7 = scalar_lea.vmem [#allocation0], 12
    %8 = vst.msk [vmem:[%s7] sm:$0x30] %vm3, %v2
    %s9 = scalar_lea.vmem [#allocation0], 18
    %10 = vst.msk [vmem:[%s9] sm:$0xc0] %vm3, %v2
    %s11 = scalar_lea.vmem %s0, 8
    %v12 = vld [vmem:[%s11] sm:$0xf]
    %vm13 = vcmask 523264
    %s14 = scalar_lea.vmem [#allocation0], 32
    %15 = vst.msk [vmem:[%s14] sm:$0x3] %vm13, %v12
    %s16 = scalar_lea.vmem [#allocation0], 38
    %17 = vst.msk [vmem:[%s16] sm:$0xc] %vm13, %v12
    %s19 = sshllo.u32 0, 2
    %v21 = vld [vmem:[#allocation0] sm:%s19]
    %s22 = sshllo.u32 0, 2
    %23 = vst [vmem:[%s1] sm:%s22] %v21
    %s24 = scalar_lea.vmem [#allocation0], 8
    %v25 = vld [vmem:[%s24] sm:%s19]
    %s26 = sshllo.u32 0, 2
    %s27 = scalar_lea.vmem %s1, 2
    %28 = vst [vmem:[%s27] sm:%s26] %v25
    %s29 = scalar_lea.vmem [#allocation0], 16
    %v30 = vld [vmem:[%s29] sm:%s19]
    %s31 = sshllo.u32 0, 2
    %s32 = smul.addr 2, 2
    %s33 = scalar_lea.vmem %s1, %s32
    %34 = vst [vmem:[%s33] sm:%s31] %v30
    %s35 = scalar_lea.vmem [#allocation0], 24
    %v36 = vld [vmem:[%s35] sm:%s19]
    %s37 = sshllo.u32 0, 2
    %s38 = smul.addr 2, 3
    %s39 = scalar_lea.vmem %s1, %s38
    %40 = vst [vmem:[%s39] sm:%s37] %v36
    %s41 = scalar_lea.vmem [#allocation0], 32
    %v42 = vld [vmem:[%s41] sm:%s19]
    %s43 = sshllo.u32 0, 2
    %s44 = smul.addr 2, 4
    %s45 = scalar_lea.vmem %s1, %s44
    %46 = vst [vmem:[%s45] sm:%s43] %v42
    %s47 = scalar_lea.vmem [#allocation0], 40
    %v48 = vld [vmem:[%s47] sm:%s19]
    %s49 = sshllo.u32 0, 2
    %s50 = smul.addr 2, 5
    %s51 = scalar_lea.vmem %s1, %s50
    %52 = vst [vmem:[%s51] sm:%s49] %v48

// kernel: tfc_forward.1
$region0: #{tfc_forward.1}
  #allocation0 [shape = 'u32[]', space=smem, size = 0x4, offset = 0x4, fixed_abs, tag = 'smem constant byte address 0x4 - core index']
  #allocation1 [shape = 'u32[144,128]{1,0:T(1,128)}', space=vmem, size = 0x12000, scoped, tag = 'internal scratch']
  %s0 = inlined_call_operand.vmem [shape: f32[2,80,4], index: 0, kind: input, shape index: {}]
  %s1 = inlined_call_operand.vmem [shape: bf16[2,8,4,32], index: 1, kind: input, shape index: {}]
  %s2 = inlined_call_operand.vmem [shape: f32[2,1,32], index: 2, kind: input, shape index: {}]
  %s3 = inlined_call_operand.vmem [shape: bf16[2,8,32,64], index: 3, kind: input, shape index: {}]
  %s4 = inlined_call_operand.vmem [shape: f32[2,1,64], index: 4, kind: input, shape index: {}]
  %s5 = inlined_call_operand.vmem [shape: bf16[2,8,64,64], index: 5, kind: input, shape index: {}]
  %s6 = inlined_call_operand.vmem [shape: f32[2,1,64], index: 6, kind: input, shape index: {}]
  %s7 = inlined_call_operand.vmem [shape: bf16[50,73], index: 7, kind: input, shape index: {}]
  %s8 = inlined_call_operand.vmem [shape: bf16[50,73], index: 8, kind: input, shape index: {}]
  %s9 = inlined_call_operand.vmem [shape: bf16[36,43], index: 9, kind: input, shape index: {}]
  %s10 = inlined_call_operand.vmem [shape: bf16[36,43], index: 10, kind: input, shape index: {}]
  %s11 = inlined_call_operand.vmem [shape: bf16[12,29], index: 11, kind: input, shape index: {}]
  %s12 = inlined_call_operand.vmem [shape: bf16[12,29], index: 12, kind: input, shape index: {}]
  %s13 = inlined_call_operand.vmem [shape: bf16[2,6,64,256], index: 13, kind: input, shape index: {}]
  %s14 = inlined_call_operand.vmem [shape: f32[2,1,256], index: 14, kind: input, shape index: {}]
  %s15 = inlined_call_operand.vmem [shape: bf16[2,256,128], index: 15, kind: input, shape index: {}]
  %s16 = inlined_call_operand.vmem [shape: f32[2,1,128], index: 16, kind: input, shape index: {}]
  %s17 = inlined_call_operand.vmem [shape: f32[2,12,64], index: 17, kind: output, shape index: {0}]
  %s18 = inlined_call_operand.vmem [shape: f32[2,2,128], index: 18, kind: output, shape index: {1}]
  %19 = xla_tuple %s17, %s18
  %s20 = sld [smem:[#allocation0]]
  $region109: #{tfc_forward.1} parent=0
    _
  %s22 = ssub.s32 1, %s20
  %s23 = scalar_select 0, %s22, %s20
  loop: start=0, step=1, limit=4
  $region2: #{tfc_forward.1} parent=0 // loop_pre_header
    _
  $region3: #{tfc_forward.1} parent=0 // loop_header
    %s25 = sphi 0, %s29
    %p26 = scmp.ge.s32.totalorder %s25, 4
    %s35 = sphi 0, %s37
    %s38 = sphi 0, %s35
    %s39 = sphi 0, %s38
    %s55 = sphi 0, %s39
    %s61 = sphi 0, %s63
    %s64 = sphi 0, %s61
    %s65 = sphi 0, %s64
    %s81 = sphi 0, %s65
    %s87 = sphi 0, %s89
    %s90 = sphi 0, %s87
    %s91 = sphi 0, %s90
    %s107 = sphi 0, %s91
    %s113 = sphi 0, %s115
    %s116 = sphi 0, %s113
    %s117 = sphi 0, %s116
    %s133 = sphi 0, %s117
    %s139 = sphi 0, %s141
    %s142 = sphi 0, %s139
    %s143 = sphi 0, %s142
    %s159 = sphi 0, %s143
    %s165 = sphi 0, %s167
    %s168 = sphi 0, %s165
    %s169 = sphi 0, %s168
    %s185 = sphi 0, %s169
    %s191 = sphi 0, %s193
    %s194 = sphi 0, %s191
    %s195 = sphi 0, %s194
    %s211 = sphi 0, %s195
    %s215 = sphi 0, %s215
    %s217 = sphi 0, %s215
    %s218 = sphi 0, %s217
    %s232 = sphi 0, %s218
    %s236 = sphi 0, %s236
    %s238 = sphi 0, %s236
    %s239 = sphi 0, %s238
    %s253 = sphi 0, %s239
    %s257 = sphi 0, %s257
    %s259 = sphi 0, %s257
    %s260 = sphi 0, %s259
    %s274 = sphi 0, %s260
    %s278 = sphi 0, %s278
    %s280 = sphi 0, %s278
    %s281 = sphi 0, %s280
    %s295 = sphi 0, %s281
    %s299 = sphi 0, %s299
    %s301 = sphi 0, %s299
    %s302 = sphi 0, %s301
    %s316 = sphi 0, %s302
    %s320 = sphi 0, %s320
    %s322 = sphi 0, %s320
    %s323 = sphi 0, %s322
    %s337 = sphi 0, %s323
    %s343 = sphi 0, %s345
    %s346 = sphi 0, %s343
    %s347 = sphi 0, %s346
    %s363 = sphi 0, %s347
    %s369 = sphi 0, %s371
    %s372 = sphi 0, %s369
    %s373 = sphi 0, %s372
    %s389 = sphi 0, %s373
    %s395 = sphi 0, %s397
    %s398 = sphi 0, %s395
    %s399 = sphi 0, %s398
    %s415 = sphi 0, %s399
    %s421 = sphi 0, %s423
    %s424 = sphi 0, %s421
    %s425 = sphi 0, %s424
    %s441 = sphi 0, %s425
    %s447 = sphi 0, %s449
    %s450 = sphi 0, %s447
    %s451 = sphi 0, %s450
    %s467 = sphi 0, %s451
    %s473 = sphi 0, %s475
    %s476 = sphi 0, %s473
    %s477 = sphi 0, %s476
    %s493 = sphi 0, %s477
  $region4: #{tfc_forward.1} parent=0 // loop_header_branch
    %28 = sbr.rel (%p26) target = $region8
  $region5: #{tfc_forward.1} parent=0 // loop_body
    %s30 = ssub.s32 %s25, 1
    %s31 = ssub.s32 %s25, 2
    %s32 = sadd.s32 %s25, 1
    %s33 = ssub.s32 %s25, %s32
    %p34 = scmp.eq.s32.totalorder %s33, 0
    %s36 = sadd.s32 %s35, 1
    %s37 = scalar_select %p34, %s35, %s36
    %p40 = pneg %p34
    %p41 = scmp.eq.s32.totalorder %s25, 1
    %p42 = por %p40, %p41
    %p43 = scmp.ne.s32.totalorder %s35, %s38
    %p44 = scmp.eq.s32.totalorder %s25, 0
    %p45 = por %p43, %p44
    %p46 = scmp.ne.s32.totalorder %s35, %s38
    %p47 = scmp.eq.s32.totalorder %s30, 1
    %p48 = por %p46, %p47
    %p49 = scmp.ne.s32.totalorder %s38, %s39
    %p50 = scmp.eq.s32.totalorder %s30, 0
    %p51 = por %p49, %p50
    %p52 = scmp.ne.s32.totalorder %s38, %s39
    %p53 = scmp.eq.s32.totalorder %s31, 1
    %p54 = por %p52, %p53
    %p56 = scmp.ne.s32.totalorder %s39, %s55
    %p57 = scmp.eq.s32.totalorder %s31, 0
    %p58 = por %p56, %p57
    %s59 = ssub.s32 %s25, %s32
    %p60 = scmp.eq.s32.totalorder %s59, 0
    %s62 = sadd.s32 %s61, 1
    %s63 = scalar_select %p60, %s61, %s62
    %p66 = pneg %p60
    %p67 = scmp.eq.s32.totalorder %s25, 1
    %p68 = por %p66, %p67
    %p69 = scmp.ne.s32.totalorder %s61, %s64
    %p70 = scmp.eq.s32.totalorder %s25, 0
    %p71 = por %p69, %p70
    %p72 = scmp.ne.s32.totalorder %s61, %s64
    %p73 = scmp.eq.s32.totalorder %s30, 1
    %p74 = por %p72, %p73
    %p75 = scmp.ne.s32.totalorder %s64, %s65
    %p76 = scmp.eq.s32.totalorder %s30, 0
    %p77 = por %p75, %p76
    %p78 = scmp.ne.s32.totalorder %s64, %s65
    %p79 = scmp.eq.s32.totalorder %s31, 1
    %p80 = por %p78, %p79
    %p82 = scmp.ne.s32.totalorder %s65, %s81
    %p83 = scmp.eq.s32.totalorder %s31, 0
    %p84 = por %p82, %p83
    %s85 = ssub.s32 %s25, %s32
    %p86 = scmp.eq.s32.totalorder %s85, 0
    %s88 = sadd.s32 %s87, 1
    %s89 = scalar_select %p86, %s87, %s88
    %p92 = pneg %p86
    %p93 = scmp.eq.s32.totalorder %s25, 1
    %p94 = por %p92, %p93
    %p95 = scmp.ne.s32.totalorder %s87, %s90
    %p96 = scmp.eq.s32.totalorder %s25, 0
    %p97 = por %p95, %p96
    %p98 = scmp.ne.s32.totalorder %s87, %s90
    %p99 = scmp.eq.s32.totalorder %s30, 1
    %p100 = por %p98, %p99
    %p101 = scmp.ne.s32.totalorder %s90, %s91
    %p102 = scmp.eq.s32.totalorder %s30, 0
    %p103 = por %p101, %p102
    %p104 = scmp.ne.s32.totalorder %s90, %s91
    %p105 = scmp.eq.s32.totalorder %s31, 1
    %p106 = por %p104, %p105
    %p108 = scmp.ne.s32.totalorder %s91, %s107
    %p109 = scmp.eq.s32.totalorder %s31, 0
    %p110 = por %p108, %p109
    %s111 = ssub.s32 %s25, %s32
    %p112 = scmp.eq.s32.totalorder %s111, 0
    %s114 = sadd.s32 %s113, 1
    %s115 = scalar_select %p112, %s113, %s114
    %p118 = pneg %p112
    %p119 = scmp.eq.s32.totalorder %s25, 1
    %p120 = por %p118, %p119
    %p121 = scmp.ne.s32.totalorder %s113, %s116
    %p122 = scmp.eq.s32.totalorder %s25, 0
    %p123 = por %p121, %p122
    %p124 = scmp.ne.s32.totalorder %s113, %s116
    %p125 = scmp.eq.s32.totalorder %s30, 1
    %p126 = por %p124, %p125
    %p127 = scmp.ne.s32.totalorder %s116, %s117
    %p128 = scmp.eq.s32.totalorder %s30, 0
    %p129 = por %p127, %p128
    %p130 = scmp.ne.s32.totalorder %s116, %s117
    %p131 = scmp.eq.s32.totalorder %s31, 1
    %p132 = por %p130, %p131
    %p134 = scmp.ne.s32.totalorder %s117, %s133
    %p135 = scmp.eq.s32.totalorder %s31, 0
    %p136 = por %p134, %p135
    %s137 = ssub.s32 %s25, %s32
    %p138 = scmp.eq.s32.totalorder %s137, 0
    %s140 = sadd.s32 %s139, 1
    %s141 = scalar_select %p138, %s139, %s140
    %p144 = pneg %p138
    %p145 = scmp.eq.s32.totalorder %s25, 1
    %p146 = por %p144, %p145
    %p147 = scmp.ne.s32.totalorder %s139, %s142
    %p148 = scmp.eq.s32.totalorder %s25, 0
    %p149 = por %p147, %p148
    %p150 = scmp.ne.s32.totalorder %s139, %s142
    %p151 = scmp.eq.s32.totalorder %s30, 1
    %p152 = por %p150, %p151
    %p153 = scmp.ne.s32.totalorder %s142, %s143
    %p154 = scmp.eq.s32.totalorder %s30, 0
    %p155 = por %p153, %p154
    %p156 = scmp.ne.s32.totalorder %s142, %s143
    %p157 = scmp.eq.s32.totalorder %s31, 1
    %p158 = por %p156, %p157
    %p160 = scmp.ne.s32.totalorder %s143, %s159
    %p161 = scmp.eq.s32.totalorder %s31, 0
    %p162 = por %p160, %p161
    %s163 = ssub.s32 %s25, %s32
    %p164 = scmp.eq.s32.totalorder %s163, 0
    %s166 = sadd.s32 %s165, 1
    %s167 = scalar_select %p164, %s165, %s166
    %p170 = pneg %p164
    %p171 = scmp.eq.s32.totalorder %s25, 1
    %p172 = por %p170, %p171
    %p173 = scmp.ne.s32.totalorder %s165, %s168
    %p174 = scmp.eq.s32.totalorder %s25, 0
    %p175 = por %p173, %p174
    %p176 = scmp.ne.s32.totalorder %s165, %s168
    %p177 = scmp.eq.s32.totalorder %s30, 1
    %p178 = por %p176, %p177
    %p179 = scmp.ne.s32.totalorder %s168, %s169
    %p180 = scmp.eq.s32.totalorder %s30, 0
    %p181 = por %p179, %p180
    %p182 = scmp.ne.s32.totalorder %s168, %s169
    %p183 = scmp.eq.s32.totalorder %s31, 1
    %p184 = por %p182, %p183
    %p186 = scmp.ne.s32.totalorder %s169, %s185
    %p187 = scmp.eq.s32.totalorder %s31, 0
    %p188 = por %p186, %p187
    %s189 = ssub.s32 %s25, %s32
    %p190 = scmp.eq.s32.totalorder %s189, 0
    %s192 = sadd.s32 %s191, 1
    %s193 = scalar_select %p190, %s191, %s192
    %p196 = pneg %p190
    %p197 = scmp.eq.s32.totalorder %s25, 1
    %p198 = por %p196, %p197
    %p199 = scmp.ne.s32.totalorder %s191, %s194
    %p200 = scmp.eq.s32.totalorder %s25, 0
    %p201 = por %p199, %p200
    %p202 = scmp.ne.s32.totalorder %s191, %s194
    %p203 = scmp.eq.s32.totalorder %s30, 1
    %p204 = por %p202, %p203
    %p205 = scmp.ne.s32.totalorder %s194, %s195
    %p206 = scmp.eq.s32.totalorder %s30, 0
    %p207 = por %p205, %p206
    %p208 = scmp.ne.s32.totalorder %s194, %s195
    %p209 = scmp.eq.s32.totalorder %s31, 1
    %p210 = por %p208, %p209
    %p212 = scmp.ne.s32.totalorder %s195, %s211
    %p213 = scmp.eq.s32.totalorder %s31, 0
    %p214 = por %p212, %p213
    %s216 = sadd.s32 %s215, 1
    %p219 = scmp.eq.s32.totalorder %s25, 1
    %p220 = scmp.ne.s32.totalorder %s215, %s217
    %p221 = scmp.eq.s32.totalorder %s25, 0
    %p222 = por %p220, %p221
    %p223 = scmp.ne.s32.totalorder %s215, %s217
    %p224 = scmp.eq.s32.totalorder %s30, 1
    %p225 = por %p223, %p224
    %p226 = scmp.ne.s32.totalorder %s217, %s218
    %p227 = scmp.eq.s32.totalorder %s30, 0
    %p228 = por %p226, %p227
    %p229 = scmp.ne.s32.totalorder %s217, %s218
    %p230 = scmp.eq.s32.totalorder %s31, 1
    %p231 = por %p229, %p230
    %p233 = scmp.ne.s32.totalorder %s218, %s232
    %p234 = scmp.eq.s32.totalorder %s31, 0
    %p235 = por %p233, %p234
    %s237 = sadd.s32 %s236, 1
    %p240 = scmp.eq.s32.totalorder %s25, 1
    %p241 = scmp.ne.s32.totalorder %s236, %s238
    %p242 = scmp.eq.s32.totalorder %s25, 0
    %p243 = por %p241, %p242
    %p244 = scmp.ne.s32.totalorder %s236, %s238
    %p245 = scmp.eq.s32.totalorder %s30, 1
    %p246 = por %p244, %p245
    %p247 = scmp.ne.s32.totalorder %s238, %s239
    %p248 = scmp.eq.s32.totalorder %s30, 0
    %p249 = por %p247, %p248
    %p250 = scmp.ne.s32.totalorder %s238, %s239
    %p251 = scmp.eq.s32.totalorder %s31, 1
    %p252 = por %p250, %p251
    %p254 = scmp.ne.s32.totalorder %s239, %s253
    %p255 = scmp.eq.s32.totalorder %s31, 0
    %p256 = por %p254, %p255
    %s258 = sadd.s32 %s257, 1
    %p261 = scmp.eq.s32.totalorder %s25, 1
    %p262 = scmp.ne.s32.totalorder %s257, %s259
    %p263 = scmp.eq.s32.totalorder %s25, 0
    %p264 = por %p262, %p263
    %p265 = scmp.ne.s32.totalorder %s257, %s259
    %p266 = scmp.eq.s32.totalorder %s30, 1
    %p267 = por %p265, %p266
    %p268 = scmp.ne.s32.totalorder %s259, %s260
    %p269 = scmp.eq.s32.totalorder %s30, 0
    %p270 = por %p268, %p269
    %p271 = scmp.ne.s32.totalorder %s259, %s260
    %p272 = scmp.eq.s32.totalorder %s31, 1
    %p273 = por %p271, %p272
    %p275 = scmp.ne.s32.totalorder %s260, %s274
    %p276 = scmp.eq.s32.totalorder %s31, 0
    %p277 = por %p275, %p276
    %s279 = sadd.s32 %s278, 1
    %p282 = scmp.eq.s32.totalorder %s25, 1
    %p283 = scmp.ne.s32.totalorder %s278, %s280
    %p284 = scmp.eq.s32.totalorder %s25, 0
    %p285 = por %p283, %p284
    %p286 = scmp.ne.s32.totalorder %s278, %s280
    %p287 = scmp.eq.s32.totalorder %s30, 1
    %p288 = por %p286, %p287
    %p289 = scmp.ne.s32.totalorder %s280, %s281
    %p290 = scmp.eq.s32.totalorder %s30, 0
    %p291 = por %p289, %p290
    %p292 = scmp.ne.s32.totalorder %s280, %s281
    %p293 = scmp.eq.s32.totalorder %s31, 1
    %p294 = por %p292, %p293
    %p296 = scmp.ne.s32.totalorder %s281, %s295
    %p297 = scmp.eq.s32.totalorder %s31, 0
    %p298 = por %p296, %p297
    %s300 = sadd.s32 %s299, 1
    %p303 = scmp.eq.s32.totalorder %s25, 1
    %p304 = scmp.ne.s32.totalorder %s299, %s301
    %p305 = scmp.eq.s32.totalorder %s25, 0
    %p306 = por %p304, %p305
    %p307 = scmp.ne.s32.totalorder %s299, %s301
    %p308 = scmp.eq.s32.totalorder %s30, 1
    %p309 = por %p307, %p308
    %p310 = scmp.ne.s32.totalorder %s301, %s302
    %p311 = scmp.eq.s32.totalorder %s30, 0
    %p312 = por %p310, %p311
    %p313 = scmp.ne.s32.totalorder %s301, %s302
    %p314 = scmp.eq.s32.totalorder %s31, 1
    %p315 = por %p313, %p314
    %p317 = scmp.ne.s32.totalorder %s302, %s316
    %p318 = scmp.eq.s32.totalorder %s31, 0
    %p319 = por %p317, %p318
    %s321 = sadd.s32 %s320, 1
    %p324 = scmp.eq.s32.totalorder %s25, 1
    %p325 = scmp.ne.s32.totalorder %s320, %s322
    %p326 = scmp.eq.s32.totalorder %s25, 0
    %p327 = por %p325, %p326
    %p328 = scmp.ne.s32.totalorder %s320, %s322
    %p329 = scmp.eq.s32.totalorder %s30, 1
    %p330 = por %p328, %p329
    %p331 = scmp.ne.s32.totalorder %s322, %s323
    %p332 = scmp.eq.s32.totalorder %s30, 0
    %p333 = por %p331, %p332
    %p334 = scmp.ne.s32.totalorder %s322, %s323
    %p335 = scmp.eq.s32.totalorder %s31, 1
    %p336 = por %p334, %p335
    %p338 = scmp.ne.s32.totalorder %s323, %s337
    %p339 = scmp.eq.s32.totalorder %s31, 0
    %p340 = por %p338, %p339
    %s341 = ssub.s32 %s25, %s32
    %p342 = scmp.eq.s32.totalorder %s341, 0
    %s344 = sadd.s32 %s343, 1
    %s345 = scalar_select %p342, %s343, %s344
    %p348 = pneg %p342
    %p349 = scmp.eq.s32.totalorder %s25, 1
    %p350 = por %p348, %p349
    %p351 = scmp.ne.s32.totalorder %s343, %s346
    %p352 = scmp.eq.s32.totalorder %s25, 0
    %p353 = por %p351, %p352
    %p354 = scmp.ne.s32.totalorder %s343, %s346
    %p355 = scmp.eq.s32.totalorder %s30, 1
    %p356 = por %p354, %p355
    %p357 = scmp.ne.s32.totalorder %s346, %s347
    %p358 = scmp.eq.s32.totalorder %s30, 0
    %p359 = por %p357, %p358
    %p360 = scmp.ne.s32.totalorder %s346, %s347
    %p361 = scmp.eq.s32.totalorder %s31, 1
    %p362 = por %p360, %p361
    %p364 = scmp.ne.s32.totalorder %s347, %s363
    %p365 = scmp.eq.s32.totalorder %s31, 0
    %p366 = por %p364, %p365
    %s367 = ssub.s32 %s25, %s32
    %p368 = scmp.eq.s32.totalorder %s367, 0
    %s370 = sadd.s32 %s369, 1
    %s371 = scalar_select %p368, %s369, %s370
    %p374 = pneg %p368
    %p375 = scmp.eq.s32.totalorder %s25, 1
    %p376 = por %p374, %p375
    %p377 = scmp.ne.s32.totalorder %s369, %s372
    %p378 = scmp.eq.s32.totalorder %s25, 0
    %p379 = por %p377, %p378
    %p380 = scmp.ne.s32.totalorder %s369, %s372
    %p381 = scmp.eq.s32.totalorder %s30, 1
    %p382 = por %p380, %p381
    %p383 = scmp.ne.s32.totalorder %s372, %s373
    %p384 = scmp.eq.s32.totalorder %s30, 0
    %p385 = por %p383, %p384
    %p386 = scmp.ne.s32.totalorder %s372, %s373
    %p387 = scmp.eq.s32.totalorder %s31, 1
    %p388 = por %p386, %p387
    %p390 = scmp.ne.s32.totalorder %s373, %s389
    %p391 = scmp.eq.s32.totalorder %s31, 0
    %p392 = por %p390, %p391
    %s393 = ssub.s32 %s25, %s32
    %p394 = scmp.eq.s32.totalorder %s393, 0
    %s396 = sadd.s32 %s395, 1
    %s397 = scalar_select %p394, %s395, %s396
    %p400 = pneg %p394
    %p401 = scmp.eq.s32.totalorder %s25, 1
    %p402 = por %p400, %p401
    %p403 = scmp.ne.s32.totalorder %s395, %s398
    %p404 = scmp.eq.s32.totalorder %s25, 0
    %p405 = por %p403, %p404
    %p406 = scmp.ne.s32.totalorder %s395, %s398
    %p407 = scmp.eq.s32.totalorder %s30, 1
    %p408 = por %p406, %p407
    %p409 = scmp.ne.s32.totalorder %s398, %s399
    %p410 = scmp.eq.s32.totalorder %s30, 0
    %p411 = por %p409, %p410
    %p412 = scmp.ne.s32.totalorder %s398, %s399
    %p413 = scmp.eq.s32.totalorder %s31, 1
    %p414 = por %p412, %p413
    %p416 = scmp.ne.s32.totalorder %s399, %s415
    %p417 = scmp.eq.s32.totalorder %s31, 0
    %p418 = por %p416, %p417
    %s419 = ssub.s32 %s25, %s32
    %p420 = scmp.eq.s32.totalorder %s419, 0
    %s422 = sadd.s32 %s421, 1
    %s423 = scalar_select %p420, %s421, %s422
    %p426 = pneg %p420
    %p427 = scmp.eq.s32.totalorder %s25, 1
    %p428 = por %p426, %p427
    %p429 = scmp.ne.s32.totalorder %s421, %s424
    %p430 = scmp.eq.s32.totalorder %s25, 0
    %p431 = por %p429, %p430
    %p432 = scmp.ne.s32.totalorder %s421, %s424
    %p433 = scmp.eq.s32.totalorder %s30, 1
    %p434 = por %p432, %p433
    %p435 = scmp.ne.s32.totalorder %s424, %s425
    %p436 = scmp.eq.s32.totalorder %s30, 0
    %p437 = por %p435, %p436
    %p438 = scmp.ne.s32.totalorder %s424, %s425
    %p439 = scmp.eq.s32.totalorder %s31, 1
    %p440 = por %p438, %p439
    %p442 = scmp.ne.s32.totalorder %s425, %s441
    %p443 = scmp.eq.s32.totalorder %s31, 0
    %p444 = por %p442, %p443
    %s445 = ssub.s32 %s25, %s32
    %p446 = scmp.eq.s32.totalorder %s445, 0
    %s448 = sadd.s32 %s447, 1
    %s449 = scalar_select %p446, %s447, %s448
    %p452 = pneg %p446
    %p453 = scmp.eq.s32.totalorder %s25, 1
    %p454 = por %p452, %p453
    %p455 = scmp.ne.s32.totalorder %s447, %s450
    %p456 = scmp.eq.s32.totalorder %s25, 0
    %p457 = por %p455, %p456
    %p458 = scmp.ne.s32.totalorder %s447, %s450
    %p459 = scmp.eq.s32.totalorder %s30, 1
    %p460 = por %p458, %p459
    %p461 = scmp.ne.s32.totalorder %s450, %s451
    %p462 = scmp.eq.s32.totalorder %s30, 0
    %p463 = por %p461, %p462
    %p464 = scmp.ne.s32.totalorder %s450, %s451
    %p465 = scmp.eq.s32.totalorder %s31, 1
    %p466 = por %p464, %p465
    %p468 = scmp.ne.s32.totalorder %s451, %s467
    %p469 = scmp.eq.s32.totalorder %s31, 0
    %p470 = por %p468, %p469
    %s471 = ssub.s32 %s25, %s32
    %p472 = scmp.eq.s32.totalorder %s471, 0
    %s474 = sadd.s32 %s473, 1
    %s475 = scalar_select %p472, %s473, %s474
    %p478 = pneg %p472
    %p479 = scmp.eq.s32.totalorder %s25, 1
    %p480 = por %p478, %p479
    %p481 = scmp.ne.s32.totalorder %s473, %s476
    %p482 = scmp.eq.s32.totalorder %s25, 0
    %p483 = por %p481, %p482
    %p484 = scmp.ne.s32.totalorder %s473, %s476
    %p485 = scmp.eq.s32.totalorder %s30, 1
    %p486 = por %p484, %p485
    %p487 = scmp.ne.s32.totalorder %s476, %s477
    %p488 = scmp.eq.s32.totalorder %s30, 0
    %p489 = por %p487, %p488
    %p490 = scmp.ne.s32.totalorder %s476, %s477
    %p491 = scmp.eq.s32.totalorder %s31, 1
    %p492 = por %p490, %p491
    %p494 = scmp.ne.s32.totalorder %s477, %s493
    %p495 = scmp.eq.s32.totalorder %s31, 0
    %p496 = por %p494, %p495
    %p497 = scmp.le.s32.totalorder 1, %s25
    %p498 = scmp.lt.s32.totalorder %s25, 3
    %p499 = pnand %p497, %p498
    %p500 = pneg %p499
    // Predicated region
    $region9: #{tfc_forward.1} parent=5 // pred_check
      _
    $region10: #{tfc_forward.1} parent=5 // pred_check_branch
      %502 = sbr.rel (%p499) target = $region12
    $region11: #{tfc_forward.1} parent=5 // pred_region
      %s503 = ssub.s32 %s25, 1
      // Predicated region
      $region13: #{tfc_forward.1} parent=11 // pred_check
        %p504 = pneg %p228
      $region14: #{tfc_forward.1} parent=11 // pred_check_branch
        %506 = sbr.rel (%p504) target = $region16
      $region15: #{tfc_forward.1} parent=11 // pred_region
        _
      $region16: #{tfc_forward.1} parent=11 // pred_fallthru
        _
      // Predicated region
      $region17: #{tfc_forward.1} parent=11 // pred_check
        %p507 = pneg %p249
      $region18: #{tfc_forward.1} parent=11 // pred_check_branch
        %509 = sbr.rel (%p507) target = $region20
      $region19: #{tfc_forward.1} parent=11 // pred_region
        _
      $region20: #{tfc_forward.1} parent=11 // pred_fallthru
        _
      // Predicated region
      $region21: #{tfc_forward.1} parent=11 // pred_check
        %p510 = pneg %p270
      $region22: #{tfc_forward.1} parent=11 // pred_check_branch
        %512 = sbr.rel (%p510) target = $region24
      $region23: #{tfc_forward.1} parent=11 // pred_region
        _
      $region24: #{tfc_forward.1} parent=11 // pred_fallthru
        _
      // Predicated region
      $region25: #{tfc_forward.1} parent=11 // pred_check
        %p513 = pneg %p291
      $region26: #{tfc_forward.1} parent=11 // pred_check_branch
        %515 = sbr.rel (%p513) target = $region28
      $region27: #{tfc_forward.1} parent=11 // pred_region
        _
      $region28: #{tfc_forward.1} parent=11 // pred_fallthru
        _
      // Predicated region
      $region29: #{tfc_forward.1} parent=11 // pred_check
        %p516 = pneg %p312
      $region30: #{tfc_forward.1} parent=11 // pred_check_branch
        %518 = sbr.rel (%p516) target = $region32
      $region31: #{tfc_forward.1} parent=11 // pred_region
        _
      $region32: #{tfc_forward.1} parent=11 // pred_fallthru
        _
      // Predicated region
      $region33: #{tfc_forward.1} parent=11 // pred_check
        %p519 = pneg %p333
      $region34: #{tfc_forward.1} parent=11 // pred_check_branch
        %521 = sbr.rel (%p519) target = $region36
      $region35: #{tfc_forward.1} parent=11 // pred_region
        _
      $region36: #{tfc_forward.1} parent=11 // pred_fallthru
        _
    $region12: #{tfc_forward.1} parent=5 // pred_fallthru
      _
    %p522 = scmp.lt.s32.totalorder %s25, 2
    // Predicated region
    $region37: #{tfc_forward.1} parent=5 // pred_check
      %p523 = pneg %p522
    $region38: #{tfc_forward.1} parent=5 // pred_check_branch
      %525 = sbr.rel (%p523) target = $region40
    $region39: #{tfc_forward.1} parent=5 // pred_region
      // Predicated region
      $region41: #{tfc_forward.1} parent=39 // pred_check
        %p526 = pneg %p45
      $region42: #{tfc_forward.1} parent=39 // pred_check_branch
        %528 = sbr.rel (%p526) target = $region44
      $region43: #{tfc_forward.1} parent=39 // pred_region
        %p529 = scmp.lt.s32.totalorder %s25, 1
        %s530 = scalar_select %p529, %s25, 1
        %s531 = smul.addr %s530, 10
        %s532 = smul.addr %s531, 8
        %s533 = scalar_lea.vmem %s0, %s532
      $region44: #{tfc_forward.1} parent=39 // pred_fallthru
        _
      // Predicated region
      $region45: #{tfc_forward.1} parent=39 // pred_check
        %p534 = pneg %p71
      $region46: #{tfc_forward.1} parent=39 // pred_check_branch
        %536 = sbr.rel (%p534) target = $region48
      $region47: #{tfc_forward.1} parent=39 // pred_region
        %p537 = scmp.lt.s32.totalorder %s25, 1
        %s538 = scalar_select %p537, %s25, 1
        %s539 = smul.addr %s538, 8
        %s540 = smul.addr %s539, 2
        %s541 = scalar_lea.vmem %s1, %s540
      $region48: #{tfc_forward.1} parent=39 // pred_fallthru
        _
      // Predicated region
      $region49: #{tfc_forward.1} parent=39 // pred_check
        %p542 = pneg %p97
      $region50: #{tfc_forward.1} parent=39 // pred_check_branch
        %544 = sbr.rel (%p542) target = $region52
      $region51: #{tfc_forward.1} parent=39 // pred_region
        %p545 = scmp.lt.s32.totalorder %s25, 1
        %s546 = scalar_select %p545, %s25, 1
        %s547 = scalar_lea.vmem %s2, %s546
      $region52: #{tfc_forward.1} parent=39 // pred_fallthru
        _
      // Predicated region
      $region53: #{tfc_forward.1} parent=39 // pred_check
        %p548 = pneg %p123
      $region54: #{tfc_forward.1} parent=39 // pred_check_branch
        %550 = sbr.rel (%p548) target = $region56
      $region55: #{tfc_forward.1} parent=39 // pred_region
        %p551 = scmp.lt.s32.totalorder %s25, 1
        %s552 = scalar_select %p551, %s25, 1
        %s553 = smul.addr %s552, 32
        %s554 = smul.addr %s553, 4
        %s555 = scalar_lea.vmem %s3, %s554
      $region56: #{tfc_forward.1} parent=39 // pred_fallthru
        _
      // Predicated region
      $region57: #{tfc_forward.1} parent=39 // pred_check
        %p556 = pneg %p149
      $region58: #{tfc_forward.1} parent=39 // pred_check_branch
        %558 = sbr.rel (%p556) target = $region60
      $region59: #{tfc_forward.1} parent=39 // pred_region
        %p559 = scmp.lt.s32.totalorder %s25, 1
        %s560 = scalar_select %p559, %s25, 1
        %s561 = scalar_lea.vmem %s4, %s560
      $region60: #{tfc_forward.1} parent=39 // pred_fallthru
        _
      // Predicated region
      $region61: #{tfc_forward.1} parent=39 // pred_check
        %p562 = pneg %p175
      $region62: #{tfc_forward.1} parent=39 // pred_check_branch
        %564 = sbr.rel (%p562) target = $region64
      $region63: #{tfc_forward.1} parent=39 // pred_region
        %p565 = scmp.lt.s32.totalorder %s25, 1
        %s566 = scalar_select %p565, %s25, 1
        %s567 = smul.addr %s566, 64
        %s568 = smul.addr %s567, 4
        %s569 = scalar_lea.vmem %s5, %s568
      $region64: #{tfc_forward.1} parent=39 // pred_fallthru
        _
      // Predicated region
      $region65: #{tfc_forward.1} parent=39 // pred_check
        %p570 = pneg %p201
      $region66: #{tfc_forward.1} parent=39 // pred_check_branch
        %572 = sbr.rel (%p570) target = $region68
      $region67: #{tfc_forward.1} parent=39 // pred_region
        %p573 = scmp.lt.s32.totalorder %s25, 1
        %s574 = scalar_select %p573, %s25, 1
        %s575 = scalar_lea.vmem %s6, %s574
      $region68: #{tfc_forward.1} parent=39 // pred_fallthru
        _
      // Predicated region
      $region69: #{tfc_forward.1} parent=39 // pred_check
        %p576 = pneg %p353
      $region70: #{tfc_forward.1} parent=39 // pred_check_branch
        %578 = sbr.rel (%p576) target = $region72
      $region71: #{tfc_forward.1} parent=39 // pred_region
        %p579 = scmp.lt.s32.totalorder %s25, 1
        %s580 = scalar_select %p579, %s25, 1
        %s581 = smul.addr %s580, 96
        %s582 = smul.addr %s581, 4
        %s583 = scalar_lea.vmem %s13, %s582
      $region72: #{tfc_forward.1} parent=39 // pred_fallthru
        _
      // Predicated region
      $region73: #{tfc_forward.1} parent=39 // pred_check
        %p584 = pneg %p379
      $region74: #{tfc_forward.1} parent=39 // pred_check_branch
        %586 = sbr.rel (%p584) target = $region76
      $region75: #{tfc_forward.1} parent=39 // pred_region
        %p587 = scmp.lt.s32.totalorder %s25, 1
        %s588 = scalar_select %p587, %s25, 1
        %s589 = smul.addr %s588, 2
        %s590 = scalar_lea.vmem %s14, %s589
      $region76: #{tfc_forward.1} parent=39 // pred_fallthru
        _
      // Predicated region
      $region77: #{tfc_forward.1} parent=39 // pred_check
        %p591 = pneg %p405
      $region78: #{tfc_forward.1} parent=39 // pred_check_branch
        %593 = sbr.rel (%p591) target = $region80
      $region79: #{tfc_forward.1} parent=39 // pred_region
        %p594 = scmp.lt.s32.totalorder %s25, 1
        %s595 = scalar_select %p594, %s25, 1
        %s596 = smul.addr %s595, 32
        %s597 = smul.addr %s596, 4
        %s598 = scalar_lea.vmem %s15, %s597
      $region80: #{tfc_forward.1} parent=39 // pred_fallthru
        _
      // Predicated region
      $region81: #{tfc_forward.1} parent=39 // pred_check
        %p599 = pneg %p431
      $region82: #{tfc_forward.1} parent=39 // pred_check_branch
        %601 = sbr.rel (%p599) target = $region84
      $region83: #{tfc_forward.1} parent=39 // pred_region
        %p602 = scmp.lt.s32.totalorder %s25, 1
        %s603 = scalar_select %p602, %s25, 1
        %s604 = scalar_lea.vmem %s16, %s603
      $region84: #{tfc_forward.1} parent=39 // pred_fallthru
        _
    $region40: #{tfc_forward.1} parent=5 // pred_fallthru
      _
    %p605 = scmp.le.s32.totalorder 1, %s25
    %p606 = scmp.lt.s32.totalorder %s25, 3
    %p607 = pnand %p605, %p606
    %p608 = pneg %p607
    // Predicated region
    $region85: #{tfc_forward.1} parent=5 // pred_check
      _
    $region86: #{tfc_forward.1} parent=5 // pred_check_branch
      %610 = sbr.rel (%p607) target = $region88
    $region87: #{tfc_forward.1} parent=5 // pred_region
      %s611 = ssub.s32 %s25, 1
      %p612 = scmp.lt.s32.totalorder %s30, 1
      %s613 = scalar_select %p612, %s30, 1
      %s614 = smul.addr %s613, 10
      %s615 = smul.addr %s614, 8
      %s616 = scalar_lea.vmem %s0, %s615
      %p617 = pneg %p51
      %p618 = pneg %p48
      %p619 = scmp.lt.s32.totalorder %s30, 1
      %s620 = scalar_select %p619, %s30, 1
      %s621 = smul.addr %s620, 8
      %s622 = smul.addr %s621, 2
      %s623 = scalar_lea.vmem %s1, %s622
      %p624 = pneg %p77
      %p625 = pneg %p74
      %p626 = scmp.lt.s32.totalorder %s30, 1
      %s627 = scalar_select %p626, %s30, 1
      %s628 = scalar_lea.vmem %s2, %s627
      %p629 = pneg %p103
      %p630 = pneg %p100
      %p631 = scmp.lt.s32.totalorder %s30, 1
      %s632 = scalar_select %p631, %s30, 1
      %s633 = smul.addr %s632, 32
      %s634 = smul.addr %s633, 4
      %s635 = scalar_lea.vmem %s3, %s634
      %p636 = pneg %p129
      %p637 = pneg %p126
      %p638 = scmp.lt.s32.totalorder %s30, 1
      %s639 = scalar_select %p638, %s30, 1
      %s640 = scalar_lea.vmem %s4, %s639
      %p641 = pneg %p155
      %p642 = pneg %p152
      %p643 = scmp.lt.s32.totalorder %s30, 1
      %s644 = scalar_select %p643, %s30, 1
      %s645 = smul.addr %s644, 64
      %s646 = smul.addr %s645, 4
      %s647 = scalar_lea.vmem %s5, %s646
      %p648 = pneg %p181
      %p649 = pneg %p178
      %p650 = scmp.lt.s32.totalorder %s30, 1
      %s651 = scalar_select %p650, %s30, 1
      %s652 = scalar_lea.vmem %s6, %s651
      %p653 = pneg %p207
      %p654 = pneg %p204
      %p655 = pneg %p228
      %p656 = pneg %p225
      %p657 = pneg %p249
      %p658 = pneg %p246
      %p659 = pneg %p270
      %p660 = pneg %p267
      %p661 = pneg %p291
      %p662 = pneg %p288
      %p663 = pneg %p312
      %p664 = pneg %p309
      %p665 = pneg %p333
      %p666 = pneg %p330
      %p667 = scmp.lt.s32.totalorder %s30, 1
      %s668 = scalar_select %p667, %s30, 1
      %s669 = smul.addr %s668, 96
      %s670 = smul.addr %s669, 4
      %s671 = scalar_lea.vmem %s13, %s670
      %p672 = pneg %p359
      %p673 = pneg %p356
      %p674 = scmp.lt.s32.totalorder %s30, 1
      %s675 = scalar_select %p674, %s30, 1
      %s676 = smul.addr %s675, 2
      %s677 = scalar_lea.vmem %s14, %s676
      %p678 = pneg %p385
      %p679 = pneg %p382
      %p680 = scmp.lt.s32.totalorder %s30, 1
      %s681 = scalar_select %p680, %s30, 1
      %s682 = smul.addr %s681, 32
      %s683 = smul.addr %s682, 4
      %s684 = scalar_lea.vmem %s15, %s683
      %p685 = pneg %p411
      %p686 = pneg %p408
      %p687 = scmp.lt.s32.totalorder %s30, 1
      %s688 = scalar_select %p687, %s30, 1
      %s689 = scalar_lea.vmem %s16, %s688
      %p690 = pneg %p437
      %p691 = pneg %p434
      %p692 = pneg %p463
      %p693 = pneg %p460
      %p694 = scmp.lt.s32.totalorder %s30, 1
      %s695 = scalar_select %p694, %s30, 1
      %s696 = smul.addr %s695, 2
      %s697 = smul.addr %s696, 8
      %s698 = scalar_lea.vmem %s17, %s697
      %p699 = pneg %p489
      %p700 = pneg %p486
      %p701 = scmp.lt.s32.totalorder %s30, 1
      %s702 = scalar_select %p701, %s30, 1
      %s703 = smul.addr %s702, 2
      %s704 = scalar_lea.vmem %s18, %s703
      %p705 = scmp.lt.s32.totalorder %s30, 1
      %s706 = scalar_select %p705, %s30, 1
      %s707 = smul.addr %s706, 10
      %s708 = smul.addr %s707, 8
      %s709 = scalar_lea.vmem %s0, %s708
      %p710 = scmp.lt.s32.totalorder %s30, 1
      %s711 = scalar_select %p710, %s30, 1
      %s712 = smul.addr %s711, 8
      %s713 = smul.addr %s712, 2
      %s714 = scalar_lea.vmem %s1, %s713
      %p715 = scmp.lt.s32.totalorder %s30, 1
      %s716 = scalar_select %p715, %s30, 1
      %s717 = scalar_lea.vmem %s2, %s716
      %p718 = scmp.lt.s32.totalorder %s30, 1
      %s719 = scalar_select %p718, %s30, 1
      %s720 = smul.addr %s719, 32
      %s721 = smul.addr %s720, 4
      %s722 = scalar_lea.vmem %s3, %s721
      %p723 = scmp.lt.s32.totalorder %s30, 1
      %s724 = scalar_select %p723, %s30, 1
      %s725 = scalar_lea.vmem %s4, %s724
      %p726 = scmp.lt.s32.totalorder %s30, 1
      %s727 = scalar_select %p726, %s30, 1
      %s728 = smul.addr %s727, 64
      %s729 = smul.addr %s728, 4
      %s730 = scalar_lea.vmem %s5, %s729
      %p731 = scmp.lt.s32.totalorder %s30, 1
      %s732 = scalar_select %p731, %s30, 1
      %s733 = scalar_lea.vmem %s6, %s732
      %p734 = scmp.lt.s32.totalorder %s30, 1
      %s735 = scalar_select %p734, %s30, 1
      %s736 = smul.addr %s735, 96
      %s737 = smul.addr %s736, 4
      %s738 = scalar_lea.vmem %s13, %s737
      %p739 = scmp.lt.s32.totalorder %s30, 1
      %s740 = scalar_select %p739, %s30, 1
      %s741 = smul.addr %s740, 2
      %s742 = scalar_lea.vmem %s14, %s741
      %p743 = scmp.lt.s32.totalorder %s30, 1
      %s744 = scalar_select %p743, %s30, 1
      %s745 = smul.addr %s744, 32
      %s746 = smul.addr %s745, 4
      %s747 = scalar_lea.vmem %s15, %s746
      %p748 = scmp.lt.s32.totalorder %s30, 1
      %s749 = scalar_select %p748, %s30, 1
      %s750 = scalar_lea.vmem %s16, %s749
      %p751 = scmp.lt.s32.totalorder %s30, 1
      %s752 = scalar_select %p751, %s30, 1
      %s753 = smul.addr %s752, 2
      %s754 = smul.addr %s753, 8
      %s755 = scalar_lea.vmem %s17, %s754
      %p756 = scmp.lt.s32.totalorder %s30, 1
      %s757 = scalar_select %p756, %s30, 1
      %s758 = smul.addr %s757, 2
      %s759 = scalar_lea.vmem %s18, %s758
      %v761 = vld [vmem:[%s709] sm:$0xff]
      %v762 = vld [vmem:[%s709 + $0x8] sm:$0xff]
      %v763 = vld [vmem:[%s709 + $0x10] sm:$0xff]
      %v764 = vld [vmem:[%s709 + $0x18] sm:$0xff]
      %v765 = vld [vmem:[%s709 + $0x20] sm:$0xff]
      %v766 = vld [vmem:[%s709 + $0x28] sm:$0xff]
      %v767 = vld [vmem:[%s709 + $0x30] sm:$0xff]
      %v768 = vld [vmem:[%s709 + $0x38] sm:$0xff]
      %v769 = vld [vmem:[%s709 + $0x40] sm:$0xff]
      %v770 = vld [vmem:[%s709 + $0x48] sm:$0xff]
      %v771 = vpack.c.bf16 %v762, %v761
      %v772 = vpack.c.bf16 %v764, %v763
      %v773 = vpack.c.bf16 %v766, %v765
      %v774 = vpack.c.bf16 %v768, %v767
      %v775 = vpack.c.bf16 %v770, %v769
      %v776 = vld [vmem:[%s714] sm:$0x3]
      %s777 = scalar_lea.vmem %s714, 2
      %v778 = vld [vmem:[%s777] sm:$0x3]
      %vm779 = vsmask.f32 7424
      %v781 = vshrl.u32 %v771, 16
      %v783 = vshll.u32 %v771, 16
      %v785 = vrot.slane %v783, 1
      %v786 = vor.u32 %v781, %v785
      %v788 = vshll.u32 %v772, 16
      %v790 = vrot.slane %v788, 1
      %v791 = vsel %vm779, %v786, %v790
      %v792 = vshrl.u32 %v772, 16
      %v794 = vor.u32 %v792, %v790
      %v796 = vshll.u32 %v773, 16
      %v798 = vrot.slane %v796, 1
      %v799 = vsel %vm779, %v794, %v798
      %v800 = vshrl.u32 %v773, 16
      %v802 = vor.u32 %v800, %v798
      %v804 = vshll.u32 %v774, 16
      %v806 = vrot.slane %v804, 1
      %v807 = vsel %vm779, %v802, %v806
      %v808 = vshrl.u32 %v774, 16
      %v810 = vor.u32 %v808, %v806
      %v812 = vshll.u32 %v775, 16
      %v814 = vrot.slane %v812, 1
      %v815 = vsel %vm779, %v810, %v814
      %v816 = vshrl.u32 %v775, 16
      %v818 = vor.u32 %v816, %v814
      %vm819 = vcmask 31744
      %v821 = vsel %vm819, %v791, 0
      %v824 = vsel %vm819, %v799, 0
      %v827 = vsel %vm819, %v807, 0
      %v830 = vsel %vm819, %v815, 0
      %v833 = vsel %vm819, %v818, 0
      %vm835 = vcmask 1041408
      %v837 = vsel %vm835, %v778, 0
      %839 = vmatprep.subr.bf16.mxu0 0
      %840 = vmatpush1.bf16.msra.mxu0 %v837
      %841 = vmatprep.subr.bf16.mxu0 0
      %842 = vmatpush1.bf16.msra.mxu0 0
      %843 = vmatprep.subr.bf16.mxu0 0
      %844 = vmatpush1.bf16.msra.mxu0 0
      %845 = vmatprep.subr.bf16.mxu0 0
      %846 = vmatpush1.bf16.msra.mxu0 0
      %847 = vmatprep.subr.bf16.mxu0 0
      %848 = vmatpush1.bf16.msra.mxu0 0
      %849 = vmatprep.subr.bf16.mxu0 0
      %850 = vmatpush1.bf16.msra.mxu0 0
      %851 = vmatprep.subr.bf16.mxu0 0
      %852 = vmatpush1.bf16.msra.mxu0 0
      %853 = vmatprep.subr.bf16.mxu0 0
      %854 = vmatpush1.bf16.msra.mxu0 0
      %855 = vmatprep.subr.bf16.mxu0 0
      %856 = vmatpush1.bf16.msra.mxu0 0
      %857 = vmatprep.subr.bf16.mxu0 0
      %858 = vmatpush1.bf16.msra.mxu0 0
      %859 = vmatprep.subr.bf16.mxu0 0
      %860 = vmatpush1.bf16.msra.mxu0 0
      %861 = vmatprep.subr.bf16.mxu0 0
      %862 = vmatpush1.bf16.msra.mxu0 0
      %863 = vmatprep.subr.bf16.mxu0 0
      %864 = vmatpush1.bf16.msra.mxu0 0
      %865 = vmatprep.subr.bf16.mxu0 0
      %866 = vmatpush1.bf16.msra.mxu0 0
      %867 = vmatprep.subr.bf16.mxu0 0
      %868 = vmatpush1.bf16.msra.mxu0 0
      %869 = vmatprep.subr.bf16.mxu0 0
      %870 = vmatpush1.bf16.msra.mxu0 0
      %871 = vmatprep.mubr.bf16.mxu0 0
      %872 = vmatmul.mubr.bf16.gmra.mrb[0].mxu0 %v821
      %v873 = vpop.f32.mrb[0].mxu0
      %v874 = vadd.f32 0.0, %v873
      %v875 = vpop.f32.mrb[0].mxu0
      %v876 = vpop.f32.mrb[0].mxu0
      %v877 = vadd.f32 0.0, %v876
      %v878 = vpop.f32.mrb[0].mxu0
      %879 = vmatprep.mubr.bf16.mxu0 0
      %880 = vmatmul.mubr.bf16.gmra.mrb[0].mxu0 %v824
      %v881 = vpop.f32.mrb[0].mxu0
      %v882 = vadd.f32 0.0, %v881
      %v883 = vpop.f32.mrb[0].mxu0
      %v884 = vpop.f32.mrb[0].mxu0
      %v885 = vadd.f32 0.0, %v884
      %v886 = vpop.f32.mrb[0].mxu0
      %887 = vmatprep.mubr.bf16.mxu0 0
      %888 = vmatmul.mubr.bf16.gmra.mrb[0].mxu0 %v827
      %v889 = vpop.f32.mrb[0].mxu0
      %v890 = vadd.f32 0.0, %v889
      %v891 = vpop.f32.mrb[0].mxu0
      %v892 = vpop.f32.mrb[0].mxu0
      %v893 = vadd.f32 0.0, %v892
      %v894 = vpop.f32.mrb[0].mxu0
      %895 = vmatprep.mubr.bf16.mxu0 0
      %896 = vmatmul.mubr.bf16.gmra.mrb[0].mxu0 %v830
      %v897 = vpop.f32.mrb[0].mxu0
      %v898 = vadd.f32 0.0, %v897
      %v899 = vpop.f32.mrb[0].mxu0
      %v900 = vpop.f32.mrb[0].mxu0
      %v901 = vadd.f32 0.0, %v900
      %v902 = vpop.f32.mrb[0].mxu0
      %903 = vmatprep.mubr.bf16.mxu0 0
      %904 = vmatmul.mubr.bf16.gmra.mrb[0].mxu0 %v833
      %v905 = vpop.f32.mrb[0].mxu0
      %v906 = vadd.f32 0.0, %v905
      %v907 = vpop.f32.mrb[0].mxu0
      %v908 = vpop.f32.mrb[0].mxu0
      %v909 = vadd.f32 0.0, %v908
      %v910 = vpop.f32.mrb[0].mxu0
      %911 = vdwg.mxu0
      %v912 = vsel %vm819, %v771, 0
      %v914 = vsel %vm819, %v772, 0
      %v916 = vsel %vm819, %v773, 0
      %v918 = vsel %vm819, %v774, 0
      %v920 = vsel %vm819, %v775, 0
      %v923 = vsel %vm835, %v776, 0
      %925 = vmatprep.subr.bf16.mxu0 0
      %926 = vmatpush1.bf16.msra.mxu0 %v923
      %927 = vmatprep.subr.bf16.mxu0 0
      %928 = vmatpush1.bf16.msra.mxu0 0
      %929 = vmatprep.subr.bf16.mxu0 0
      %930 = vmatpush1.bf16.msra.mxu0 0
      %931 = vmatprep.subr.bf16.mxu0 0
      %932 = vmatpush1.bf16.msra.mxu0 0
      %933 = vmatprep.subr.bf16.mxu0 0
      %934 = vmatpush1.bf16.msra.mxu0 0
      %935 = vmatprep.subr.bf16.mxu0 0
      %936 = vmatpush1.bf16.msra.mxu0 0
      %937 = vmatprep.subr.bf16.mxu0 0
      %938 = vmatpush1.bf16.msra.mxu0 0
      %939 = vmatprep.subr.bf16.mxu0 0
      %940 = vmatpush1.bf16.msra.mxu0 0
      %941 = vmatprep.subr.bf16.mxu0 0
      %942 = vmatpush1.bf16.msra.mxu0 0
      %943 = vmatprep.subr.bf16.mxu0 0
      %944 = vmatpush1.bf16.msra.mxu0 0
      %945 = vmatprep.subr.bf16.mxu0 0
      %946 = vmatpush1.bf16.msra.mxu0 0
      %947 = vmatprep.subr.bf16.mxu0 0
      %948 = vmatpush1.bf16.msra.mxu0 0
      %949 = vmatprep.subr.bf16.mxu0 0
      %950 = vmatpush1.bf16.msra.mxu0 0
      %951 = vmatprep.subr.bf16.mxu0 0
      %952 = vmatpush1.bf16.msra.mxu0 0
      %953 = vmatprep.subr.bf16.mxu0 0
      %954 = vmatpush1.bf16.msra.mxu0 0
      %955 = vmatprep.subr.bf16.mxu0 0
      %956 = vmatpush1.bf16.msra.mxu0 0
      %957 = vmatprep.mubr.bf16.mxu0 0
      %958 = vmatmul.mubr.bf16.gmra.mrb[0].mxu0 %v912
      %v959 = vpop.f32.mrb[0].mxu0
      %v960 = vadd.f32 %v874, %v959
      %v961 = vpop.f32.mrb[0].mxu0
      %v962 = vpop.f32.mrb[0].mxu0
      %v963 = vadd.f32 %v877, %v962
      %v964 = vpop.f32.mrb[0].mxu0
      %965 = vmatprep.mubr.bf16.mxu0 0
      %966 = vmatmul.mubr.bf16.gmra.mrb[0].mxu0 %v914
      %v967 = vpop.f32.mrb[0].mxu0
      %v968 = vadd.f32 %v882, %v967
      %v969 = vpop.f32.mrb[0].mxu0
      %v970 = vpop.f32.mrb[0].mxu0
      %v971 = vadd.f32 %v885, %v970
      %v972 = vpop.f32.mrb[0].mxu0
      %973 = vmatprep.mubr.bf16.mxu0 0
      %974 = vmatmul.mubr.bf16.gmra.mrb[0].mxu0 %v916
      %v975 = vpop.f32.mrb[0].mxu0
      %v976 = vadd.f32 %v890, %v975
      %v977 = vpop.f32.mrb[0].mxu0
      %v978 = vpop.f32.mrb[0].mxu0
      %v979 = vadd.f32 %v893, %v978
      %v980 = vpop.f32.mrb[0].mxu0
      %981 = vmatprep.mubr.bf16.mxu0 0
      %982 = vmatmul.mubr.bf16.gmra.mrb[0].mxu0 %v918
      %v983 = vpop.f32.mrb[0].mxu0
      %v984 = vadd.f32 %v898, %v983
      %v985 = vpop.f32.mrb[0].mxu0
      %v986 = vpop.f32.mrb[0].mxu0
      %v987 = vadd.f32 %v901, %v986
      %v988 = vpop.f32.mrb[0].mxu0
      %989 = vmatprep.mubr.bf16.mxu0 0
      %990 = vmatmul.mubr.bf16.gmra.mrb[0].mxu0 %v920
      %v991 = vpop.f32.mrb[0].mxu0
      %v992 = vadd.f32 %v906, %v991
      %v993 = vpop.f32.mrb[0].mxu0
      %v994 = vpop.f32.mrb[0].mxu0
      %v995 = vadd.f32 %v909, %v994
      %v996 = vpop.f32.mrb[0].mxu0
      %997 = vdwg.mxu0
      %s998 = scalar_lea.vmem %s714, 4
      %v999 = vld [vmem:[%s998] sm:$0x3]
      %vm1005 = vcmask 1046528
      %v1006 = vrot.slane %v771, 1
      %v1007 = vrot.slane %v772, 1
      %v1008 = vsel %vm1005, %v1006, %v1007
      %v1009 = vrot.slane %v773, 1
      %v1010 = vsel %vm1005, %v1007, %v1009
      %v1011 = vrot.slane %v774, 1
      %v1012 = vsel %vm1005, %v1009, %v1011
      %v1013 = vrot.slane %v775, 1
      %v1014 = vsel %vm1005, %v1011, %v1013
      %v1016 = vsel %vm819, %v1008, 0
      %v1019 = vsel %vm819, %v1010, 0
      %v1022 = vsel %vm819, %v1012, 0
      %v1025 = vsel %vm819, %v1014, 0
      %v1028 = vsel %vm819, %v1013, 0
      %v1031 = vsel %vm835, %v999, 0
      %1033 = vmatprep.subr.bf16.mxu0 0
      %1034 = vmatpush1.bf16.msra.mxu0 %v1031
      %1035 = vmatprep.subr.bf16.mxu0 0
      %1036 = vmatpush1.bf16.msra.mxu0 0
      %1037 = vmatprep.subr.bf16.mxu0 0
      %1038 = vmatpush1.bf16.msra.mxu0 0
      %1039 = vmatprep.subr.bf16.mxu0 0
      %1040 = vmatpush1.bf16.msra.mxu0 0
      %1041 = vmatprep.subr.bf16.mxu0 0
      %1042 = vmatpush1.bf16.msra.mxu0 0
      %1043 = vmatprep.subr.bf16.mxu0 0
      %1044 = vmatpush1.bf16.msra.mxu0 0
      %1045 = vmatprep.subr.bf16.mxu0 0
      %1046 = vmatpush1.bf16.msra.mxu0 0
      %1047 = vmatprep.subr.bf16.mxu0 0
      %1048 = vmatpush1.bf16.msra.mxu0 0
      %1049 = vmatprep.subr.bf16.mxu0 0
      %1050 = vmatpush1.bf16.msra.mxu0 0
      %1051 = vmatprep.subr.bf16.mxu0 0
      %1052 = vmatpush1.bf16.msra.mxu0 0
      %1053 = vmatprep.subr.bf16.mxu0 0
      %1054 = vmatpush1.bf16.msra.mxu0 0
      %1055 = vmatprep.subr.bf16.mxu0 0
      %1056 = vmatpush1.bf16.msra.mxu0 0
      %1057 = vmatprep.subr.bf16.mxu0 0
      %1058 = vmatpush1.bf16.msra.mxu0 0
      %1059 = vmatprep.subr.bf16.mxu0 0
      %1060 = vmatpush1.bf16.msra.mxu0 0
      %1061 = vmatprep.subr.bf16.mxu0 0
      %1062 = vmatpush1.bf16.msra.mxu0 0
      %1063 = vmatprep.subr.bf16.mxu0 0
      %1064 = vmatpush1.bf16.msra.mxu0 0
      %1065 = vmatprep.mubr.bf16.mxu0 0
      %1066 = vmatmul.mubr.bf16.gmra.mrb[0].mxu0 %v1016
      %v1067 = vpop.f32.mrb[0].mxu0
      %v1068 = vadd.f32 0.0, %v1067
      %v1069 = vpop.f32.mrb[0].mxu0
      %v1070 = vpop.f32.mrb[0].mxu0
      %v1071 = vadd.f32 0.0, %v1070
      %v1072 = vpop.f32.mrb[0].mxu0
      %1073 = vmatprep.mubr.bf16.mxu0 0
      %1074 = vmatmul.mubr.bf16.gmra.mrb[0].mxu0 %v1019
      %v1075 = vpop.f32.mrb[0].mxu0
      %v1076 = vadd.f32 0.0, %v1075
      %v1077 = vpop.f32.mrb[0].mxu0
      %v1078 = vpop.f32.mrb[0].mxu0
      %v1079 = vadd.f32 0.0, %v1078
      %v1080 = vpop.f32.mrb[0].mxu0
      %1081 = vmatprep.mubr.bf16.mxu0 0
      %1082 = vmatmul.mubr.bf16.gmra.mrb[0].mxu0 %v1022
      %v1083 = vpop.f32.mrb[0].mxu0
      %v1084 = vadd.f32 0.0, %v1083
      %v1085 = vpop.f32.mrb[0].mxu0
      %v1086 = vpop.f32.mrb[0].mxu0
      %v1087 = vadd.f32 0.0, %v1086
      %v1088 = vpop.f32.mrb[0].mxu0
      %1089 = vmatprep.mubr.bf16.mxu0 0
      %1090 = vmatmul.mubr.bf16.gmra.mrb[0].mxu0 %v1025
      %v1091 = vpop.f32.mrb[0].mxu0
      %v1092 = vadd.f32 0.0, %v1091
      %v1093 = vpop.f32.mrb[0].mxu0
      %v1094 = vpop.f32.mrb[0].mxu0
      %v1095 = vadd.f32 0.0, %v1094
      %v1096 = vpop.f32.mrb[0].mxu0
      %1097 = vmatprep.mubr.bf16.mxu0 0
      %1098 = vmatmul.mubr.bf16.gmra.mrb[0].mxu0 %v1028
      %v1099 = vpop.f32.mrb[0].mxu0
      %v1100 = vadd.f32 0.0, %v1099
      %v1101 = vpop.f32.mrb[0].mxu0
      %v1102 = vpop.f32.mrb[0].mxu0
      %v1103 = vadd.f32 0.0, %v1102
      %v1104 = vpop.f32.mrb[0].mxu0
      %1105 = vdwg.mxu0
      %v1106 = vadd.f32 %v960, %v1068
      %v1107 = vadd.f32 %v963, %v1071
      %v1108 = vadd.f32 %v968, %v1076
      %v1109 = vadd.f32 %v971, %v1079
      %v1110 = vadd.f32 %v976, %v1084
      %v1111 = vadd.f32 %v979, %v1087
      %v1112 = vadd.f32 %v984, %v1092
      %v1113 = vadd.f32 %v987, %v1095
      %v1114 = vadd.f32 %v992, %v1100
      %v1115 = vadd.f32 %v995, %v1103
      %s1116 = scalar_lea.vmem %s714, 6
      %v1117 = vld [vmem:[%s1116] sm:$0x3]
      %vm1118 = vsmask.f32 6400
      %v1119 = vrot.slane %v781, 1
      %v1120 = vrot.slane %v783, 2
      %v1121 = vor.u32 %v1119, %v1120
      %v1122 = vrot.slane %v792, 1
      %v1123 = vrot.slane %v788, 2
      %v1124 = vor.u32 %v1122, %v1123
      %v1125 = vsel %vm1118, %v1121, %v1124
      %v1126 = vrot.slane %v800, 1
      %v1127 = vrot.slane %v796, 2
      %v1128 = vor.u32 %v1126, %v1127
      %v1129 = vsel %vm1118, %v1124, %v1128
      %v1130 = vrot.slane %v808, 1
      %v1131 = vrot.slane %v804, 2
      %v1132 = vor.u32 %v1130, %v1131
      %v1133 = vsel %vm1118, %v1128, %v1132
      %v1134 = vrot.slane %v816, 1
      %v1135 = vrot.slane %v812, 2
      %v1136 = vor.u32 %v1134, %v1135
      %v1137 = vsel %vm1118, %v1132, %v1136
      %v1139 = vsel %vm819, %v1125, 0
      %v1142 = vsel %vm819, %v1129, 0
      %v1145 = vsel %vm819, %v1133, 0
      %v1148 = vsel %vm819, %v1137, 0
      %v1151 = vsel %vm819, %v1136, 0
      %v1154 = vsel %vm835, %v1117, 0
      %1156 = vmatprep.subr.bf16.mxu0 0
      %1157 = vmatpush1.bf16.msra.mxu0 %v1154
      %1158 = vmatprep.subr.bf16.mxu0 0
      %1159 = vmatpush1.bf16.msra.mxu0 0
      %1160 = vmatprep.subr.bf16.mxu0 0
      %1161 = vmatpush1.bf16.msra.mxu0 0
      %1162 = vmatprep.subr.bf16.mxu0 0
      %1163 = vmatpush1.bf16.msra.mxu0 0
      %1164 = vmatprep.subr.bf16.mxu0 0
      %1165 = vmatpush1.bf16.msra.mxu0 0
      %1166 = vmatprep.subr.bf16.mxu0 0
      %1167 = vmatpush1.bf16.msra.mxu0 0
      %1168 = vmatprep.subr.bf16.mxu0 0
      %1169 = vmatpush1.bf16.msra.mxu0 0
      %1170 = vmatprep.subr.bf16.mxu0 0
      %1171 = vmatpush1.bf16.msra.mxu0 0
      %1172 = vmatprep.subr.bf16.mxu0 0
      %1173 = vmatpush1.bf16.msra.mxu0 0
      %1174 = vmatprep.subr.bf16.mxu0 0
      %1175 = vmatpush1.bf16.msra.mxu0 0
      %1176 = vmatprep.subr.bf16.mxu0 0
      %1177 = vmatpush1.bf16.msra.mxu0 0
      %1178 = vmatprep.subr.bf16.mxu0 0
      %1179 = vmatpush1.bf16.msra.mxu0 0
      %1180 = vmatprep.subr.bf16.mxu0 0
      %1181 = vmatpush1.bf16.msra.mxu0 0
      %1182 = vmatprep.subr.bf16.mxu0 0
      %1183 = vmatpush1.bf16.msra.mxu0 0
      %1184 = vmatprep.subr.bf16.mxu0 0
      %1185 = vmatpush1.bf16.msra.mxu0 0
      %1186 = vmatprep.subr.bf16.mxu0 0
      %1187 = vmatpush1.bf16.msra.mxu0 0
      %1188 = vmatprep.mubr.bf16.mxu0 0
      %1189 = vmatmul.mubr.bf16.gmra.mrb[0].mxu0 %v1139
      %v1190 = vpop.f32.mrb[0].mxu0
      %v1191 = vadd.f32 0.0, %v1190
      %v1192 = vpop.f32.mrb[0].mxu0
      %v1193 = vpop.f32.mrb[0].mxu0
      %v1194 = vadd.f32 0.0, %v1193
      %v1195 = vpop.f32.mrb[0].mxu0
      %1196 = vmatprep.mubr.bf16.mxu0 0
      %1197 = vmatmul.mubr.bf16.gmra.mrb[0].mxu0 %v1142
      %v1198 = vpop.f32.mrb[0].mxu0
      %v1199 = vadd.f32 0.0, %v1198
      %v1200 = vpop.f32.mrb[0].mxu0
      %v1201 = vpop.f32.mrb[0].mxu0
      %v1202 = vadd.f32 0.0, %v1201
      %v1203 = vpop.f32.mrb[0].mxu0
      %1204 = vmatprep.mubr.bf16.mxu0 0
      %1205 = vmatmul.mubr.bf16.gmra.mrb[0].mxu0 %v1145
      %v1206 = vpop.f32.mrb[0].mxu0
      %v1207 = vadd.f32 0.0, %v1206
      %v1208 = vpop.f32.mrb[0].mxu0
      %v1209 = vpop.f32.mrb[0].mxu0
      %v1210 = vadd.f32 0.0, %v1209
      %v1211 = vpop.f32.mrb[0].mxu0
      %1212 = vmatprep.mubr.bf16.mxu0 0
      %1213 = vmatmul.mubr.bf16.gmra.mrb[0].mxu0 %v1148
      %v1214 = vpop.f32.mrb[0].mxu0
      %v1215 = vadd.f32 0.0, %v1214
      %v1216 = vpop.f32.mrb[0].mxu0
      %v1217 = vpop.f32.mrb[0].mxu0
      %v1218 = vadd.f32 0.0, %v1217
      %v1219 = vpop.f32.mrb[0].mxu0
      %1220 = vmatprep.mubr.bf16.mxu0 0
      %1221 = vmatmul.mubr.bf16.gmra.mrb[0].mxu0 %v1151
      %v1222 = vpop.f32.mrb[0].mxu0
      %v1223 = vadd.f32 0.0, %v1222
      %v1224 = vpop.f32.mrb[0].mxu0
      %v1225 = vpop.f32.mrb[0].mxu0
      %v1226 = vadd.f32 0.0, %v1225
      %v1227 = vpop.f32.mrb[0].mxu0
      %1228 = vdwg.mxu0
      %v1229 = vadd.f32 %v1106, %v1191
      %v1230 = vadd.f32 %v1107, %v1194
      %v1231 = vadd.f32 %v1108, %v1199
      %v1232 = vadd.f32 %v1109, %v1202
      %v1233 = vadd.f32 %v1110, %v1207
      %v1234 = vadd.f32 %v1111, %v1210
      %v1235 = vadd.f32 %v1112, %v1215
      %v1236 = vadd.f32 %v1113, %v1218
      %v1237 = vadd.f32 %v1114, %v1223
      %v1238 = vadd.f32 %v1115, %v1226
      %s1239 = scalar_lea.vmem %s714, 8
      %v1240 = vld [vmem:[%s1239] sm:$0x3]
      %vm1241 = vcmask 1045504
      %v1242 = vrot.slane %v771, 2
      %v1243 = vrot.slane %v772, 2
      %v1244 = vsel %vm1241, %v1242, %v1243
      %v1245 = vrot.slane %v773, 2
      %v1246 = vsel %vm1241, %v1243, %v1245
      %v1247 = vrot.slane %v774, 2
      %v1248 = vsel %vm1241, %v1245, %v1247
      %v1249 = vrot.slane %v775, 2
      %v1250 = vsel %vm1241, %v1247, %v1249
      %v1252 = vsel %vm819, %v1244, 0
      %v1255 = vsel %vm819, %v1246, 0
      %v1258 = vsel %vm819, %v1248, 0
      %v1261 = vsel %vm819, %v1250, 0
      %v1264 = vsel %vm819, %v1249, 0
      %v1267 = vsel %vm835, %v1240, 0
      %1269 = vmatprep.subr.bf16.mxu0 0
      %1270 = vmatpush1.bf16.msra.mxu0 %v1267
      %1271 = vmatprep.subr.bf16.mxu0 0
      %1272 = vmatpush1.bf16.msra.mxu0 0
      %1273 = vmatprep.subr.bf16.mxu0 0
      %1274 = vmatpush1.bf16.msra.mxu0 0
      %1275 = vmatprep.subr.bf16.mxu0 0
      %1276 = vmatpush1.bf16.msra.mxu0 0
      %1277 = vmatprep.subr.bf16.mxu0 0
      %1278 = vmatpush1.bf16.msra.mxu0 0
      %1279 = vmatprep.subr.bf16.mxu0 0
      %1280 = vmatpush1.bf16.msra.mxu0 0
      %1281 = vmatprep.subr.bf16.mxu0 0
      %1282 = vmatpush1.bf16.msra.mxu0 0
      %1283 = vmatprep.subr.bf16.mxu0 0
      %1284 = vmatpush1.bf16.msra.mxu0 0
      %1285 = vmatprep.subr.bf16.mxu0 0
      %1286 = vmatpush1.bf16.msra.mxu0 0
      %1287 = vmatprep.subr.bf16.mxu0 0
      %1288 = vmatpush1.bf16.msra.mxu0 0
      %1289 = vmatprep.subr.bf16.mxu0 0
      %1290 = vmatpush1.bf16.msra.mxu0 0
      %1291 = vmatprep.subr.bf16.mxu0 0
      %1292 = vmatpush1.bf16.msra.mxu0 0
      %1293 = vmatprep.subr.bf16.mxu0 0
      %1294 = vmatpush1.bf16.msra.mxu0 0
      %1295 = vmatprep.subr.bf16.mxu0 0
      %1296 = vmatpush1.bf16.msra.mxu0 0
      %1297 = vmatprep.subr.bf16.mxu0 0
      %1298 = vmatpush1.bf16.msra.mxu0 0
      %1299 = vmatprep.subr.bf16.mxu0 0
      %1300 = vmatpush1.bf16.msra.mxu0 0
      %1301 = vmatprep.mubr.bf16.mxu0 0
      %1302 = vmatmul.mubr.bf16.gmra.mrb[0].mxu0 %v1252
      %v1303 = vpop.f32.mrb[0].mxu0
      %v1304 = vadd.f32 0.0, %v1303
      %v1305 = vpop.f32.mrb[0].mxu0
      %v1306 = vpop.f32.mrb[0].mxu0
      %v1307 = vadd.f32 0.0, %v1306
      %v1308 = vpop.f32.mrb[0].mxu0
      %1309 = vmatprep.mubr.bf16.mxu0 0
      %1310 = vmatmul.mubr.bf16.gmra.mrb[0].mxu0 %v1255
      %v1311 = vpop.f32.mrb[0].mxu0
      %v1312 = vadd.f32 0.0, %v1311
      %v1313 = vpop.f32.mrb[0].mxu0
      %v1314 = vpop.f32.mrb[0].mxu0
      %v1315 = vadd.f32 0.0, %v1314
      %v1316 = vpop.f32.mrb[0].mxu0
      %1317 = vmatprep.mubr.bf16.mxu0 0
      %1318 = vmatmul.mubr.bf16.gmra.mrb[0].mxu0 %v1258
      %v1319 = vpop.f32.mrb[0].mxu0
      %v1320 = vadd.f32 0.0, %v1319
      %v1321 = vpop.f32.mrb[0].mxu0
      %v1322 = vpop.f32.mrb[0].mxu0
      %v1323 = vadd.f32 0.0, %v1322
      %v1324 = vpop.f32.mrb[0].mxu0
      %1325 = vmatprep.mubr.bf16.mxu0 0
      %1326 = vmatmul.mubr.bf16.gmra.mrb[0].mxu0 %v1261
      %v1327 = vpop.f32.mrb[0].mxu0
      %v1328 = vadd.f32 0.0, %v1327
      %v1329 = vpop.f32.mrb[0].mxu0
      %v1330 = vpop.f32.mrb[0].mxu0
      %v1331 = vadd.f32 0.0, %v1330
      %v1332 = vpop.f32.mrb[0].mxu0
      %1333 = vmatprep.mubr.bf16.mxu0 0
      %1334 = vmatmul.mubr.bf16.gmra.mrb[0].mxu0 %v1264
      %v1335 = vpop.f32.mrb[0].mxu0
      %v1336 = vadd.f32 0.0, %v1335
      %v1337 = vpop.f32.mrb[0].mxu0
      %v1338 = vpop.f32.mrb[0].mxu0
      %v1339 = vadd.f32 0.0, %v1338
      %v1340 = vpop.f32.mrb[0].mxu0
      %1341 = vdwg.mxu0
      %v1342 = vadd.f32 %v1229, %v1304
      %v1343 = vadd.f32 %v1230, %v1307
      %v1344 = vadd.f32 %v1231, %v1312
      %v1345 = vadd.f32 %v1232, %v1315
      %v1346 = vadd.f32 %v1233, %v1320
      %v1347 = vadd.f32 %v1234, %v1323
      %v1348 = vadd.f32 %v1235, %v1328
      %v1349 = vadd.f32 %v1236, %v1331
      %v1350 = vadd.f32 %v1237, %v1336
      %v1351 = vadd.f32 %v1238, %v1339
      %s1352 = scalar_lea.vmem %s714, 10
      %v1353 = vld [vmem:[%s1352] sm:$0x3]
      %vm1354 = vsmask.f32 5376
      %v1355 = vrot.slane %v781, 2
      %v1356 = vrot.slane %v783, 3
      %v1357 = vor.u32 %v1355, %v1356
      %v1358 = vrot.slane %v792, 2
      %v1359 = vrot.slane %v788, 3
      %v1360 = vor.u32 %v1358, %v1359
      %v1361 = vsel %vm1354, %v1357, %v1360
      %v1362 = vrot.slane %v800, 2
      %v1363 = vrot.slane %v796, 3
      %v1364 = vor.u32 %v1362, %v1363
      %v1365 = vsel %vm1354, %v1360, %v1364
      %v1366 = vrot.slane %v808, 2
      %v1367 = vrot.slane %v804, 3
      %v1368 = vor.u32 %v1366, %v1367
      %v1369 = vsel %vm1354, %v1364, %v1368
      %v1370 = vrot.slane %v816, 2
      %v1371 = vrot.slane %v812, 3
      %v1372 = vor.u32 %v1370, %v1371
      %v1373 = vsel %vm1354, %v1368, %v1372
      %v1375 = vsel %vm819, %v1361, 0
      %v1378 = vsel %vm819, %v1365, 0
      %v1381 = vsel %vm819, %v1369, 0
      %v1384 = vsel %vm819, %v1373, 0
      %v1387 = vsel %vm819, %v1372, 0
      %v1390 = vsel %vm835, %v1353, 0
      %1392 = vmatprep.subr.bf16.mxu0 0
      %1393 = vmatpush1.bf16.msra.mxu0 %v1390
      %1394 = vmatprep.subr.bf16.mxu0 0
      %1395 = vmatpush1.bf16.msra.mxu0 0
      %1396 = vmatprep.subr.bf16.mxu0 0
      %1397 = vmatpush1.bf16.msra.mxu0 0
      %1398 = vmatprep.subr.bf16.mxu0 0
      %1399 = vmatpush1.bf16.msra.mxu0 0
      %1400 = vmatprep.subr.bf16.mxu0 0
      %1401 = vmatpush1.bf16.msra.mxu0 0
      %1402 = vmatprep.subr.bf16.mxu0 0
      %1403 = vmatpush1.bf16.msra.mxu0 0
      %1404 = vmatprep.subr.bf16.mxu0 0
      %1405 = vmatpush1.bf16.msra.mxu0 0
      %1406 = vmatprep.subr.bf16.mxu0 0
      %1407 = vmatpush1.bf16.msra.mxu0 0
      %1408 = vmatprep.subr.bf16.mxu0 0
      %1409 = vmatpush1.bf16.msra.mxu0 0
      %1410 = vmatprep.subr.bf16.mxu0 0
      %1411 = vmatpush1.bf16.msra.mxu0 0
      %1412 = vmatprep.subr.bf16.mxu0 0
      %1413 = vmatpush1.bf16.msra.mxu0 0
      %1414 = vmatprep.subr.bf16.mxu0 0
      %1415 = vmatpush1.bf16.msra.mxu0 0
      %1416 = vmatprep.subr.bf16.mxu0 0
      %1417 = vmatpush1.bf16.msra.mxu0 0
      %1418 = vmatprep.subr.bf16.mxu0 0
      %1419 = vmatpush1.bf16.msra.mxu0 0
      %1420 = vmatprep.subr.bf16.mxu0 0
      %1421 = vmatpush1.bf16.msra.mxu0 0
      %1422 = vmatprep.subr.bf16.mxu0 0
      %1423 = vmatpush1.bf16.msra.mxu0 0
      %1424 = vmatprep.mubr.bf16.mxu0 0
      %1425 = vmatmul.mubr.bf16.gmra.mrb[0].mxu0 %v1375
      %v1426 = vpop.f32.mrb[0].mxu0
      %v1427 = vadd.f32 0.0, %v1426
      %v1428 = vpop.f32.mrb[0].mxu0
      %v1429 = vpop.f32.mrb[0].mxu0
      %v1430 = vadd.f32 0.0, %v1429
      %v1431 = vpop.f32.mrb[0].mxu0
      %1432 = vmatprep.mubr.bf16.mxu0 0
      %1433 = vmatmul.mubr.bf16.gmra.mrb[0].mxu0 %v1378
      %v1434 = vpop.f32.mrb[0].mxu0
      %v1435 = vadd.f32 0.0, %v1434
      %v1436 = vpop.f32.mrb[0].mxu0
      %v1437 = vpop.f32.mrb[0].mxu0
      %v1438 = vadd.f32 0.0, %v1437
      %v1439 = vpop.f32.mrb[0].mxu0
      %1440 = vmatprep.mubr.bf16.mxu0 0
      %1441 = vmatmul.mubr.bf16.gmra.mrb[0].mxu0 %v1381
      %v1442 = vpop.f32.mrb[0].mxu0
      %v1443 = vadd.f32 0.0, %v1442
      %v1444 = vpop.f32.mrb[0].mxu0
      %v1445 = vpop.f32.mrb[0].mxu0
      %v1446 = vadd.f32 0.0, %v1445
      %v1447 = vpop.f32.mrb[0].mxu0
      %1448 = vmatprep.mubr.bf16.mxu0 0
      %1449 = vmatmul.mubr.bf16.gmra.mrb[0].mxu0 %v1384
      %v1450 = vpop.f32.mrb[0].mxu0
      %v1451 = vadd.f32 0.0, %v1450
      %v1452 = vpop.f32.mrb[0].mxu0
      %v1453 = vpop.f32.mrb[0].mxu0
      %v1454 = vadd.f32 0.0, %v1453
      %v1455 = vpop.f32.mrb[0].mxu0
      %1456 = vmatprep.mubr.bf16.mxu0 0
      %1457 = vmatmul.mubr.bf16.gmra.mrb[0].mxu0 %v1387
      %v1458 = vpop.f32.mrb[0].mxu0
      %v1459 = vadd.f32 0.0, %v1458
      %v1460 = vpop.f32.mrb[0].mxu0
      %v1461 = vpop.f32.mrb[0].mxu0
      %v1462 = vadd.f32 0.0, %v1461
      %v1463 = vpop.f32.mrb[0].mxu0
      %1464 = vdwg.mxu0
      %v1465 = vadd.f32 %v1342, %v1427
      %v1466 = vadd.f32 %v1343, %v1430
      %v1467 = vadd.f32 %v1344, %v1435
      %v1468 = vadd.f32 %v1345, %v1438
      %v1469 = vadd.f32 %v1346, %v1443
      %v1470 = vadd.f32 %v1347, %v1446
      %v1471 = vadd.f32 %v1348, %v1451
      %v1472 = vadd.f32 %v1349, %v1454
      %v1473 = vadd.f32 %v1350, %v1459
      %v1474 = vadd.f32 %v1351, %v1462
      %s1475 = scalar_lea.vmem %s714, 12
      %v1476 = vld [vmem:[%s1475] sm:$0x3]
      %vm1477 = vcmask 1044480
      %v1478 = vrot.slane %v771, 3
      %v1479 = vrot.slane %v772, 3
      %v1480 = vsel %vm1477, %v1478, %v1479
      %v1481 = vrot.slane %v773, 3
      %v1482 = vsel %vm1477, %v1479, %v1481
      %v1483 = vrot.slane %v774, 3
      %v1484 = vsel %vm1477, %v1481, %v1483
      %v1485 = vrot.slane %v775, 3
      %v1486 = vsel %vm1477, %v1483, %v1485
      %v1488 = vsel %vm819, %v1480, 0
      %v1491 = vsel %vm819, %v1482, 0
      %v1494 = vsel %vm819, %v1484, 0
      %v1497 = vsel %vm819, %v1486, 0
      %v1500 = vsel %vm819, %v1485, 0
      %v1503 = vsel %vm835, %v1476, 0
      %1505 = vmatprep.subr.bf16.mxu0 0
      %1506 = vmatpush1.bf16.msra.mxu0 %v1503
      %1507 = vmatprep.subr.bf16.mxu0 0
      %1508 = vmatpush1.bf16.msra.mxu0 0
      %1509 = vmatprep.subr.bf16.mxu0 0
      %1510 = vmatpush1.bf16.msra.mxu0 0
      %1511 = vmatprep.subr.bf16.mxu0 0
      %1512 = vmatpush1.bf16.msra.mxu0 0
      %1513 = vmatprep.subr.bf16.mxu0 0
      %1514 = vmatpush1.bf16.msra.mxu0 0
      %1515 = vmatprep.subr.bf16.mxu0 0
      %1516 = vmatpush1.bf16.msra.mxu0 0
      %1517 = vmatprep.subr.bf16.mxu0 0
      %1518 = vmatpush1.bf16.msra.mxu0 0
      %1519 = vmatprep.subr.bf16.mxu0 0
      %1520 = vmatpush1.bf16.msra.mxu0 0
      %1521 = vmatprep.subr.bf16.mxu0 0
      %1522 = vmatpush1.bf16.msra.mxu0 0
      %1523 = vmatprep.subr.bf16.mxu0 0
      %1524 = vmatpush1.bf16.msra.mxu0 0
      %1525 = vmatprep.subr.bf16.mxu0 0
      %1526 = vmatpush1.bf16.msra.mxu0 0
      %1527 = vmatprep.subr.bf16.mxu0 0
      %1528 = vmatpush1.bf16.msra.mxu0 0
      %1529 = vmatprep.subr.bf16.mxu0 0
      %1530 = vmatpush1.bf16.msra.mxu0 0
      %1531 = vmatprep.subr.bf16.mxu0 0
      %1532 = vmatpush1.bf16.msra.mxu0 0
      %1533 = vmatprep.subr.bf16.mxu0 0
      %1534 = vmatpush1.bf16.msra.mxu0 0
      %1535 = vmatprep.subr.bf16.mxu0 0
      %1536 = vmatpush1.bf16.msra.mxu0 0
      %1537 = vmatprep.mubr.bf16.mxu0 0
      %1538 = vmatmul.mubr.bf16.gmra.mrb[0].mxu0 %v1488
      %v1539 = vpop.f32.mrb[0].mxu0
      %v1540 = vadd.f32 0.0, %v1539
      %v1541 = vpop.f32.mrb[0].mxu0
      %v1542 = vpop.f32.mrb[0].mxu0
      %v1543 = vadd.f32 0.0, %v1542
      %v1544 = vpop.f32.mrb[0].mxu0
      %1545 = vmatprep.mubr.bf16.mxu0 0
      %1546 = vmatmul.mubr.bf16.gmra.mrb[0].mxu0 %v1491
      %v1547 = vpop.f32.mrb[0].mxu0
      %v1548 = vadd.f32 0.0, %v1547
      %v1549 = vpop.f32.mrb[0].mxu0
      %v1550 = vpop.f32.mrb[0].mxu0
      %v1551 = vadd.f32 0.0, %v1550
      %v1552 = vpop.f32.mrb[0].mxu0
      %1553 = vmatprep.mubr.bf16.mxu0 0
      %1554 = vmatmul.mubr.bf16.gmra.mrb[0].mxu0 %v1494
      %v1555 = vpop.f32.mrb[0].mxu0
      %v1556 = vadd.f32 0.0, %v1555
      %v1557 = vpop.f32.mrb[0].mxu0
      %v1558 = vpop.f32.mrb[0].mxu0
      %v1559 = vadd.f32 0.0, %v1558
      %v1560 = vpop.f32.mrb[0].mxu0
      %1561 = vmatprep.mubr.bf16.mxu0 0
      %1562 = vmatmul.mubr.bf16.gmra.mrb[0].mxu0 %v1497
      %v1563 = vpop.f32.mrb[0].mxu0
      %v1564 = vadd.f32 0.0, %v1563
      %v1565 = vpop.f32.mrb[0].mxu0
      %v1566 = vpop.f32.mrb[0].mxu0
      %v1567 = vadd.f32 0.0, %v1566
      %v1568 = vpop.f32.mrb[0].mxu0
      %1569 = vmatprep.mubr.bf16.mxu0 0
      %1570 = vmatmul.mubr.bf16.gmra.mrb[0].mxu0 %v1500
      %v1571 = vpop.f32.mrb[0].mxu0
      %v1572 = vadd.f32 0.0, %v1571
      %v1573 = vpop.f32.mrb[0].mxu0
      %v1574 = vpop.f32.mrb[0].mxu0
      %v1575 = vadd.f32 0.0, %v1574
      %v1576 = vpop.f32.mrb[0].mxu0
      %1577 = vdwg.mxu0
      %v1578 = vadd.f32 %v1465, %v1540
      %v1579 = vadd.f32 %v1466, %v1543
      %v1580 = vadd.f32 %v1467, %v1548
      %v1581 = vadd.f32 %v1468, %v1551
      %v1582 = vadd.f32 %v1469, %v1556
      %v1583 = vadd.f32 %v1470, %v1559
      %v1584 = vadd.f32 %v1471, %v1564
      %v1585 = vadd.f32 %v1472, %v1567
      %v1586 = vadd.f32 %v1473, %v1572
      %v1587 = vadd.f32 %v1474, %v1575
      %s1588 = scalar_lea.vmem %s714, 14
      %v1589 = vld [vmem:[%s1588] sm:$0x3]
      %vm1590 = vsmask.f32 4352
      %v1591 = vrot.slane %v781, 3
      %v1592 = vrot.slane %v783, 4
      %v1593 = vor.u32 %v1591, %v1592
      %v1594 = vrot.slane %v792, 3
      %v1595 = vrot.slane %v788, 4
      %v1596 = vor.u32 %v1594, %v1595
      %v1597 = vsel %vm1590, %v1593, %v1596
      %v1598 = vrot.slane %v800, 3
      %v1599 = vrot.slane %v796, 4
      %v1600 = vor.u32 %v1598, %v1599
      %v1601 = vsel %vm1590, %v1596, %v1600
      %v1602 = vrot.slane %v808, 3
      %v1603 = vrot.slane %v804, 4
      %v1604 = vor.u32 %v1602, %v1603
      %v1605 = vsel %vm1590, %v1600, %v1604
      %v1606 = vrot.slane %v816, 3
      %v1607 = vrot.slane %v812, 4
      %v1608 = vor.u32 %v1606, %v1607
      %v1609 = vsel %vm1590, %v1604, %v1608
      %v1611 = vsel %vm819, %v1597, 0
      %v1614 = vsel %vm819, %v1601, 0
      %v1617 = vsel %vm819, %v1605, 0
      %v1620 = vsel %vm819, %v1609, 0
      %v1623 = vsel %vm819, %v1608, 0
      %v1626 = vsel %vm835, %v1589, 0
      %1628 = vmatprep.subr.bf16.mxu0 0
      %1629 = vmatpush1.bf16.msra.mxu0 %v1626
      %1630 = vmatprep.subr.bf16.mxu0 0
      %1631 = vmatpush1.bf16.msra.mxu0 0
      %1632 = vmatprep.subr.bf16.mxu0 0
      %1633 = vmatpush1.bf16.msra.mxu0 0
      %1634 = vmatprep.subr.bf16.mxu0 0
      %1635 = vmatpush1.bf16.msra.mxu0 0
      %1636 = vmatprep.subr.bf16.mxu0 0
      %1637 = vmatpush1.bf16.msra.mxu0 0
      %1638 = vmatprep.subr.bf16.mxu0 0
      %1639 = vmatpush1.bf16.msra.mxu0 0
      %1640 = vmatprep.subr.bf16.mxu0 0
      %1641 = vmatpush1.bf16.msra.mxu0 0
      %1642 = vmatprep.subr.bf16.mxu0 0
      %1643 = vmatpush1.bf16.msra.mxu0 0
      %1644 = vmatprep.subr.bf16.mxu0 0
      %1645 = vmatpush1.bf16.msra.mxu0 0
      %1646 = vmatprep.subr.bf16.mxu0 0
      %1647 = vmatpush1.bf16.msra.mxu0 0
      %1648 = vmatprep.subr.bf16.mxu0 0
      %1649 = vmatpush1.bf16.msra.mxu0 0
      %1650 = vmatprep.subr.bf16.mxu0 0
      %1651 = vmatpush1.bf16.msra.mxu0 0
      %1652 = vmatprep.subr.bf16.mxu0 0
      %1653 = vmatpush1.bf16.msra.mxu0 0
      %1654 = vmatprep.subr.bf16.mxu0 0
      %1655 = vmatpush1.bf16.msra.mxu0 0
      %1656 = vmatprep.subr.bf16.mxu0 0
      %1657 = vmatpush1.bf16.msra.mxu0 0
      %1658 = vmatprep.subr.bf16.mxu0 0
      %1659 = vmatpush1.bf16.msra.mxu0 0
      %1660 = vmatprep.mubr.bf16.mxu0 0
      %1661 = vmatmul.mubr.bf16.gmra.mrb[0].mxu0 %v1611
      %v1662 = vpop.f32.mrb[0].mxu0
      %v1663 = vadd.f32 0.0, %v1662
      %v1664 = vpop.f32.mrb[0].mxu0
      %v1665 = vpop.f32.mrb[0].mxu0
      %v1666 = vadd.f32 0.0, %v1665
      %v1667 = vpop.f32.mrb[0].mxu0
      %1668 = vmatprep.mubr.bf16.mxu0 0
      %1669 = vmatmul.mubr.bf16.gmra.mrb[0].mxu0 %v1614
      %v1670 = vpop.f32.mrb[0].mxu0
      %v1671 = vadd.f32 0.0, %v1670
      %v1672 = vpop.f32.mrb[0].mxu0
      %v1673 = vpop.f32.mrb[0].mxu0
      %v1674 = vadd.f32 0.0, %v1673
      %v1675 = vpop.f32.mrb[0].mxu0
      %1676 = vmatprep.mubr.bf16.mxu0 0
      %1677 = vmatmul.mubr.bf16.gmra.mrb[0].mxu0 %v1617
      %v1678 = vpop.f32.mrb[0].mxu0
      %v1679 = vadd.f32 0.0, %v1678
      %v1680 = vpop.f32.mrb[0].mxu0
      %v1681 = vpop.f32.mrb[0].mxu0
      %v1682 = vadd.f32 0.0, %v1681
      %v1683 = vpop.f32.mrb[0].mxu0
      %1684 = vmatprep.mubr.bf16.mxu0 0
      %1685 = vmatmul.mubr.bf16.gmra.mrb[0].mxu0 %v1620
      %v1686 = vpop.f32.mrb[0].mxu0
      %v1687 = vadd.f32 0.0, %v1686
      %v1688 = vpop.f32.mrb[0].mxu0
      %v1689 = vpop.f32.mrb[0].mxu0
      %v1690 = vadd.f32 0.0, %v1689
      %v1691 = vpop.f32.mrb[0].mxu0
      %1692 = vmatprep.mubr.bf16.mxu0 0
      %1693 = vmatmul.mubr.bf16.gmra.mrb[0].mxu0 %v1623
      %v1694 = vpop.f32.mrb[0].mxu0
      %v1695 = vadd.f32 0.0, %v1694
      %v1696 = vpop.f32.mrb[0].mxu0
      %v1697 = vpop.f32.mrb[0].mxu0
      %v1698 = vadd.f32 0.0, %v1697
      %v1699 = vpop.f32.mrb[0].mxu0
      %1700 = vdwg.mxu0
      %v1701 = vadd.f32 %v1578, %v1663
      %v1702 = vadd.f32 %v1579, %v1666
      %v1703 = vadd.f32 %v1580, %v1671
      %v1704 = vadd.f32 %v1581, %v1674
      %v1705 = vadd.f32 %v1582, %v1679
      %v1706 = vadd.f32 %v1583, %v1682
      %v1707 = vadd.f32 %v1584, %v1687
      %v1708 = vadd.f32 %v1585, %v1690
      %v1709 = vadd.f32 %v1586, %v1695
      %v1710 = vadd.f32 %v1587, %v1698
      %v1711 = vld [vmem:[%s717] sm:$0x1]
      %v1713 = vlaneseq
      %v1714 = vshrl.u32 %v1713, 7
      %v1715 = vsub.s32 0, %v1714
      %v1716 = vrot.slane %v1711, %v1715
      %v1718 = vadd.f32 %v1701, %v1716
      %v1719 = vadd.f32 %v1702, %v1716
      %v1720 = vadd.f32 %v1703, %v1716
      %v1721 = vadd.f32 %v1704, %v1716
      %v1722 = vadd.f32 %v1705, %v1716
      %v1723 = vadd.f32 %v1706, %v1716
      %v1724 = vadd.f32 %v1707, %v1716
      %v1725 = vadd.f32 %v1708, %v1716
      %v1726 = vadd.f32 %v1709, %v1716
      %v1727 = vadd.f32 %v1710, %v1716
      %v1728 = vmax.f32 %v1718, 0.0
      %v1729 = vmax.f32 %v1719, 0.0
      %v1730 = vmax.f32 %v1720, 0.0
      %v1731 = vmax.f32 %v1721, 0.0
      %v1732 = vmax.f32 %v1722, 0.0
      %v1733 = vmax.f32 %v1723, 0.0
      %v1734 = vmax.f32 %v1724, 0.0
      %v1735 = vmax.f32 %v1725, 0.0
      %v1736 = vmax.f32 %v1726, 0.0
      %v1737 = vmax.f32 %v1727, 0.0
      %v1738 = vpack.c.bf16 %v1729, %v1728
      %v1739 = vpack.c.bf16 %v1731, %v1730
      %v1740 = vpack.c.bf16 %v1733, %v1732
      %v1741 = vpack.c.bf16 %v1735, %v1734
      %v1742 = vpack.c.bf16 %v1737, %v1736
      %v1743 = vld [vmem:[%s7] sm:$0xf]
      %v1744 = vld [vmem:[%s7 + $0x4] sm:$0xf]
      %v1745 = vld [vmem:[%s7 + $0x8] sm:$0xf]
      %v1746 = vld [vmem:[%s7 + $0xc] sm:$0xf]
      %v1747 = vld [vmem:[%s7 + $0x10] sm:$0xf]
      %v1748 = vld [vmem:[%s7 + $0x14] sm:$0xf]
      %v1749 = vld [vmem:[%s7 + $0x18] sm:$0x1]
      %v1757 = vunpack.c.l.b16 %v1743
      %v1758 = vunpack.c.l.b16 %v1744
      %v1759 = vunpack.c.l.b16 %v1745
      %v1760 = vunpack.c.l.b16 %v1746
      %v1761 = vunpack.c.l.b16 %v1747
      %v1762 = vunpack.c.l.b16 %v1748
      %v1763 = vunpack.c.l.b16 %v1749
      %v1764 = vpack.c.b16 %v1758, %v1757
      %v1765 = vpack.c.b16 %v1760, %v1759
      %v1766 = vpack.c.b16 %v1762, %v1761
      %v1767 = vpack.c.b16 %v1763, %v1763
      %vm1768 = vcmask 596992
      %v1770 = vsel %vm1768, %v1764, 0
      %v1773 = vsel %vm1768, %v1765, 0
      %v1776 = vsel %vm1768, %v1766, 0
      %v1779 = vsel %vm1768, %v1767, 0
      %vm1781 = vcmask 1043456
      %vm1782 = vcmask 1044480
      %v1783 = vsel %vm1781, 4294967295, 65535
      %v1784 = vsel %vm1782, %v1783, 0
      %v1786 = vand.u32 %v1742, %v1784
      %1788 = vmatprep.subr.bf16.mxu0 0
      %1789 = vmatpush1.bf16.msra.mxu0 %v1738
      %1790 = vmatprep.subr.bf16.mxu0 0
      %1791 = vmatpush1.bf16.msra.mxu0 %v1739
      %1792 = vmatprep.subr.bf16.mxu0 0
      %1793 = vmatpush1.bf16.msra.mxu0 %v1740
      %1794 = vmatprep.subr.bf16.mxu0 0
      %1795 = vmatpush1.bf16.msra.mxu0 %v1741
      %1796 = vmatprep.subr.bf16.mxu0 0
      %1797 = vmatpush1.bf16.msra.mxu0 %v1786
      %1798 = vmatprep.subr.bf16.mxu0 0
      %1799 = vmatpush1.bf16.msra.mxu0 0
      %1800 = vmatprep.subr.bf16.mxu0 0
      %1801 = vmatpush1.bf16.msra.mxu0 0
      %1802 = vmatprep.subr.bf16.mxu0 0
      %1803 = vmatpush1.bf16.msra.mxu0 0
      %1804 = vmatprep.subr.bf16.mxu0 0
      %1805 = vmatpush1.bf16.msra.mxu0 0
      %1806 = vmatprep.subr.bf16.mxu0 0
      %1807 = vmatpush1.bf16.msra.mxu0 0
      %1808 = vmatprep.subr.bf16.mxu0 0
      %1809 = vmatpush1.bf16.msra.mxu0 0
      %1810 = vmatprep.subr.bf16.mxu0 0
      %1811 = vmatpush1.bf16.msra.mxu0 0
      %1812 = vmatprep.subr.bf16.mxu0 0
      %1813 = vmatpush1.bf16.msra.mxu0 0
      %1814 = vmatprep.subr.bf16.mxu0 0
      %1815 = vmatpush1.bf16.msra.mxu0 0
      %1816 = vmatprep.subr.bf16.mxu0 0
      %1817 = vmatpush1.bf16.msra.mxu0 0
      %1818 = vmatprep.subr.bf16.mxu0 0
      %1819 = vmatpush1.bf16.msra.mxu0 0
      %1820 = vmatprep.mubr.bf16.mxu0 0
      %1821 = vmatmul.mubr.bf16.gmra.mrb[0].mxu0 %v1770
      %v1822 = vpop.f32.mrb[0].mxu0
      %v1823 = vadd.f32 0.0, %v1822
      %v1824 = vpop.f32.mrb[0].mxu0
      %v1825 = vpop.f32.mrb[0].mxu0
      %v1826 = vadd.f32 0.0, %v1825
      %v1827 = vpop.f32.mrb[0].mxu0
      %1828 = vmatprep.mubr.bf16.mxu0 0
      %1829 = vmatmul.mubr.bf16.gmra.mrb[0].mxu0 %v1773
      %v1830 = vpop.f32.mrb[0].mxu0
      %v1831 = vadd.f32 0.0, %v1830
      %v1832 = vpop.f32.mrb[0].mxu0
      %v1833 = vpop.f32.mrb[0].mxu0
      %v1834 = vadd.f32 0.0, %v1833
      %v1835 = vpop.f32.mrb[0].mxu0
      %1836 = vmatprep.mubr.bf16.mxu0 0
      %1837 = vmatmul.mubr.bf16.gmra.mrb[0].mxu0 %v1776
      %v1838 = vpop.f32.mrb[0].mxu0
      %v1839 = vadd.f32 0.0, %v1838
      %v1840 = vpop.f32.mrb[0].mxu0
      %v1841 = vpop.f32.mrb[0].mxu0
      %v1842 = vadd.f32 0.0, %v1841
      %v1843 = vpop.f32.mrb[0].mxu0
      %1844 = vmatprep.mubr.bf16.mxu0 0
      %1845 = vmatmul.mubr.bf16.gmra.mrb[0].mxu0 %v1779
      %v1846 = vpop.f32.mrb[0].mxu0
      %v1847 = vadd.f32 0.0, %v1846
      %v1848 = vpop.f32.mrb[0].mxu0
      %v1849 = vpop.f32.mrb[0].mxu0
      %v1850 = vpop.f32.mrb[0].mxu0
      %1851 = vdwg.mxu0
      %v1852 = vld [vmem:[%s8] sm:$0xf]
      %v1853 = vld [vmem:[%s8 + $0x4] sm:$0xf]
      %v1854 = vld [vmem:[%s8 + $0x8] sm:$0xf]
      %v1855 = vld [vmem:[%s8 + $0xc] sm:$0xf]
      %v1856 = vld [vmem:[%s8 + $0x10] sm:$0xf]
      %v1857 = vld [vmem:[%s8 + $0x14] sm:$0xf]
      %v1858 = vld [vmem:[%s8 + $0x18] sm:$0x1]
      %v1866 = vunpack.c.l.b16 %v1852
      %v1867 = vunpack.c.l.b16 %v1853
      %v1868 = vunpack.c.l.b16 %v1854
      %v1869 = vunpack.c.l.b16 %v1855
      %v1870 = vunpack.c.l.b16 %v1856
      %v1871 = vunpack.c.l.b16 %v1857
      %v1872 = vunpack.c.l.b16 %v1858
      %v1873 = vpack.c.b16 %v1867, %v1866
      %v1874 = vpack.c.b16 %v1869, %v1868
      %v1875 = vpack.c.b16 %v1871, %v1870
      %v1876 = vpack.c.b16 %v1872, %v1872
      %v1878 = vsel %vm1768, %v1873, 0
      %v1881 = vsel %vm1768, %v1874, 0
      %v1884 = vsel %vm1768, %v1875, 0
      %v1887 = vsel %vm1768, %v1876, 0
      %1889 = vmatprep.subr.bf16.mxu0 0
      %1890 = vmatpush1.bf16.msra.mxu0 %v1738
      %1891 = vmatprep.subr.bf16.mxu0 0
      %1892 = vmatpush1.bf16.msra.mxu0 %v1739
      %1893 = vmatprep.subr.bf16.mxu0 0
      %1894 = vmatpush1.bf16.msra.mxu0 %v1740
      %1895 = vmatprep.subr.bf16.mxu0 0
      %1896 = vmatpush1.bf16.msra.mxu0 %v1741
      %1897 = vmatprep.subr.bf16.mxu0 0
      %1898 = vmatpush1.bf16.msra.mxu0 %v1786
      %1899 = vmatprep.subr.bf16.mxu0 0
      %1900 = vmatpush1.bf16.msra.mxu0 0
      %1901 = vmatprep.subr.bf16.mxu0 0
      %1902 = vmatpush1.bf16.msra.mxu0 0
      %1903 = vmatprep.subr.bf16.mxu0 0
      %1904 = vmatpush1.bf16.msra.mxu0 0
      %1905 = vmatprep.subr.bf16.mxu0 0
      %1906 = vmatpush1.bf16.msra.mxu0 0
      %1907 = vmatprep.subr.bf16.mxu0 0
      %1908 = vmatpush1.bf16.msra.mxu0 0
      %1909 = vmatprep.subr.bf16.mxu0 0
      %1910 = vmatpush1.bf16.msra.mxu0 0
      %1911 = vmatprep.subr.bf16.mxu0 0
      %1912 = vmatpush1.bf16.msra.mxu0 0
      %1913 = vmatprep.subr.bf16.mxu0 0
      %1914 = vmatpush1.bf16.msra.mxu0 0
      %1915 = vmatprep.subr.bf16.mxu0 0
      %1916 = vmatpush1.bf16.msra.mxu0 0
      %1917 = vmatprep.subr.bf16.mxu0 0
      %1918 = vmatpush1.bf16.msra.mxu0 0
      %1919 = vmatprep.subr.bf16.mxu0 0
      %1920 = vmatpush1.bf16.msra.mxu0 0
      %1921 = vmatprep.mubr.bf16.mxu0 0
      %1922 = vmatmul.mubr.bf16.gmra.mrb[0].mxu0 %v1878
      %v1923 = vpop.f32.mrb[0].mxu0
      %v1924 = vadd.f32 0.0, %v1923
      %v1925 = vpop.f32.mrb[0].mxu0
      %v1926 = vpop.f32.mrb[0].mxu0
      %v1927 = vadd.f32 0.0, %v1926
      %v1928 = vpop.f32.mrb[0].mxu0
      %1929 = vmatprep.mubr.bf16.mxu0 0
      %1930 = vmatmul.mubr.bf16.gmra.mrb[0].mxu0 %v1881
      %v1931 = vpop.f32.mrb[0].mxu0
      %v1932 = vadd.f32 0.0, %v1931
      %v1933 = vpop.f32.mrb[0].mxu0
      %v1934 = vpop.f32.mrb[0].mxu0
      %v1935 = vadd.f32 0.0, %v1934
      %v1936 = vpop.f32.mrb[0].mxu0
      %1937 = vmatprep.mubr.bf16.mxu0 0
      %1938 = vmatmul.mubr.bf16.gmra.mrb[0].mxu0 %v1884
      %v1939 = vpop.f32.mrb[0].mxu0
      %v1940 = vadd.f32 0.0, %v1939
      %v1941 = vpop.f32.mrb[0].mxu0
      %v1942 = vpop.f32.mrb[0].mxu0
      %v1943 = vadd.f32 0.0, %v1942
      %v1944 = vpop.f32.mrb[0].mxu0
      %1945 = vmatprep.mubr.bf16.mxu0 0
      %1946 = vmatmul.mubr.bf16.gmra.mrb[0].mxu0 %v1887
      %v1947 = vpop.f32.mrb[0].mxu0
      %v1948 = vadd.f32 0.0, %v1947
      %v1949 = vpop.f32.mrb[0].mxu0
      %v1950 = vpop.f32.mrb[0].mxu0
      %v1951 = vpop.f32.mrb[0].mxu0
      %1952 = vdwg.mxu0
      %v1953 = vmax.f32 %v1823, %v1924
      %v1954 = vmax.f32 %v1826, %v1927
      %v1955 = vmax.f32 %v1831, %v1932
      %v1956 = vmax.f32 %v1834, %v1935
      %v1957 = vmax.f32 %v1839, %v1940
      %v1958 = vmax.f32 %v1842, %v1943
      %v1959 = vmax.f32 %v1847, %v1948
      %v1960 = vpack.c.bf16 %v1954, %v1953
      %v1961 = vpack.c.bf16 %v1956, %v1955
      %v1962 = vpack.c.bf16 %v1958, %v1957
      %v1963 = vpack.c.bf16 %v1959, %v1959
      %v1964 = vld [vmem:[%s722] sm:$0xf]
      %v1965 = vld [vmem:[%s722 + $0x4] sm:$0xf]
      %v1966 = vld [vmem:[%s722 + $0x8] sm:$0xf]
      %v1967 = vld [vmem:[%s722 + $0xc] sm:$0xf]
      %s1968 = scalar_lea.vmem %s722, 16
      %v1969 = vld [vmem:[%s1968] sm:$0xf]
      %v1970 = vld [vmem:[%s1968 + $0x4] sm:$0xf]
      %v1971 = vld [vmem:[%s1968 + $0x8] sm:$0xf]
      %v1972 = vld [vmem:[%s1968 + $0xc] sm:$0xf]
      %v1974 = vshrl.u32 %v1960, 16
      %v1976 = vshll.u32 %v1960, 16
      %v1978 = vrot.slane %v1976, 1
      %v1979 = vor.u32 %v1974, %v1978
      %v1981 = vshll.u32 %v1961, 16
      %v1983 = vrot.slane %v1981, 1
      %v1984 = vsel %vm779, %v1979, %v1983
      %v1985 = vshrl.u32 %v1961, 16
      %v1987 = vor.u32 %v1985, %v1983
      %v1989 = vshll.u32 %v1962, 16
      %v1991 = vrot.slane %v1989, 1
      %v1992 = vsel %vm779, %v1987, %v1991
      %v1993 = vshrl.u32 %v1962, 16
      %v1995 = vor.u32 %v1993, %v1991
      %v2000 = vunpack.c.l.b16 %v1969
      %v2001 = vunpack.c.l.b16 %v1970
      %v2002 = vunpack.c.l.b16 %v1971
      %v2003 = vunpack.c.l.b16 %v1972
      %v2004 = vpack.c.b16 %v2001, %v2000
      %v2005 = vpack.c.b16 %v2003, %v2002
      %vm2008 = vcmask 261120
      %v2010 = vsel %vm2008, %v1984, 0
      %v2013 = vsel %vm2008, %v1992, 0
      %v2016 = vsel %vm2008, %v1995, 0
      %2018 = vmatprep.subr.bf16.mxu0 0
      %2019 = vmatpush1.bf16.msra.mxu0 %v2004
      %2020 = vmatprep.subr.bf16.mxu0 0
      %2021 = vmatpush1.bf16.msra.mxu0 %v2005
      %2022 = vmatprep.subr.bf16.mxu0 0
      %2023 = vmatpush1.bf16.msra.mxu0 0
      %2024 = vmatprep.subr.bf16.mxu0 0
      %2025 = vmatpush1.bf16.msra.mxu0 0
      %2026 = vmatprep.subr.bf16.mxu0 0
      %2027 = vmatpush1.bf16.msra.mxu0 0
      %2028 = vmatprep.subr.bf16.mxu0 0
      %2029 = vmatpush1.bf16.msra.mxu0 0
      %2030 = vmatprep.subr.bf16.mxu0 0
      %2031 = vmatpush1.bf16.msra.mxu0 0
      %2032 = vmatprep.subr.bf16.mxu0 0
      %2033 = vmatpush1.bf16.msra.mxu0 0
      %2034 = vmatprep.subr.bf16.mxu0 0
      %2035 = vmatpush1.bf16.msra.mxu0 0
      %2036 = vmatprep.subr.bf16.mxu0 0
      %2037 = vmatpush1.bf16.msra.mxu0 0
      %2038 = vmatprep.subr.bf16.mxu0 0
      %2039 = vmatpush1.bf16.msra.mxu0 0
      %2040 = vmatprep.subr.bf16.mxu0 0
      %2041 = vmatpush1.bf16.msra.mxu0 0
      %2042 = vmatprep.subr.bf16.mxu0 0
      %2043 = vmatpush1.bf16.msra.mxu0 0
      %2044 = vmatprep.subr.bf16.mxu0 0
      %2045 = vmatpush1.bf16.msra.mxu0 0
      %2046 = vmatprep.subr.bf16.mxu0 0
      %2047 = vmatpush1.bf16.msra.mxu0 0
      %2048 = vmatprep.subr.bf16.mxu0 0
      %2049 = vmatpush1.bf16.msra.mxu0 0
      %2050 = vmatprep.mubr.bf16.mxu0 0
      %2051 = vmatmul.mubr.bf16.gmra.mrb[0].mxu0 %v2010
      %v2052 = vpop.f32.mrb[0].mxu0
      %v2053 = vadd.f32 0.0, %v2052
      %v2054 = vpop.f32.mrb[0].mxu0
      %v2055 = vpop.f32.mrb[0].mxu0
      %v2056 = vadd.f32 0.0, %v2055
      %v2057 = vpop.f32.mrb[0].mxu0
      %2058 = vmatprep.mubr.bf16.mxu0 0
      %2059 = vmatmul.mubr.bf16.gmra.mrb[0].mxu0 %v2013
      %v2060 = vpop.f32.mrb[0].mxu0
      %v2061 = vadd.f32 0.0, %v2060
      %v2062 = vpop.f32.mrb[0].mxu0
      %v2063 = vpop.f32.mrb[0].mxu0
      %v2064 = vadd.f32 0.0, %v2063
      %v2065 = vpop.f32.mrb[0].mxu0
      %2066 = vmatprep.mubr.bf16.mxu0 0
      %2067 = vmatmul.mubr.bf16.gmra.mrb[0].mxu0 %v2016
      %v2068 = vpop.f32.mrb[0].mxu0
      %v2069 = vadd.f32 0.0, %v2068
      %v2070 = vpop.f32.mrb[0].mxu0
      %v2071 = vpop.f32.mrb[0].mxu0
      %v2072 = vadd.f32 0.0, %v2071
      %v2073 = vpop.f32.mrb[0].mxu0
      %2074 = vdwg.mxu0
      %v2079 = vunpack.c.l.b16 %v1964
      %v2080 = vunpack.c.l.b16 %v1965
      %v2081 = vunpack.c.l.b16 %v1966
      %v2082 = vunpack.c.l.b16 %v1967
      %v2083 = vpack.c.b16 %v2080, %v2079
      %v2084 = vpack.c.b16 %v2082, %v2081
      %v2087 = vsel %vm2008, %v1960, 0
      %v2089 = vsel %vm2008, %v1961, 0
      %v2091 = vsel %vm2008, %v1962, 0
      %2093 = vmatprep.subr.bf16.mxu0 0
      %2094 = vmatpush1.bf16.msra.mxu0 %v2083
      %2095 = vmatprep.subr.bf16.mxu0 0
      %2096 = vmatpush1.bf16.msra.mxu0 %v2084
      %2097 = vmatprep.subr.bf16.mxu0 0
      %2098 = vmatpush1.bf16.msra.mxu0 0
      %2099 = vmatprep.subr.bf16.mxu0 0
      %2100 = vmatpush1.bf16.msra.mxu0 0
      %2101 = vmatprep.subr.bf16.mxu0 0
      %2102 = vmatpush1.bf16.msra.mxu0 0
      %2103 = vmatprep.subr.bf16.mxu0 0
      %2104 = vmatpush1.bf16.msra.mxu0 0
      %2105 = vmatprep.subr.bf16.mxu0 0
      %2106 = vmatpush1.bf16.msra.mxu0 0
      %2107 = vmatprep.subr.bf16.mxu0 0
      %2108 = vmatpush1.bf16.msra.mxu0 0
      %2109 = vmatprep.subr.bf16.mxu0 0
      %2110 = vmatpush1.bf16.msra.mxu0 0
      %2111 = vmatprep.subr.bf16.mxu0 0
      %2112 = vmatpush1.bf16.msra.mxu0 0
      %2113 = vmatprep.subr.bf16.mxu0 0
      %2114 = vmatpush1.bf16.msra.mxu0 0
      %2115 = vmatprep.subr.bf16.mxu0 0
      %2116 = vmatpush1.bf16.msra.mxu0 0
      %2117 = vmatprep.subr.bf16.mxu0 0
      %2118 = vmatpush1.bf16.msra.mxu0 0
      %2119 = vmatprep.subr.bf16.mxu0 0
      %2120 = vmatpush1.bf16.msra.mxu0 0
      %2121 = vmatprep.subr.bf16.mxu0 0
      %2122 = vmatpush1.bf16.msra.mxu0 0
      %2123 = vmatprep.subr.bf16.mxu0 0
      %2124 = vmatpush1.bf16.msra.mxu0 0
      %2125 = vmatprep.mubr.bf16.mxu0 0
      %2126 = vmatmul.mubr.bf16.gmra.mrb[0].mxu0 %v2087
      %v2127 = vpop.f32.mrb[0].mxu0
      %v2128 = vadd.f32 %v2053, %v2127
      %v2129 = vpop.f32.mrb[0].mxu0
      %v2130 = vpop.f32.mrb[0].mxu0
      %v2131 = vadd.f32 %v2056, %v2130
      %v2132 = vpop.f32.mrb[0].mxu0
      %2133 = vmatprep.mubr.bf16.mxu0 0
      %2134 = vmatmul.mubr.bf16.gmra.mrb[0].mxu0 %v2089
      %v2135 = vpop.f32.mrb[0].mxu0
      %v2136 = vadd.f32 %v2061, %v2135
      %v2137 = vpop.f32.mrb[0].mxu0
      %v2138 = vpop.f32.mrb[0].mxu0
      %v2139 = vadd.f32 %v2064, %v2138
      %v2140 = vpop.f32.mrb[0].mxu0
      %2141 = vmatprep.mubr.bf16.mxu0 0
      %2142 = vmatmul.mubr.bf16.gmra.mrb[0].mxu0 %v2091
      %v2143 = vpop.f32.mrb[0].mxu0
      %v2144 = vadd.f32 %v2069, %v2143
      %v2145 = vpop.f32.mrb[0].mxu0
      %v2146 = vpop.f32.mrb[0].mxu0
      %v2147 = vadd.f32 %v2072, %v2146
      %v2148 = vpop.f32.mrb[0].mxu0
      %2149 = vdwg.mxu0
      %s2150 = scalar_lea.vmem %s722, 32
      %v2151 = vld [vmem:[%s2150] sm:$0xf]
      %v2152 = vld [vmem:[%s2150 + $0x4] sm:$0xf]
      %v2153 = vld [vmem:[%s2150 + $0x8] sm:$0xf]
      %v2154 = vld [vmem:[%s2150 + $0xc] sm:$0xf]
      %v2158 = vrot.slane %v1960, 1
      %v2159 = vrot.slane %v1961, 1
      %v2160 = vsel %vm1005, %v2158, %v2159
      %v2161 = vrot.slane %v1962, 1
      %v2162 = vsel %vm1005, %v2159, %v2161
      %v2167 = vunpack.c.l.b16 %v2151
      %v2168 = vunpack.c.l.b16 %v2152
      %v2169 = vunpack.c.l.b16 %v2153
      %v2170 = vunpack.c.l.b16 %v2154
      %v2171 = vpack.c.b16 %v2168, %v2167
      %v2172 = vpack.c.b16 %v2170, %v2169
      %v2176 = vsel %vm2008, %v2160, 0
      %v2179 = vsel %vm2008, %v2162, 0
      %v2182 = vsel %vm2008, %v2161, 0
      %2184 = vmatprep.subr.bf16.mxu0 0
      %2185 = vmatpush1.bf16.msra.mxu0 %v2171
      %2186 = vmatprep.subr.bf16.mxu0 0
      %2187 = vmatpush1.bf16.msra.mxu0 %v2172
      %2188 = vmatprep.subr.bf16.mxu0 0
      %2189 = vmatpush1.bf16.msra.mxu0 0
      %2190 = vmatprep.subr.bf16.mxu0 0
      %2191 = vmatpush1.bf16.msra.mxu0 0
      %2192 = vmatprep.subr.bf16.mxu0 0
      %2193 = vmatpush1.bf16.msra.mxu0 0
      %2194 = vmatprep.subr.bf16.mxu0 0
      %2195 = vmatpush1.bf16.msra.mxu0 0
      %2196 = vmatprep.subr.bf16.mxu0 0
      %2197 = vmatpush1.bf16.msra.mxu0 0
      %2198 = vmatprep.subr.bf16.mxu0 0
      %2199 = vmatpush1.bf16.msra.mxu0 0
      %2200 = vmatprep.subr.bf16.mxu0 0
      %2201 = vmatpush1.bf16.msra.mxu0 0
      %2202 = vmatprep.subr.bf16.mxu0 0
      %2203 = vmatpush1.bf16.msra.mxu0 0
      %2204 = vmatprep.subr.bf16.mxu0 0
      %2205 = vmatpush1.bf16.msra.mxu0 0
      %2206 = vmatprep.subr.bf16.mxu0 0
      %2207 = vmatpush1.bf16.msra.mxu0 0
      %2208 = vmatprep.subr.bf16.mxu0 0
      %2209 = vmatpush1.bf16.msra.mxu0 0
      %2210 = vmatprep.subr.bf16.mxu0 0
      %2211 = vmatpush1.bf16.msra.mxu0 0
      %2212 = vmatprep.subr.bf16.mxu0 0
      %2213 = vmatpush1.bf16.msra.mxu0 0
      %2214 = vmatprep.subr.bf16.mxu0 0
      %2215 = vmatpush1.bf16.msra.mxu0 0
      %2216 = vmatprep.mubr.bf16.mxu0 0
      %2217 = vmatmul.mubr.bf16.gmra.mrb[0].mxu0 %v2176
      %v2218 = vpop.f32.mrb[0].mxu0
      %v2219 = vadd.f32 0.0, %v2218
      %v2220 = vpop.f32.mrb[0].mxu0
      %v2221 = vpop.f32.mrb[0].mxu0
      %v2222 = vadd.f32 0.0, %v2221
      %v2223 = vpop.f32.mrb[0].mxu0
      %2224 = vmatprep.mubr.bf16.mxu0 0
      %2225 = vmatmul.mubr.bf16.gmra.mrb[0].mxu0 %v2179
      %v2226 = vpop.f32.mrb[0].mxu0
      %v2227 = vadd.f32 0.0, %v2226
      %v2228 = vpop.f32.mrb[0].mxu0
      %v2229 = vpop.f32.mrb[0].mxu0
      %v2230 = vadd.f32 0.0, %v2229
      %v2231 = vpop.f32.mrb[0].mxu0
      %2232 = vmatprep.mubr.bf16.mxu0 0
      %2233 = vmatmul.mubr.bf16.gmra.mrb[0].mxu0 %v2182
      %v2234 = vpop.f32.mrb[0].mxu0
      %v2235 = vadd.f32 0.0, %v2234
      %v2236 = vpop.f32.mrb[0].mxu0
      %v2237 = vpop.f32.mrb[0].mxu0
      %v2238 = vadd.f32 0.0, %v2237
      %v2239 = vpop.f32.mrb[0].mxu0
      %2240 = vdwg.mxu0
      %v2241 = vadd.f32 %v2128, %v2219
      %v2242 = vadd.f32 %v2131, %v2222
      %v2243 = vadd.f32 %v2136, %v2227
      %v2244 = vadd.f32 %v2139, %v2230
      %v2245 = vadd.f32 %v2144, %v2235
      %v2246 = vadd.f32 %v2147, %v2238
      %s2247 = scalar_lea.vmem %s722, 48
      %v2248 = vld [vmem:[%s2247] sm:$0xf]
      %v2249 = vld [vmem:[%s2247 + $0x4] sm:$0xf]
      %v2250 = vld [vmem:[%s2247 + $0x8] sm:$0xf]
      %v2251 = vld [vmem:[%s2247 + $0xc] sm:$0xf]
      %v2252 = vrot.slane %v1974, 1
      %v2253 = vrot.slane %v1976, 2
      %v2254 = vor.u32 %v2252, %v2253
      %v2255 = vrot.slane %v1985, 1
      %v2256 = vrot.slane %v1981, 2
      %v2257 = vor.u32 %v2255, %v2256
      %v2258 = vsel %vm1118, %v2254, %v2257
      %v2259 = vrot.slane %v1993, 1
      %v2260 = vrot.slane %v1989, 2
      %v2261 = vor.u32 %v2259, %v2260
      %v2262 = vsel %vm1118, %v2257, %v2261
      %v2267 = vunpack.c.l.b16 %v2248
      %v2268 = vunpack.c.l.b16 %v2249
      %v2269 = vunpack.c.l.b16 %v2250
      %v2270 = vunpack.c.l.b16 %v2251
      %v2271 = vpack.c.b16 %v2268, %v2267
      %v2272 = vpack.c.b16 %v2270, %v2269
      %v2276 = vsel %vm2008, %v2258, 0
      %v2279 = vsel %vm2008, %v2262, 0
      %v2282 = vsel %vm2008, %v2261, 0
      %2284 = vmatprep.subr.bf16.mxu0 0
      %2285 = vmatpush1.bf16.msra.mxu0 %v2271
      %2286 = vmatprep.subr.bf16.mxu0 0
      %2287 = vmatpush1.bf16.msra.mxu0 %v2272
      %2288 = vmatprep.subr.bf16.mxu0 0
      %2289 = vmatpush1.bf16.msra.mxu0 0
      %2290 = vmatprep.subr.bf16.mxu0 0
      %2291 = vmatpush1.bf16.msra.mxu0 0
      %2292 = vmatprep.subr.bf16.mxu0 0
      %2293 = vmatpush1.bf16.msra.mxu0 0
      %2294 = vmatprep.subr.bf16.mxu0 0
      %2295 = vmatpush1.bf16.msra.mxu0 0
      %2296 = vmatprep.subr.bf16.mxu0 0
      %2297 = vmatpush1.bf16.msra.mxu0 0
      %2298 = vmatprep.subr.bf16.mxu0 0
      %2299 = vmatpush1.bf16.msra.mxu0 0
      %2300 = vmatprep.subr.bf16.mxu0 0
      %2301 = vmatpush1.bf16.msra.mxu0 0
      %2302 = vmatprep.subr.bf16.mxu0 0
      %2303 = vmatpush1.bf16.msra.mxu0 0
      %2304 = vmatprep.subr.bf16.mxu0 0
      %2305 = vmatpush1.bf16.msra.mxu0 0
      %2306 = vmatprep.subr.bf16.mxu0 0
      %2307 = vmatpush1.bf16.msra.mxu0 0
      %2308 = vmatprep.subr.bf16.mxu0 0
      %2309 = vmatpush1.bf16.msra.mxu0 0
      %2310 = vmatprep.subr.bf16.mxu0 0
      %2311 = vmatpush1.bf16.msra.mxu0 0
      %2312 = vmatprep.subr.bf16.mxu0 0
      %2313 = vmatpush1.bf16.msra.mxu0 0
      %2314 = vmatprep.subr.bf16.mxu0 0
      %2315 = vmatpush1.bf16.msra.mxu0 0
      %2316 = vmatprep.mubr.bf16.mxu0 0
      %2317 = vmatmul.mubr.bf16.gmra.mrb[0].mxu0 %v2276
      %v2318 = vpop.f32.mrb[0].mxu0
      %v2319 = vadd.f32 0.0, %v2318
      %v2320 = vpop.f32.mrb[0].mxu0
      %v2321 = vpop.f32.mrb[0].mxu0
      %v2322 = vadd.f32 0.0, %v2321
      %v2323 = vpop.f32.mrb[0].mxu0
      %2324 = vmatprep.mubr.bf16.mxu0 0
      %2325 = vmatmul.mubr.bf16.gmra.mrb[0].mxu0 %v2279
      %v2326 = vpop.f32.mrb[0].mxu0
      %v2327 = vadd.f32 0.0, %v2326
      %v2328 = vpop.f32.mrb[0].mxu0
      %v2329 = vpop.f32.mrb[0].mxu0
      %v2330 = vadd.f32 0.0, %v2329
      %v2331 = vpop.f32.mrb[0].mxu0
      %2332 = vmatprep.mubr.bf16.mxu0 0
      %2333 = vmatmul.mubr.bf16.gmra.mrb[0].mxu0 %v2282
      %v2334 = vpop.f32.mrb[0].mxu0
      %v2335 = vadd.f32 0.0, %v2334
      %v2336 = vpop.f32.mrb[0].mxu0
      %v2337 = vpop.f32.mrb[0].mxu0
      %v2338 = vadd.f32 0.0, %v2337
      %v2339 = vpop.f32.mrb[0].mxu0
      %2340 = vdwg.mxu0
      %v2341 = vadd.f32 %v2241, %v2319
      %v2342 = vadd.f32 %v2242, %v2322
      %v2343 = vadd.f32 %v2243, %v2327
      %v2344 = vadd.f32 %v2244, %v2330
      %v2345 = vadd.f32 %v2245, %v2335
      %v2346 = vadd.f32 %v2246, %v2338
      %s2347 = scalar_lea.vmem %s722, 64
      %v2348 = vld [vmem:[%s2347] sm:$0xf]
      %v2349 = vld [vmem:[%s2347 + $0x4] sm:$0xf]
      %v2350 = vld [vmem:[%s2347 + $0x8] sm:$0xf]
      %v2351 = vld [vmem:[%s2347 + $0xc] sm:$0xf]
      %v2352 = vrot.slane %v1960, 2
      %v2353 = vrot.slane %v1961, 2
      %v2354 = vsel %vm1241, %v2352, %v2353
      %v2355 = vrot.slane %v1962, 2
      %v2356 = vsel %vm1241, %v2353, %v2355
      %v2361 = vunpack.c.l.b16 %v2348
      %v2362 = vunpack.c.l.b16 %v2349
      %v2363 = vunpack.c.l.b16 %v2350
      %v2364 = vunpack.c.l.b16 %v2351
      %v2365 = vpack.c.b16 %v2362, %v2361
      %v2366 = vpack.c.b16 %v2364, %v2363
      %v2370 = vsel %vm2008, %v2354, 0
      %v2373 = vsel %vm2008, %v2356, 0
      %v2376 = vsel %vm2008, %v2355, 0
      %2378 = vmatprep.subr.bf16.mxu0 0
      %2379 = vmatpush1.bf16.msra.mxu0 %v2365
      %2380 = vmatprep.subr.bf16.mxu0 0
      %2381 = vmatpush1.bf16.msra.mxu0 %v2366
      %2382 = vmatprep.subr.bf16.mxu0 0
      %2383 = vmatpush1.bf16.msra.mxu0 0
      %2384 = vmatprep.subr.bf16.mxu0 0
      %2385 = vmatpush1.bf16.msra.mxu0 0
      %2386 = vmatprep.subr.bf16.mxu0 0
      %2387 = vmatpush1.bf16.msra.mxu0 0
      %2388 = vmatprep.subr.bf16.mxu0 0
      %2389 = vmatpush1.bf16.msra.mxu0 0
      %2390 = vmatprep.subr.bf16.mxu0 0
      %2391 = vmatpush1.bf16.msra.mxu0 0
      %2392 = vmatprep.subr.bf16.mxu0 0
      %2393 = vmatpush1.bf16.msra.mxu0 0
      %2394 = vmatprep.subr.bf16.mxu0 0
      %2395 = vmatpush1.bf16.msra.mxu0 0
      %2396 = vmatprep.subr.bf16.mxu0 0
      %2397 = vmatpush1.bf16.msra.mxu0 0
      %2398 = vmatprep.subr.bf16.mxu0 0
      %2399 = vmatpush1.bf16.msra.mxu0 0
      %2400 = vmatprep.subr.bf16.mxu0 0
      %2401 = vmatpush1.bf16.msra.mxu0 0
      %2402 = vmatprep.subr.bf16.mxu0 0
      %2403 = vmatpush1.bf16.msra.mxu0 0
      %2404 = vmatprep.subr.bf16.mxu0 0
      %2405 = vmatpush1.bf16.msra.mxu0 0
      %2406 = vmatprep.subr.bf16.mxu0 0
      %2407 = vmatpush1.bf16.msra.mxu0 0
      %2408 = vmatprep.subr.bf16.mxu0 0
      %2409 = vmatpush1.bf16.msra.mxu0 0
      %2410 = vmatprep.mubr.bf16.mxu0 0
      %2411 = vmatmul.mubr.bf16.gmra.mrb[0].mxu0 %v2370
      %v2412 = vpop.f32.mrb[0].mxu0
      %v2413 = vadd.f32 0.0, %v2412
      %v2414 = vpop.f32.mrb[0].mxu0
      %v2415 = vpop.f32.mrb[0].mxu0
      %v2416 = vadd.f32 0.0, %v2415
      %v2417 = vpop.f32.mrb[0].mxu0
      %2418 = vmatprep.mubr.bf16.mxu0 0
      %2419 = vmatmul.mubr.bf16.gmra.mrb[0].mxu0 %v2373
      %v2420 = vpop.f32.mrb[0].mxu0
      %v2421 = vadd.f32 0.0, %v2420
      %v2422 = vpop.f32.mrb[0].mxu0
      %v2423 = vpop.f32.mrb[0].mxu0
      %v2424 = vadd.f32 0.0, %v2423
      %v2425 = vpop.f32.mrb[0].mxu0
      %2426 = vmatprep.mubr.bf16.mxu0 0
      %2427 = vmatmul.mubr.bf16.gmra.mrb[0].mxu0 %v2376
      %v2428 = vpop.f32.mrb[0].mxu0
      %v2429 = vadd.f32 0.0, %v2428
      %v2430 = vpop.f32.mrb[0].mxu0
      %v2431 = vpop.f32.mrb[0].mxu0
      %v2432 = vadd.f32 0.0, %v2431
      %v2433 = vpop.f32.mrb[0].mxu0
      %2434 = vdwg.mxu0
      %v2435 = vadd.f32 %v2341, %v2413
      %v2436 = vadd.f32 %v2342, %v2416
      %v2437 = vadd.f32 %v2343, %v2421
      %v2438 = vadd.f32 %v2344, %v2424
      %v2439 = vadd.f32 %v2345, %v2429
      %v2440 = vadd.f32 %v2346, %v2432
      %s2441 = scalar_lea.vmem %s722, 80
      %v2442 = vld [vmem:[%s2441] sm:$0xf]
      %v2443 = vld [vmem:[%s2441 + $0x4] sm:$0xf]
      %v2444 = vld [vmem:[%s2441 + $0x8] sm:$0xf]
      %v2445 = vld [vmem:[%s2441 + $0xc] sm:$0xf]
      %v2446 = vrot.slane %v1974, 2
      %v2447 = vrot.slane %v1976, 3
      %v2448 = vor.u32 %v2446, %v2447
      %v2449 = vrot.slane %v1985, 2
      %v2450 = vrot.slane %v1981, 3
      %v2451 = vor.u32 %v2449, %v2450
      %v2452 = vsel %vm1354, %v2448, %v2451
      %v2453 = vrot.slane %v1993, 2
      %v2454 = vrot.slane %v1989, 3
      %v2455 = vor.u32 %v2453, %v2454
      %v2456 = vsel %vm1354, %v2451, %v2455
      %v2461 = vunpack.c.l.b16 %v2442
      %v2462 = vunpack.c.l.b16 %v2443
      %v2463 = vunpack.c.l.b16 %v2444
      %v2464 = vunpack.c.l.b16 %v2445
      %v2465 = vpack.c.b16 %v2462, %v2461
      %v2466 = vpack.c.b16 %v2464, %v2463
      %v2470 = vsel %vm2008, %v2452, 0
      %v2473 = vsel %vm2008, %v2456, 0
      %v2476 = vsel %vm2008, %v2455, 0
      %2478 = vmatprep.subr.bf16.mxu0 0
      %2479 = vmatpush1.bf16.msra.mxu0 %v2465
      %2480 = vmatprep.subr.bf16.mxu0 0
      %2481 = vmatpush1.bf16.msra.mxu0 %v2466
      %2482 = vmatprep.subr.bf16.mxu0 0
      %2483 = vmatpush1.bf16.msra.mxu0 0
      %2484 = vmatprep.subr.bf16.mxu0 0
      %2485 = vmatpush1.bf16.msra.mxu0 0
      %2486 = vmatprep.subr.bf16.mxu0 0
      %2487 = vmatpush1.bf16.msra.mxu0 0
      %2488 = vmatprep.subr.bf16.mxu0 0
      %2489 = vmatpush1.bf16.msra.mxu0 0
      %2490 = vmatprep.subr.bf16.mxu0 0
      %2491 = vmatpush1.bf16.msra.mxu0 0
      %2492 = vmatprep.subr.bf16.mxu0 0
      %2493 = vmatpush1.bf16.msra.mxu0 0
      %2494 = vmatprep.subr.bf16.mxu0 0
      %2495 = vmatpush1.bf16.msra.mxu0 0
      %2496 = vmatprep.subr.bf16.mxu0 0
      %2497 = vmatpush1.bf16.msra.mxu0 0
      %2498 = vmatprep.subr.bf16.mxu0 0
      %2499 = vmatpush1.bf16.msra.mxu0 0
      %2500 = vmatprep.subr.bf16.mxu0 0
      %2501 = vmatpush1.bf16.msra.mxu0 0
      %2502 = vmatprep.subr.bf16.mxu0 0
      %2503 = vmatpush1.bf16.msra.mxu0 0
      %2504 = vmatprep.subr.bf16.mxu0 0
      %2505 = vmatpush1.bf16.msra.mxu0 0
      %2506 = vmatprep.subr.bf16.mxu0 0
      %2507 = vmatpush1.bf16.msra.mxu0 0
      %2508 = vmatprep.subr.bf16.mxu0 0
      %2509 = vmatpush1.bf16.msra.mxu0 0
      %2510 = vmatprep.mubr.bf16.mxu0 0
      %2511 = vmatmul.mubr.bf16.gmra.mrb[0].mxu0 %v2470
      %v2512 = vpop.f32.mrb[0].mxu0
      %v2513 = vadd.f32 0.0, %v2512
      %v2514 = vpop.f32.mrb[0].mxu0
      %v2515 = vpop.f32.mrb[0].mxu0
      %v2516 = vadd.f32 0.0, %v2515
      %v2517 = vpop.f32.mrb[0].mxu0
      %2518 = vmatprep.mubr.bf16.mxu0 0
      %2519 = vmatmul.mubr.bf16.gmra.mrb[0].mxu0 %v2473
      %v2520 = vpop.f32.mrb[0].mxu0
      %v2521 = vadd.f32 0.0, %v2520
      %v2522 = vpop.f32.mrb[0].mxu0
      %v2523 = vpop.f32.mrb[0].mxu0
      %v2524 = vadd.f32 0.0, %v2523
      %v2525 = vpop.f32.mrb[0].mxu0
      %2526 = vmatprep.mubr.bf16.mxu0 0
      %2527 = vmatmul.mubr.bf16.gmra.mrb[0].mxu0 %v2476
      %v2528 = vpop.f32.mrb[0].mxu0
      %v2529 = vadd.f32 0.0, %v2528
      %v2530 = vpop.f32.mrb[0].mxu0
      %v2531 = vpop.f32.mrb[0].mxu0
      %v2532 = vadd.f32 0.0, %v2531
      %v2533 = vpop.f32.mrb[0].mxu0
      %2534 = vdwg.mxu0
      %v2535 = vadd.f32 %v2435, %v2513
      %v2536 = vadd.f32 %v2436, %v2516
      %v2537 = vadd.f32 %v2437, %v2521
      %v2538 = vadd.f32 %v2438, %v2524
      %v2539 = vadd.f32 %v2439, %v2529
      %v2540 = vadd.f32 %v2440, %v2532
      %s2541 = scalar_lea.vmem %s722, 96
      %v2542 = vld [vmem:[%s2541] sm:$0xf]
      %v2543 = vld [vmem:[%s2541 + $0x4] sm:$0xf]
      %v2544 = vld [vmem:[%s2541 + $0x8] sm:$0xf]
      %v2545 = vld [vmem:[%s2541 + $0xc] sm:$0xf]
      %v2547 = vrot.slane %v1960, 3
      %v2548 = vrot.slane %v1961, 3
      %v2549 = vsel %vm1477, %v2547, %v2548
      %v2550 = vrot.slane %v1962, 3
      %v2551 = vsel %vm1477, %v2548, %v2550
      %v2552 = vrot.slane %v1963, 3
      %v2553 = vsel %vm1477, %v2550, %v2552
      %v2558 = vunpack.c.l.b16 %v2542
      %v2559 = vunpack.c.l.b16 %v2543
      %v2560 = vunpack.c.l.b16 %v2544
      %v2561 = vunpack.c.l.b16 %v2545
      %v2562 = vpack.c.b16 %v2559, %v2558
      %v2563 = vpack.c.b16 %v2561, %v2560
      %v2567 = vsel %vm2008, %v2549, 0
      %v2570 = vsel %vm2008, %v2551, 0
      %v2573 = vsel %vm2008, %v2553, 0
      %2575 = vmatprep.subr.bf16.mxu0 0
      %2576 = vmatpush1.bf16.msra.mxu0 %v2562
      %2577 = vmatprep.subr.bf16.mxu0 0
      %2578 = vmatpush1.bf16.msra.mxu0 %v2563
      %2579 = vmatprep.subr.bf16.mxu0 0
      %2580 = vmatpush1.bf16.msra.mxu0 0
      %2581 = vmatprep.subr.bf16.mxu0 0
      %2582 = vmatpush1.bf16.msra.mxu0 0
      %2583 = vmatprep.subr.bf16.mxu0 0
      %2584 = vmatpush1.bf16.msra.mxu0 0
      %2585 = vmatprep.subr.bf16.mxu0 0
      %2586 = vmatpush1.bf16.msra.mxu0 0
      %2587 = vmatprep.subr.bf16.mxu0 0
      %2588 = vmatpush1.bf16.msra.mxu0 0
      %2589 = vmatprep.subr.bf16.mxu0 0
      %2590 = vmatpush1.bf16.msra.mxu0 0
      %2591 = vmatprep.subr.bf16.mxu0 0
      %2592 = vmatpush1.bf16.msra.mxu0 0
      %2593 = vmatprep.subr.bf16.mxu0 0
      %2594 = vmatpush1.bf16.msra.mxu0 0
      %2595 = vmatprep.subr.bf16.mxu0 0
      %2596 = vmatpush1.bf16.msra.mxu0 0
      %2597 = vmatprep.subr.bf16.mxu0 0
      %2598 = vmatpush1.bf16.msra.mxu0 0
      %2599 = vmatprep.subr.bf16.mxu0 0
      %2600 = vmatpush1.bf16.msra.mxu0 0
      %2601 = vmatprep.subr.bf16.mxu0 0
      %2602 = vmatpush1.bf16.msra.mxu0 0
      %2603 = vmatprep.subr.bf16.mxu0 0
      %2604 = vmatpush1.bf16.msra.mxu0 0
      %2605 = vmatprep.subr.bf16.mxu0 0
      %2606 = vmatpush1.bf16.msra.mxu0 0
      %2607 = vmatprep.mubr.bf16.mxu0 0
      %2608 = vmatmul.mubr.bf16.gmra.mrb[0].mxu0 %v2567
      %v2609 = vpop.f32.mrb[0].mxu0
      %v2610 = vadd.f32 0.0, %v2609
      %v2611 = vpop.f32.mrb[0].mxu0
      %v2612 = vpop.f32.mrb[0].mxu0
      %v2613 = vadd.f32 0.0, %v2612
      %v2614 = vpop.f32.mrb[0].mxu0
      %2615 = vmatprep.mubr.bf16.mxu0 0
      %2616 = vmatmul.mubr.bf16.gmra.mrb[0].mxu0 %v2570
      %v2617 = vpop.f32.mrb[0].mxu0
      %v2618 = vadd.f32 0.0, %v2617
      %v2619 = vpop.f32.mrb[0].mxu0
      %v2620 = vpop.f32.mrb[0].mxu0
      %v2621 = vadd.f32 0.0, %v2620
      %v2622 = vpop.f32.mrb[0].mxu0
      %2623 = vmatprep.mubr.bf16.mxu0 0
      %2624 = vmatmul.mubr.bf16.gmra.mrb[0].mxu0 %v2573
      %v2625 = vpop.f32.mrb[0].mxu0
      %v2626 = vadd.f32 0.0, %v2625
      %v2627 = vpop.f32.mrb[0].mxu0
      %v2628 = vpop.f32.mrb[0].mxu0
      %v2629 = vadd.f32 0.0, %v2628
      %v2630 = vpop.f32.mrb[0].mxu0
      %2631 = vdwg.mxu0
      %v2632 = vadd.f32 %v2535, %v2610
      %v2633 = vadd.f32 %v2536, %v2613
      %v2634 = vadd.f32 %v2537, %v2618
      %v2635 = vadd.f32 %v2538, %v2621
      %v2636 = vadd.f32 %v2539, %v2626
      %v2637 = vadd.f32 %v2540, %v2629
      %s2638 = scalar_lea.vmem %s722, 112
      %v2639 = vld [vmem:[%s2638] sm:$0xf]
      %v2640 = vld [vmem:[%s2638 + $0x4] sm:$0xf]
      %v2641 = vld [vmem:[%s2638 + $0x8] sm:$0xf]
      %v2642 = vld [vmem:[%s2638 + $0xc] sm:$0xf]
      %v2643 = vrot.slane %v1974, 3
      %v2644 = vrot.slane %v1976, 4
      %v2645 = vor.u32 %v2643, %v2644
      %v2646 = vrot.slane %v1985, 3
      %v2647 = vrot.slane %v1981, 4
      %v2648 = vor.u32 %v2646, %v2647
      %v2649 = vsel %vm1590, %v2645, %v2648
      %v2650 = vrot.slane %v1993, 3
      %v2651 = vrot.slane %v1989, 4
      %v2652 = vor.u32 %v2650, %v2651
      %v2653 = vsel %vm1590, %v2648, %v2652
      %v2655 = vshrl.u32 %v1963, 16
      %v2657 = vrot.slane %v2655, 3
      %v2658 = vshll.u32 %v1963, 16
      %v2660 = vrot.slane %v2658, 4
      %v2661 = vor.u32 %v2657, %v2660
      %v2662 = vsel %vm1590, %v2652, %v2661
      %v2667 = vunpack.c.l.b16 %v2639
      %v2668 = vunpack.c.l.b16 %v2640
      %v2669 = vunpack.c.l.b16 %v2641
      %v2670 = vunpack.c.l.b16 %v2642
      %v2671 = vpack.c.b16 %v2668, %v2667
      %v2672 = vpack.c.b16 %v2670, %v2669
      %v2676 = vsel %vm2008, %v2649, 0
      %v2679 = vsel %vm2008, %v2653, 0
      %v2682 = vsel %vm2008, %v2662, 0
      %2684 = vmatprep.subr.bf16.mxu0 0
      %2685 = vmatpush1.bf16.msra.mxu0 %v2671
      %2686 = vmatprep.subr.bf16.mxu0 0
      %2687 = vmatpush1.bf16.msra.mxu0 %v2672
      %2688 = vmatprep.subr.bf16.mxu0 0
      %2689 = vmatpush1.bf16.msra.mxu0 0
      %2690 = vmatprep.subr.bf16.mxu0 0
      %2691 = vmatpush1.bf16.msra.mxu0 0
      %2692 = vmatprep.subr.bf16.mxu0 0
      %2693 = vmatpush1.bf16.msra.mxu0 0
      %2694 = vmatprep.subr.bf16.mxu0 0
      %2695 = vmatpush1.bf16.msra.mxu0 0
      %2696 = vmatprep.subr.bf16.mxu0 0
      %2697 = vmatpush1.bf16.msra.mxu0 0
      %2698 = vmatprep.subr.bf16.mxu0 0
      %2699 = vmatpush1.bf16.msra.mxu0 0
      %2700 = vmatprep.subr.bf16.mxu0 0
      %2701 = vmatpush1.bf16.msra.mxu0 0
      %2702 = vmatprep.subr.bf16.mxu0 0
      %2703 = vmatpush1.bf16.msra.mxu0 0
      %2704 = vmatprep.subr.bf16.mxu0 0
      %2705 = vmatpush1.bf16.msra.mxu0 0
      %2706 = vmatprep.subr.bf16.mxu0 0
      %2707 = vmatpush1.bf16.msra.mxu0 0
      %2708 = vmatprep.subr.bf16.mxu0 0
      %2709 = vmatpush1.bf16.msra.mxu0 0
      %2710 = vmatprep.subr.bf16.mxu0 0
      %2711 = vmatpush1.bf16.msra.mxu0 0
      %2712 = vmatprep.subr.bf16.mxu0 0
      %2713 = vmatpush1.bf16.msra.mxu0 0
      %2714 = vmatprep.subr.bf16.mxu0 0
      %2715 = vmatpush1.bf16.msra.mxu0 0
      %2716 = vmatprep.mubr.bf16.mxu0 0
      %2717 = vmatmul.mubr.bf16.gmra.mrb[0].mxu0 %v2676
      %v2718 = vpop.f32.mrb[0].mxu0
      %v2719 = vadd.f32 0.0, %v2718
      %v2720 = vpop.f32.mrb[0].mxu0
      %v2721 = vpop.f32.mrb[0].mxu0
      %v2722 = vadd.f32 0.0, %v2721
      %v2723 = vpop.f32.mrb[0].mxu0
      %2724 = vmatprep.mubr.bf16.mxu0 0
      %2725 = vmatmul.mubr.bf16.gmra.mrb[0].mxu0 %v2679
      %v2726 = vpop.f32.mrb[0].mxu0
      %v2727 = vadd.f32 0.0, %v2726
      %v2728 = vpop.f32.mrb[0].mxu0
      %v2729 = vpop.f32.mrb[0].mxu0
      %v2730 = vadd.f32 0.0, %v2729
      %v2731 = vpop.f32.mrb[0].mxu0
      %2732 = vmatprep.mubr.bf16.mxu0 0
      %2733 = vmatmul.mubr.bf16.gmra.mrb[0].mxu0 %v2682
      %v2734 = vpop.f32.mrb[0].mxu0
      %v2735 = vadd.f32 0.0, %v2734
      %v2736 = vpop.f32.mrb[0].mxu0
      %v2737 = vpop.f32.mrb[0].mxu0
      %v2738 = vadd.f32 0.0, %v2737
      %v2739 = vpop.f32.mrb[0].mxu0
      %2740 = vdwg.mxu0
      %v2741 = vadd.f32 %v2632, %v2719
      %v2742 = vadd.f32 %v2633, %v2722
      %v2743 = vadd.f32 %v2634, %v2727
      %v2744 = vadd.f32 %v2635, %v2730
      %v2745 = vadd.f32 %v2636, %v2735
      %v2746 = vadd.f32 %v2637, %v2738
      %v2747 = vld [vmem:[%s725] sm:$0x1]
      %v2749 = vlaneseq
      %v2750 = vshrl.u32 %v2749, 7
      %v2751 = vsub.s32 0, %v2750
      %v2752 = vrot.slane %v2747, %v2751
      %v2754 = vadd.f32 %v2741, %v2752
      %v2755 = vadd.f32 %v2742, %v2752
      %v2756 = vadd.f32 %v2743, %v2752
      %v2757 = vadd.f32 %v2744, %v2752
      %v2758 = vadd.f32 %v2745, %v2752
      %v2759 = vadd.f32 %v2746, %v2752
      %v2760 = vmax.f32 %v2754, 0.0
      %v2761 = vmax.f32 %v2755, 0.0
      %v2762 = vmax.f32 %v2756, 0.0
      %v2763 = vmax.f32 %v2757, 0.0
      %v2764 = vmax.f32 %v2758, 0.0
      %v2765 = vmax.f32 %v2759, 0.0
      %v2766 = vpack.c.bf16 %v2761, %v2760
      %v2767 = vpack.c.bf16 %v2763, %v2762
      %v2768 = vpack.c.bf16 %v2765, %v2764
      %v2769 = vld [vmem:[%s9] sm:$0xf]
      %v2770 = vld [vmem:[%s9 + $0x4] sm:$0xf]
      %v2771 = vld [vmem:[%s9 + $0x8] sm:$0xf]
      %v2772 = vld [vmem:[%s9 + $0xc] sm:$0xf]
      %v2773 = vld [vmem:[%s9 + $0x10] sm:$0x3]
      %v2779 = vunpack.c.l.b16 %v2769
      %v2780 = vunpack.c.l.b16 %v2770
      %v2781 = vunpack.c.l.b16 %v2771
      %v2782 = vunpack.c.l.b16 %v2772
      %v2783 = vunpack.c.l.b16 %v2773
      %v2784 = vpack.c.b16 %v2780, %v2779
      %v2785 = vpack.c.b16 %v2782, %v2781
      %v2786 = vpack.c.b16 %v2783, %v2783
      %vm2787 = vcmask 351232
      %v2789 = vsel %vm2787, %v2784, 0
      %v2792 = vsel %vm2787, %v2785, 0
      %v2795 = vsel %vm2787, %v2786, 0
      %vm2797 = vcmask 1045504
      %v2798 = vsel %vm1782, 4294967295, 65535
      %v2799 = vsel %vm2797, %v2798, 0
      %v2801 = vand.u32 %v2768, %v2799
      %2803 = vmatprep.subr.bf16.mxu0 0
      %2804 = vmatpush1.bf16.msra.mxu0 %v2766
      %2805 = vmatprep.subr.bf16.mxu0 0
      %2806 = vmatpush1.bf16.msra.mxu0 %v2767
      %2807 = vmatprep.subr.bf16.mxu0 0
      %2808 = vmatpush1.bf16.msra.mxu0 %v2801
      %2809 = vmatprep.subr.bf16.mxu0 0
      %2810 = vmatpush1.bf16.msra.mxu0 0
      %2811 = vmatprep.subr.bf16.mxu0 0
      %2812 = vmatpush1.bf16.msra.mxu0 0
      %2813 = vmatprep.subr.bf16.mxu0 0
      %2814 = vmatpush1.bf16.msra.mxu0 0
      %2815 = vmatprep.subr.bf16.mxu0 0
      %2816 = vmatpush1.bf16.msra.mxu0 0
      %2817 = vmatprep.subr.bf16.mxu0 0
      %2818 = vmatpush1.bf16.msra.mxu0 0
      %2819 = vmatprep.subr.bf16.mxu0 0
      %2820 = vmatpush1.bf16.msra.mxu0 0
      %2821 = vmatprep.subr.bf16.mxu0 0
      %2822 = vmatpush1.bf16.msra.mxu0 0
      %2823 = vmatprep.subr.bf16.mxu0 0
      %2824 = vmatpush1.bf16.msra.mxu0 0
      %2825 = vmatprep.subr.bf16.mxu0 0
      %2826 = vmatpush1.bf16.msra.mxu0 0
      %2827 = vmatprep.subr.bf16.mxu0 0
      %2828 = vmatpush1.bf16.msra.mxu0 0
      %2829 = vmatprep.subr.bf16.mxu0 0
      %2830 = vmatpush1.bf16.msra.mxu0 0
      %2831 = vmatprep.subr.bf16.mxu0 0
      %2832 = vmatpush1.bf16.msra.mxu0 0
      %2833 = vmatprep.subr.bf16.mxu0 0
      %2834 = vmatpush1.bf16.msra.mxu0 0
      %2835 = vmatprep.mubr.bf16.mxu0 0
      %2836 = vmatmul.mubr.bf16.gmra.mrb[0].mxu0 %v2789
      %v2837 = vpop.f32.mrb[0].mxu0
      %v2838 = vadd.f32 0.0, %v2837
      %v2839 = vpop.f32.mrb[0].mxu0
      %v2840 = vpop.f32.mrb[0].mxu0
      %v2841 = vadd.f32 0.0, %v2840
      %v2842 = vpop.f32.mrb[0].mxu0
      %2843 = vmatprep.mubr.bf16.mxu0 0
      %2844 = vmatmul.mubr.bf16.gmra.mrb[0].mxu0 %v2792
      %v2845 = vpop.f32.mrb[0].mxu0
      %v2846 = vadd.f32 0.0, %v2845
      %v2847 = vpop.f32.mrb[0].mxu0
      %v2848 = vpop.f32.mrb[0].mxu0
      %v2849 = vadd.f32 0.0, %v2848
      %v2850 = vpop.f32.mrb[0].mxu0
      %2851 = vmatprep.mubr.bf16.mxu0 0
      %2852 = vmatmul.mubr.bf16.gmra.mrb[0].mxu0 %v2795
      %v2853 = vpop.f32.mrb[0].mxu0
      %v2854 = vadd.f32 0.0, %v2853
      %v2855 = vpop.f32.mrb[0].mxu0
      %v2856 = vpop.f32.mrb[0].mxu0
      %v2857 = vpop.f32.mrb[0].mxu0
      %2858 = vdwg.mxu0
      %v2859 = vld [vmem:[%s10] sm:$0xf]
      %v2860 = vld [vmem:[%s10 + $0x4] sm:$0xf]
      %v2861 = vld [vmem:[%s10 + $0x8] sm:$0xf]
      %v2862 = vld [vmem:[%s10 + $0xc] sm:$0xf]
      %v2863 = vld [vmem:[%s10 + $0x10] sm:$0x3]
      %v2869 = vunpack.c.l.b16 %v2859
      %v2870 = vunpack.c.l.b16 %v2860
      %v2871 = vunpack.c.l.b16 %v2861
      %v2872 = vunpack.c.l.b16 %v2862
      %v2873 = vunpack.c.l.b16 %v2863
      %v2874 = vpack.c.b16 %v2870, %v2869
      %v2875 = vpack.c.b16 %v2872, %v2871
      %v2876 = vpack.c.b16 %v2873, %v2873
      %v2878 = vsel %vm2787, %v2874, 0
      %v2881 = vsel %vm2787, %v2875, 0
      %v2884 = vsel %vm2787, %v2876, 0
      %2886 = vmatprep.subr.bf16.mxu0 0
      %2887 = vmatpush1.bf16.msra.mxu0 %v2766
      %2888 = vmatprep.subr.bf16.mxu0 0
      %2889 = vmatpush1.bf16.msra.mxu0 %v2767
      %2890 = vmatprep.subr.bf16.mxu0 0
      %2891 = vmatpush1.bf16.msra.mxu0 %v2801
      %2892 = vmatprep.subr.bf16.mxu0 0
      %2893 = vmatpush1.bf16.msra.mxu0 0
      %2894 = vmatprep.subr.bf16.mxu0 0
      %2895 = vmatpush1.bf16.msra.mxu0 0
      %2896 = vmatprep.subr.bf16.mxu0 0
      %2897 = vmatpush1.bf16.msra.mxu0 0
      %2898 = vmatprep.subr.bf16.mxu0 0
      %2899 = vmatpush1.bf16.msra.mxu0 0
      %2900 = vmatprep.subr.bf16.mxu0 0
      %2901 = vmatpush1.bf16.msra.mxu0 0
      %2902 = vmatprep.subr.bf16.mxu0 0
      %2903 = vmatpush1.bf16.msra.mxu0 0
      %2904 = vmatprep.subr.bf16.mxu0 0
      %2905 = vmatpush1.bf16.msra.mxu0 0
      %2906 = vmatprep.subr.bf16.mxu0 0
      %2907 = vmatpush1.bf16.msra.mxu0 0
      %2908 = vmatprep.subr.bf16.mxu0 0
      %2909 = vmatpush1.bf16.msra.mxu0 0
      %2910 = vmatprep.subr.bf16.mxu0 0
      %2911 = vmatpush1.bf16.msra.mxu0 0
      %2912 = vmatprep.subr.bf16.mxu0 0
      %2913 = vmatpush1.bf16.msra.mxu0 0
      %2914 = vmatprep.subr.bf16.mxu0 0
      %2915 = vmatpush1.bf16.msra.mxu0 0
      %2916 = vmatprep.subr.bf16.mxu0 0
      %2917 = vmatpush1.bf16.msra.mxu0 0
      %2918 = vmatprep.mubr.bf16.mxu0 0
      %2919 = vmatmul.mubr.bf16.gmra.mrb[0].mxu0 %v2878
      %v2920 = vpop.f32.mrb[0].mxu0
      %v2921 = vadd.f32 0.0, %v2920
      %v2922 = vpop.f32.mrb[0].mxu0
      %v2923 = vpop.f32.mrb[0].mxu0
      %v2924 = vadd.f32 0.0, %v2923
      %v2925 = vpop.f32.mrb[0].mxu0
      %2926 = vmatprep.mubr.bf16.mxu0 0
      %2927 = vmatmul.mubr.bf16.gmra.mrb[0].mxu0 %v2881
      %v2928 = vpop.f32.mrb[0].mxu0
      %v2929 = vadd.f32 0.0, %v2928
      %v2930 = vpop.f32.mrb[0].mxu0
      %v2931 = vpop.f32.mrb[0].mxu0
      %v2932 = vadd.f32 0.0, %v2931
      %v2933 = vpop.f32.mrb[0].mxu0
      %2934 = vmatprep.mubr.bf16.mxu0 0
      %2935 = vmatmul.mubr.bf16.gmra.mrb[0].mxu0 %v2884
      %v2936 = vpop.f32.mrb[0].mxu0
      %v2937 = vadd.f32 0.0, %v2936
      %v2938 = vpop.f32.mrb[0].mxu0
      %v2939 = vpop.f32.mrb[0].mxu0
      %v2940 = vpop.f32.mrb[0].mxu0
      %2941 = vdwg.mxu0
      %v2942 = vmax.f32 %v2838, %v2921
      %v2943 = vmax.f32 %v2841, %v2924
      %v2944 = vmax.f32 %v2846, %v2929
      %v2945 = vmax.f32 %v2849, %v2932
      %v2946 = vmax.f32 %v2854, %v2937
      %v2947 = vpack.c.bf16 %v2943, %v2942
      %v2948 = vpack.c.bf16 %v2945, %v2944
      %v2949 = vpack.c.bf16 %v2946, %v2946
      %v2950 = vld [vmem:[%s730] sm:$0xf]
      %v2951 = vld [vmem:[%s730 + $0x4] sm:$0xf]
      %v2952 = vld [vmem:[%s730 + $0x8] sm:$0xf]
      %v2953 = vld [vmem:[%s730 + $0xc] sm:$0xf]
      %v2954 = vld [vmem:[%s730 + $0x10] sm:$0xf]
      %v2955 = vld [vmem:[%s730 + $0x14] sm:$0xf]
      %v2956 = vld [vmem:[%s730 + $0x18] sm:$0xf]
      %v2957 = vld [vmem:[%s730 + $0x1c] sm:$0xf]
      %s2958 = scalar_lea.vmem %s730, 32
      %v2959 = vld [vmem:[%s2958] sm:$0xf]
      %v2960 = vld [vmem:[%s2958 + $0x4] sm:$0xf]
      %v2961 = vld [vmem:[%s2958 + $0x8] sm:$0xf]
      %v2962 = vld [vmem:[%s2958 + $0xc] sm:$0xf]
      %v2963 = vld [vmem:[%s2958 + $0x10] sm:$0xf]
      %v2964 = vld [vmem:[%s2958 + $0x14] sm:$0xf]
      %v2965 = vld [vmem:[%s2958 + $0x18] sm:$0xf]
      %v2966 = vld [vmem:[%s2958 + $0x1c] sm:$0xf]
      %v2968 = vshrl.u32 %v2947, 16
      %v2970 = vshll.u32 %v2947, 16
      %v2972 = vrot.slane %v2970, 1
      %v2973 = vor.u32 %v2968, %v2972
      %v2975 = vshll.u32 %v2948, 16
      %v2977 = vrot.slane %v2975, 1
      %v2978 = vsel %vm779, %v2973, %v2977
      %v2979 = vshrl.u32 %v2948, 16
      %v2981 = vor.u32 %v2979, %v2977
      %v2990 = vunpack.c.l.b16 %v2959
      %v2991 = vunpack.c.l.b16 %v2960
      %v2992 = vunpack.c.l.b16 %v2961
      %v2993 = vunpack.c.l.b16 %v2962
      %v2994 = vunpack.c.l.b16 %v2963
      %v2995 = vunpack.c.l.b16 %v2964
      %v2996 = vunpack.c.l.b16 %v2965
      %v2997 = vunpack.c.l.b16 %v2966
      %v2998 = vpack.c.b16 %v2991, %v2990
      %v2999 = vpack.c.b16 %v2993, %v2992
      %v3000 = vpack.c.b16 %v2995, %v2994
      %v3001 = vpack.c.b16 %v2997, %v2996
      %vm3006 = vcmask 523264
      %v3008 = vsel %vm3006, %v2978, 0
      %v3011 = vsel %vm3006, %v2981, 0
      %3013 = vmatprep.subr.bf16.mxu0 0
      %3014 = vmatpush1.bf16.msra.mxu0 %v2998
      %3015 = vmatprep.subr.bf16.mxu0 0
      %3016 = vmatpush1.bf16.msra.mxu0 %v2999
      %3017 = vmatprep.subr.bf16.mxu0 0
      %3018 = vmatpush1.bf16.msra.mxu0 %v3000
      %3019 = vmatprep.subr.bf16.mxu0 0
      %3020 = vmatpush1.bf16.msra.mxu0 %v3001
      %3021 = vmatprep.subr.bf16.mxu0 0
      %3022 = vmatpush1.bf16.msra.mxu0 0
      %3023 = vmatprep.subr.bf16.mxu0 0
      %3024 = vmatpush1.bf16.msra.mxu0 0
      %3025 = vmatprep.subr.bf16.mxu0 0
      %3026 = vmatpush1.bf16.msra.mxu0 0
      %3027 = vmatprep.subr.bf16.mxu0 0
      %3028 = vmatpush1.bf16.msra.mxu0 0
      %3029 = vmatprep.subr.bf16.mxu0 0
      %3030 = vmatpush1.bf16.msra.mxu0 0
      %3031 = vmatprep.subr.bf16.mxu0 0
      %3032 = vmatpush1.bf16.msra.mxu0 0
      %3033 = vmatprep.subr.bf16.mxu0 0
      %3034 = vmatpush1.bf16.msra.mxu0 0
      %3035 = vmatprep.subr.bf16.mxu0 0
      %3036 = vmatpush1.bf16.msra.mxu0 0
      %3037 = vmatprep.subr.bf16.mxu0 0
      %3038 = vmatpush1.bf16.msra.mxu0 0
      %3039 = vmatprep.subr.bf16.mxu0 0
      %3040 = vmatpush1.bf16.msra.mxu0 0
      %3041 = vmatprep.subr.bf16.mxu0 0
      %3042 = vmatpush1.bf16.msra.mxu0 0
      %3043 = vmatprep.subr.bf16.mxu0 0
      %3044 = vmatpush1.bf16.msra.mxu0 0
      %3045 = vmatprep.mubr.bf16.mxu0 0
      %3046 = vmatmul.mubr.bf16.gmra.mrb[0].mxu0 %v3008
      %v3047 = vpop.f32.mrb[0].mxu0
      %v3048 = vadd.f32 0.0, %v3047
      %v3049 = vpop.f32.mrb[0].mxu0
      %v3050 = vpop.f32.mrb[0].mxu0
      %v3051 = vadd.f32 0.0, %v3050
      %v3052 = vpop.f32.mrb[0].mxu0
      %3053 = vmatprep.mubr.bf16.mxu0 0
      %3054 = vmatmul.mubr.bf16.gmra.mrb[0].mxu0 %v3011
      %v3055 = vpop.f32.mrb[0].mxu0
      %v3056 = vadd.f32 0.0, %v3055
      %v3057 = vpop.f32.mrb[0].mxu0
      %v3058 = vpop.f32.mrb[0].mxu0
      %v3059 = vadd.f32 0.0, %v3058
      %v3060 = vpop.f32.mrb[0].mxu0
      %3061 = vdwg.mxu0
      %v3070 = vunpack.c.l.b16 %v2950
      %v3071 = vunpack.c.l.b16 %v2951
      %v3072 = vunpack.c.l.b16 %v2952
      %v3073 = vunpack.c.l.b16 %v2953
      %v3074 = vunpack.c.l.b16 %v2954
      %v3075 = vunpack.c.l.b16 %v2955
      %v3076 = vunpack.c.l.b16 %v2956
      %v3077 = vunpack.c.l.b16 %v2957
      %v3078 = vpack.c.b16 %v3071, %v3070
      %v3079 = vpack.c.b16 %v3073, %v3072
      %v3080 = vpack.c.b16 %v3075, %v3074
      %v3081 = vpack.c.b16 %v3077, %v3076
      %v3086 = vsel %vm3006, %v2947, 0
      %v3088 = vsel %vm3006, %v2948, 0
      %3090 = vmatprep.subr.bf16.mxu0 0
      %3091 = vmatpush1.bf16.msra.mxu0 %v3078
      %3092 = vmatprep.subr.bf16.mxu0 0
      %3093 = vmatpush1.bf16.msra.mxu0 %v3079
      %3094 = vmatprep.subr.bf16.mxu0 0
      %3095 = vmatpush1.bf16.msra.mxu0 %v3080
      %3096 = vmatprep.subr.bf16.mxu0 0
      %3097 = vmatpush1.bf16.msra.mxu0 %v3081
      %3098 = vmatprep.subr.bf16.mxu0 0
      %3099 = vmatpush1.bf16.msra.mxu0 0
      %3100 = vmatprep.subr.bf16.mxu0 0
      %3101 = vmatpush1.bf16.msra.mxu0 0
      %3102 = vmatprep.subr.bf16.mxu0 0
      %3103 = vmatpush1.bf16.msra.mxu0 0
      %3104 = vmatprep.subr.bf16.mxu0 0
      %3105 = vmatpush1.bf16.msra.mxu0 0
      %3106 = vmatprep.subr.bf16.mxu0 0
      %3107 = vmatpush1.bf16.msra.mxu0 0
      %3108 = vmatprep.subr.bf16.mxu0 0
      %3109 = vmatpush1.bf16.msra.mxu0 0
      %3110 = vmatprep.subr.bf16.mxu0 0
      %3111 = vmatpush1.bf16.msra.mxu0 0
      %3112 = vmatprep.subr.bf16.mxu0 0
      %3113 = vmatpush1.bf16.msra.mxu0 0
      %3114 = vmatprep.subr.bf16.mxu0 0
      %3115 = vmatpush1.bf16.msra.mxu0 0
      %3116 = vmatprep.subr.bf16.mxu0 0
      %3117 = vmatpush1.bf16.msra.mxu0 0
      %3118 = vmatprep.subr.bf16.mxu0 0
      %3119 = vmatpush1.bf16.msra.mxu0 0
      %3120 = vmatprep.subr.bf16.mxu0 0
      %3121 = vmatpush1.bf16.msra.mxu0 0
      %3122 = vmatprep.mubr.bf16.mxu0 0
      %3123 = vmatmul.mubr.bf16.gmra.mrb[0].mxu0 %v3086
      %v3124 = vpop.f32.mrb[0].mxu0
      %v3125 = vadd.f32 %v3048, %v3124
      %v3126 = vpop.f32.mrb[0].mxu0
      %v3127 = vpop.f32.mrb[0].mxu0
      %v3128 = vadd.f32 %v3051, %v3127
      %v3129 = vpop.f32.mrb[0].mxu0
      %3130 = vmatprep.mubr.bf16.mxu0 0
      %3131 = vmatmul.mubr.bf16.gmra.mrb[0].mxu0 %v3088
      %v3132 = vpop.f32.mrb[0].mxu0
      %v3133 = vadd.f32 %v3056, %v3132
      %v3134 = vpop.f32.mrb[0].mxu0
      %v3135 = vpop.f32.mrb[0].mxu0
      %v3136 = vadd.f32 %v3059, %v3135
      %v3137 = vpop.f32.mrb[0].mxu0
      %3138 = vdwg.mxu0
      %s3139 = scalar_lea.vmem %s730, 64
      %v3140 = vld [vmem:[%s3139] sm:$0xf]
      %v3141 = vld [vmem:[%s3139 + $0x4] sm:$0xf]
      %v3142 = vld [vmem:[%s3139 + $0x8] sm:$0xf]
      %v3143 = vld [vmem:[%s3139 + $0xc] sm:$0xf]
      %v3144 = vld [vmem:[%s3139 + $0x10] sm:$0xf]
      %v3145 = vld [vmem:[%s3139 + $0x14] sm:$0xf]
      %v3146 = vld [vmem:[%s3139 + $0x18] sm:$0xf]
      %v3147 = vld [vmem:[%s3139 + $0x1c] sm:$0xf]
      %v3150 = vrot.slane %v2947, 1
      %v3151 = vrot.slane %v2948, 1
      %v3152 = vsel %vm1005, %v3150, %v3151
      %v3161 = vunpack.c.l.b16 %v3140
      %v3162 = vunpack.c.l.b16 %v3141
      %v3163 = vunpack.c.l.b16 %v3142
      %v3164 = vunpack.c.l.b16 %v3143
      %v3165 = vunpack.c.l.b16 %v3144
      %v3166 = vunpack.c.l.b16 %v3145
      %v3167 = vunpack.c.l.b16 %v3146
      %v3168 = vunpack.c.l.b16 %v3147
      %v3169 = vpack.c.b16 %v3162, %v3161
      %v3170 = vpack.c.b16 %v3164, %v3163
      %v3171 = vpack.c.b16 %v3166, %v3165
      %v3172 = vpack.c.b16 %v3168, %v3167
      %v3178 = vsel %vm3006, %v3152, 0
      %v3181 = vsel %vm3006, %v3151, 0
      %3183 = vmatprep.subr.bf16.mxu0 0
      %3184 = vmatpush1.bf16.msra.mxu0 %v3169
      %3185 = vmatprep.subr.bf16.mxu0 0
      %3186 = vmatpush1.bf16.msra.mxu0 %v3170
      %3187 = vmatprep.subr.bf16.mxu0 0
      %3188 = vmatpush1.bf16.msra.mxu0 %v3171
      %3189 = vmatprep.subr.bf16.mxu0 0
      %3190 = vmatpush1.bf16.msra.mxu0 %v3172
      %3191 = vmatprep.subr.bf16.mxu0 0
      %3192 = vmatpush1.bf16.msra.mxu0 0
      %3193 = vmatprep.subr.bf16.mxu0 0
      %3194 = vmatpush1.bf16.msra.mxu0 0
      %3195 = vmatprep.subr.bf16.mxu0 0
      %3196 = vmatpush1.bf16.msra.mxu0 0
      %3197 = vmatprep.subr.bf16.mxu0 0
      %3198 = vmatpush1.bf16.msra.mxu0 0
      %3199 = vmatprep.subr.bf16.mxu0 0
      %3200 = vmatpush1.bf16.msra.mxu0 0
      %3201 = vmatprep.subr.bf16.mxu0 0
      %3202 = vmatpush1.bf16.msra.mxu0 0
      %3203 = vmatprep.subr.bf16.mxu0 0
      %3204 = vmatpush1.bf16.msra.mxu0 0
      %3205 = vmatprep.subr.bf16.mxu0 0
      %3206 = vmatpush1.bf16.msra.mxu0 0
      %3207 = vmatprep.subr.bf16.mxu0 0
      %3208 = vmatpush1.bf16.msra.mxu0 0
      %3209 = vmatprep.subr.bf16.mxu0 0
      %3210 = vmatpush1.bf16.msra.mxu0 0
      %3211 = vmatprep.subr.bf16.mxu0 0
      %3212 = vmatpush1.bf16.msra.mxu0 0
      %3213 = vmatprep.subr.bf16.mxu0 0
      %3214 = vmatpush1.bf16.msra.mxu0 0
      %3215 = vmatprep.mubr.bf16.mxu0 0
      %3216 = vmatmul.mubr.bf16.gmra.mrb[0].mxu0 %v3178
      %v3217 = vpop.f32.mrb[0].mxu0
      %v3218 = vadd.f32 0.0, %v3217
      %v3219 = vpop.f32.mrb[0].mxu0
      %v3220 = vpop.f32.mrb[0].mxu0
      %v3221 = vadd.f32 0.0, %v3220
      %v3222 = vpop.f32.mrb[0].mxu0
      %3223 = vmatprep.mubr.bf16.mxu0 0
      %3224 = vmatmul.mubr.bf16.gmra.mrb[0].mxu0 %v3181
      %v3225 = vpop.f32.mrb[0].mxu0
      %v3226 = vadd.f32 0.0, %v3225
      %v3227 = vpop.f32.mrb[0].mxu0
      %v3228 = vpop.f32.mrb[0].mxu0
      %v3229 = vadd.f32 0.0, %v3228
      %v3230 = vpop.f32.mrb[0].mxu0
      %3231 = vdwg.mxu0
      %v3232 = vadd.f32 %v3125, %v3218
      %v3233 = vadd.f32 %v3128, %v3221
      %v3234 = vadd.f32 %v3133, %v3226
      %v3235 = vadd.f32 %v3136, %v3229
      %s3236 = scalar_lea.vmem %s730, 96
      %v3237 = vld [vmem:[%s3236] sm:$0xf]
      %v3238 = vld [vmem:[%s3236 + $0x4] sm:$0xf]
      %v3239 = vld [vmem:[%s3236 + $0x8] sm:$0xf]
      %v3240 = vld [vmem:[%s3236 + $0xc] sm:$0xf]
      %v3241 = vld [vmem:[%s3236 + $0x10] sm:$0xf]
      %v3242 = vld [vmem:[%s3236 + $0x14] sm:$0xf]
      %v3243 = vld [vmem:[%s3236 + $0x18] sm:$0xf]
      %v3244 = vld [vmem:[%s3236 + $0x1c] sm:$0xf]
      %v3245 = vrot.slane %v2968, 1
      %v3246 = vrot.slane %v2970, 2
      %v3247 = vor.u32 %v3245, %v3246
      %v3248 = vrot.slane %v2979, 1
      %v3249 = vrot.slane %v2975, 2
      %v3250 = vor.u32 %v3248, %v3249
      %v3251 = vsel %vm1118, %v3247, %v3250
      %v3260 = vunpack.c.l.b16 %v3237
      %v3261 = vunpack.c.l.b16 %v3238
      %v3262 = vunpack.c.l.b16 %v3239
      %v3263 = vunpack.c.l.b16 %v3240
      %v3264 = vunpack.c.l.b16 %v3241
      %v3265 = vunpack.c.l.b16 %v3242
      %v3266 = vunpack.c.l.b16 %v3243
      %v3267 = vunpack.c.l.b16 %v3244
      %v3268 = vpack.c.b16 %v3261, %v3260
      %v3269 = vpack.c.b16 %v3263, %v3262
      %v3270 = vpack.c.b16 %v3265, %v3264
      %v3271 = vpack.c.b16 %v3267, %v3266
      %v3277 = vsel %vm3006, %v3251, 0
      %v3280 = vsel %vm3006, %v3250, 0
      %3282 = vmatprep.subr.bf16.mxu0 0
      %3283 = vmatpush1.bf16.msra.mxu0 %v3268
      %3284 = vmatprep.subr.bf16.mxu0 0
      %3285 = vmatpush1.bf16.msra.mxu0 %v3269
      %3286 = vmatprep.subr.bf16.mxu0 0
      %3287 = vmatpush1.bf16.msra.mxu0 %v3270
      %3288 = vmatprep.subr.bf16.mxu0 0
      %3289 = vmatpush1.bf16.msra.mxu0 %v3271
      %3290 = vmatprep.subr.bf16.mxu0 0
      %3291 = vmatpush1.bf16.msra.mxu0 0
      %3292 = vmatprep.subr.bf16.mxu0 0
      %3293 = vmatpush1.bf16.msra.mxu0 0
      %3294 = vmatprep.subr.bf16.mxu0 0
      %3295 = vmatpush1.bf16.msra.mxu0 0
      %3296 = vmatprep.subr.bf16.mxu0 0
      %3297 = vmatpush1.bf16.msra.mxu0 0
      %3298 = vmatprep.subr.bf16.mxu0 0
      %3299 = vmatpush1.bf16.msra.mxu0 0
      %3300 = vmatprep.subr.bf16.mxu0 0
      %3301 = vmatpush1.bf16.msra.mxu0 0
      %3302 = vmatprep.subr.bf16.mxu0 0
      %3303 = vmatpush1.bf16.msra.mxu0 0
      %3304 = vmatprep.subr.bf16.mxu0 0
      %3305 = vmatpush1.bf16.msra.mxu0 0
      %3306 = vmatprep.subr.bf16.mxu0 0
      %3307 = vmatpush1.bf16.msra.mxu0 0
      %3308 = vmatprep.subr.bf16.mxu0 0
      %3309 = vmatpush1.bf16.msra.mxu0 0
      %3310 = vmatprep.subr.bf16.mxu0 0
      %3311 = vmatpush1.bf16.msra.mxu0 0
      %3312 = vmatprep.subr.bf16.mxu0 0
      %3313 = vmatpush1.bf16.msra.mxu0 0
      %3314 = vmatprep.mubr.bf16.mxu0 0
      %3315 = vmatmul.mubr.bf16.gmra.mrb[0].mxu0 %v3277
      %v3316 = vpop.f32.mrb[0].mxu0
      %v3317 = vadd.f32 0.0, %v3316
      %v3318 = vpop.f32.mrb[0].mxu0
      %v3319 = vpop.f32.mrb[0].mxu0
      %v3320 = vadd.f32 0.0, %v3319
      %v3321 = vpop.f32.mrb[0].mxu0
      %3322 = vmatprep.mubr.bf16.mxu0 0
      %3323 = vmatmul.mubr.bf16.gmra.mrb[0].mxu0 %v3280
      %v3324 = vpop.f32.mrb[0].mxu0
      %v3325 = vadd.f32 0.0, %v3324
      %v3326 = vpop.f32.mrb[0].mxu0
      %v3327 = vpop.f32.mrb[0].mxu0
      %v3328 = vadd.f32 0.0, %v3327
      %v3329 = vpop.f32.mrb[0].mxu0
      %3330 = vdwg.mxu0
      %v3331 = vadd.f32 %v3232, %v3317
      %v3332 = vadd.f32 %v3233, %v3320
      %v3333 = vadd.f32 %v3234, %v3325
      %v3334 = vadd.f32 %v3235, %v3328
      %s3335 = scalar_lea.vmem %s730, 128
      %v3336 = vld [vmem:[%s3335] sm:$0xf]
      %v3337 = vld [vmem:[%s3335 + $0x4] sm:$0xf]
      %v3338 = vld [vmem:[%s3335 + $0x8] sm:$0xf]
      %v3339 = vld [vmem:[%s3335 + $0xc] sm:$0xf]
      %v3340 = vld [vmem:[%s3335 + $0x10] sm:$0xf]
      %v3341 = vld [vmem:[%s3335 + $0x14] sm:$0xf]
      %v3342 = vld [vmem:[%s3335 + $0x18] sm:$0xf]
      %v3343 = vld [vmem:[%s3335 + $0x1c] sm:$0xf]
      %v3345 = vrot.slane %v2947, 2
      %v3346 = vrot.slane %v2948, 2
      %v3347 = vsel %vm1241, %v3345, %v3346
      %v3348 = vrot.slane %v2949, 2
      %v3349 = vsel %vm1241, %v3346, %v3348
      %v3358 = vunpack.c.l.b16 %v3336
      %v3359 = vunpack.c.l.b16 %v3337
      %v3360 = vunpack.c.l.b16 %v3338
      %v3361 = vunpack.c.l.b16 %v3339
      %v3362 = vunpack.c.l.b16 %v3340
      %v3363 = vunpack.c.l.b16 %v3341
      %v3364 = vunpack.c.l.b16 %v3342
      %v3365 = vunpack.c.l.b16 %v3343
      %v3366 = vpack.c.b16 %v3359, %v3358
      %v3367 = vpack.c.b16 %v3361, %v3360
      %v3368 = vpack.c.b16 %v3363, %v3362
      %v3369 = vpack.c.b16 %v3365, %v3364
      %v3375 = vsel %vm3006, %v3347, 0
      %v3378 = vsel %vm3006, %v3349, 0
      %3380 = vmatprep.subr.bf16.mxu0 0
      %3381 = vmatpush1.bf16.msra.mxu0 %v3366
      %3382 = vmatprep.subr.bf16.mxu0 0
      %3383 = vmatpush1.bf16.msra.mxu0 %v3367
      %3384 = vmatprep.subr.bf16.mxu0 0
      %3385 = vmatpush1.bf16.msra.mxu0 %v3368
      %3386 = vmatprep.subr.bf16.mxu0 0
      %3387 = vmatpush1.bf16.msra.mxu0 %v3369
      %3388 = vmatprep.subr.bf16.mxu0 0
      %3389 = vmatpush1.bf16.msra.mxu0 0
      %3390 = vmatprep.subr.bf16.mxu0 0
      %3391 = vmatpush1.bf16.msra.mxu0 0
      %3392 = vmatprep.subr.bf16.mxu0 0
      %3393 = vmatpush1.bf16.msra.mxu0 0
      %3394 = vmatprep.subr.bf16.mxu0 0
      %3395 = vmatpush1.bf16.msra.mxu0 0
      %3396 = vmatprep.subr.bf16.mxu0 0
      %3397 = vmatpush1.bf16.msra.mxu0 0
      %3398 = vmatprep.subr.bf16.mxu0 0
      %3399 = vmatpush1.bf16.msra.mxu0 0
      %3400 = vmatprep.subr.bf16.mxu0 0
      %3401 = vmatpush1.bf16.msra.mxu0 0
      %3402 = vmatprep.subr.bf16.mxu0 0
      %3403 = vmatpush1.bf16.msra.mxu0 0
      %3404 = vmatprep.subr.bf16.mxu0 0
      %3405 = vmatpush1.bf16.msra.mxu0 0
      %3406 = vmatprep.subr.bf16.mxu0 0
      %3407 = vmatpush1.bf16.msra.mxu0 0
      %3408 = vmatprep.subr.bf16.mxu0 0
      %3409 = vmatpush1.bf16.msra.mxu0 0
      %3410 = vmatprep.subr.bf16.mxu0 0
      %3411 = vmatpush1.bf16.msra.mxu0 0
      %3412 = vmatprep.mubr.bf16.mxu0 0
      %3413 = vmatmul.mubr.bf16.gmra.mrb[0].mxu0 %v3375
      %v3414 = vpop.f32.mrb[0].mxu0
      %v3415 = vadd.f32 0.0, %v3414
      %v3416 = vpop.f32.mrb[0].mxu0
      %v3417 = vpop.f32.mrb[0].mxu0
      %v3418 = vadd.f32 0.0, %v3417
      %v3419 = vpop.f32.mrb[0].mxu0
      %3420 = vmatprep.mubr.bf16.mxu0 0
      %3421 = vmatmul.mubr.bf16.gmra.mrb[0].mxu0 %v3378
      %v3422 = vpop.f32.mrb[0].mxu0
      %v3423 = vadd.f32 0.0, %v3422
      %v3424 = vpop.f32.mrb[0].mxu0
      %v3425 = vpop.f32.mrb[0].mxu0
      %v3426 = vadd.f32 0.0, %v3425
      %v3427 = vpop.f32.mrb[0].mxu0
      %3428 = vdwg.mxu0
      %v3429 = vadd.f32 %v3331, %v3415
      %v3430 = vadd.f32 %v3332, %v3418
      %v3431 = vadd.f32 %v3333, %v3423
      %v3432 = vadd.f32 %v3334, %v3426
      %s3433 = scalar_lea.vmem %s730, 160
      %v3434 = vld [vmem:[%s3433] sm:$0xf]
      %v3435 = vld [vmem:[%s3433 + $0x4] sm:$0xf]
      %v3436 = vld [vmem:[%s3433 + $0x8] sm:$0xf]
      %v3437 = vld [vmem:[%s3433 + $0xc] sm:$0xf]
      %v3438 = vld [vmem:[%s3433 + $0x10] sm:$0xf]
      %v3439 = vld [vmem:[%s3433 + $0x14] sm:$0xf]
      %v3440 = vld [vmem:[%s3433 + $0x18] sm:$0xf]
      %v3441 = vld [vmem:[%s3433 + $0x1c] sm:$0xf]
      %v3442 = vrot.slane %v2968, 2
      %v3443 = vrot.slane %v2970, 3
      %v3444 = vor.u32 %v3442, %v3443
      %v3445 = vrot.slane %v2979, 2
      %v3446 = vrot.slane %v2975, 3
      %v3447 = vor.u32 %v3445, %v3446
      %v3448 = vsel %vm1354, %v3444, %v3447
      %v3450 = vshrl.u32 %v2949, 16
      %v3452 = vrot.slane %v3450, 2
      %v3453 = vshll.u32 %v2949, 16
      %v3455 = vrot.slane %v3453, 3
      %v3456 = vor.u32 %v3452, %v3455
      %v3457 = vsel %vm1354, %v3447, %v3456
      %v3466 = vunpack.c.l.b16 %v3434
      %v3467 = vunpack.c.l.b16 %v3435
      %v3468 = vunpack.c.l.b16 %v3436
      %v3469 = vunpack.c.l.b16 %v3437
      %v3470 = vunpack.c.l.b16 %v3438
      %v3471 = vunpack.c.l.b16 %v3439
      %v3472 = vunpack.c.l.b16 %v3440
      %v3473 = vunpack.c.l.b16 %v3441
      %v3474 = vpack.c.b16 %v3467, %v3466
      %v3475 = vpack.c.b16 %v3469, %v3468
      %v3476 = vpack.c.b16 %v3471, %v3470
      %v3477 = vpack.c.b16 %v3473, %v3472
      %v3483 = vsel %vm3006, %v3448, 0
      %v3486 = vsel %vm3006, %v3457, 0
      %3488 = vmatprep.subr.bf16.mxu0 0
      %3489 = vmatpush1.bf16.msra.mxu0 %v3474
      %3490 = vmatprep.subr.bf16.mxu0 0
      %3491 = vmatpush1.bf16.msra.mxu0 %v3475
      %3492 = vmatprep.subr.bf16.mxu0 0
      %3493 = vmatpush1.bf16.msra.mxu0 %v3476
      %3494 = vmatprep.subr.bf16.mxu0 0
      %3495 = vmatpush1.bf16.msra.mxu0 %v3477
      %3496 = vmatprep.subr.bf16.mxu0 0
      %3497 = vmatpush1.bf16.msra.mxu0 0
      %3498 = vmatprep.subr.bf16.mxu0 0
      %3499 = vmatpush1.bf16.msra.mxu0 0
      %3500 = vmatprep.subr.bf16.mxu0 0
      %3501 = vmatpush1.bf16.msra.mxu0 0
      %3502 = vmatprep.subr.bf16.mxu0 0
      %3503 = vmatpush1.bf16.msra.mxu0 0
      %3504 = vmatprep.subr.bf16.mxu0 0
      %3505 = vmatpush1.bf16.msra.mxu0 0
      %3506 = vmatprep.subr.bf16.mxu0 0
      %3507 = vmatpush1.bf16.msra.mxu0 0
      %3508 = vmatprep.subr.bf16.mxu0 0
      %3509 = vmatpush1.bf16.msra.mxu0 0
      %3510 = vmatprep.subr.bf16.mxu0 0
      %3511 = vmatpush1.bf16.msra.mxu0 0
      %3512 = vmatprep.subr.bf16.mxu0 0
      %3513 = vmatpush1.bf16.msra.mxu0 0
      %3514 = vmatprep.subr.bf16.mxu0 0
      %3515 = vmatpush1.bf16.msra.mxu0 0
      %3516 = vmatprep.subr.bf16.mxu0 0
      %3517 = vmatpush1.bf16.msra.mxu0 0
      %3518 = vmatprep.subr.bf16.mxu0 0
      %3519 = vmatpush1.bf16.msra.mxu0 0
      %3520 = vmatprep.mubr.bf16.mxu0 0
      %3521 = vmatmul.mubr.bf16.gmra.mrb[0].mxu0 %v3483
      %v3522 = vpop.f32.mrb[0].mxu0
      %v3523 = vadd.f32 0.0, %v3522
      %v3524 = vpop.f32.mrb[0].mxu0
      %v3525 = vpop.f32.mrb[0].mxu0
      %v3526 = vadd.f32 0.0, %v3525
      %v3527 = vpop.f32.mrb[0].mxu0
      %3528 = vmatprep.mubr.bf16.mxu0 0
      %3529 = vmatmul.mubr.bf16.gmra.mrb[0].mxu0 %v3486
      %v3530 = vpop.f32.mrb[0].mxu0
      %v3531 = vadd.f32 0.0, %v3530
      %v3532 = vpop.f32.mrb[0].mxu0
      %v3533 = vpop.f32.mrb[0].mxu0
      %v3534 = vadd.f32 0.0, %v3533
      %v3535 = vpop.f32.mrb[0].mxu0
      %3536 = vdwg.mxu0
      %v3537 = vadd.f32 %v3429, %v3523
      %v3538 = vadd.f32 %v3430, %v3526
      %v3539 = vadd.f32 %v3431, %v3531
      %v3540 = vadd.f32 %v3432, %v3534
      %s3541 = scalar_lea.vmem %s730, 192
      %v3542 = vld [vmem:[%s3541] sm:$0xf]
      %v3543 = vld [vmem:[%s3541 + $0x4] sm:$0xf]
      %v3544 = vld [vmem:[%s3541 + $0x8] sm:$0xf]
      %v3545 = vld [vmem:[%s3541 + $0xc] sm:$0xf]
      %v3546 = vld [vmem:[%s3541 + $0x10] sm:$0xf]
      %v3547 = vld [vmem:[%s3541 + $0x14] sm:$0xf]
      %v3548 = vld [vmem:[%s3541 + $0x18] sm:$0xf]
      %v3549 = vld [vmem:[%s3541 + $0x1c] sm:$0xf]
      %v3550 = vrot.slane %v2947, 3
      %v3551 = vrot.slane %v2948, 3
      %v3552 = vsel %vm1477, %v3550, %v3551
      %v3553 = vrot.slane %v2949, 3
      %v3554 = vsel %vm1477, %v3551, %v3553
      %v3563 = vunpack.c.l.b16 %v3542
      %v3564 = vunpack.c.l.b16 %v3543
      %v3565 = vunpack.c.l.b16 %v3544
      %v3566 = vunpack.c.l.b16 %v3545
      %v3567 = vunpack.c.l.b16 %v3546
      %v3568 = vunpack.c.l.b16 %v3547
      %v3569 = vunpack.c.l.b16 %v3548
      %v3570 = vunpack.c.l.b16 %v3549
      %v3571 = vpack.c.b16 %v3564, %v3563
      %v3572 = vpack.c.b16 %v3566, %v3565
      %v3573 = vpack.c.b16 %v3568, %v3567
      %v3574 = vpack.c.b16 %v3570, %v3569
      %v3580 = vsel %vm3006, %v3552, 0
      %v3583 = vsel %vm3006, %v3554, 0
      %3585 = vmatprep.subr.bf16.mxu0 0
      %3586 = vmatpush1.bf16.msra.mxu0 %v3571
      %3587 = vmatprep.subr.bf16.mxu0 0
      %3588 = vmatpush1.bf16.msra.mxu0 %v3572
      %3589 = vmatprep.subr.bf16.mxu0 0
      %3590 = vmatpush1.bf16.msra.mxu0 %v3573
      %3591 = vmatprep.subr.bf16.mxu0 0
      %3592 = vmatpush1.bf16.msra.mxu0 %v3574
      %3593 = vmatprep.subr.bf16.mxu0 0
      %3594 = vmatpush1.bf16.msra.mxu0 0
      %3595 = vmatprep.subr.bf16.mxu0 0
      %3596 = vmatpush1.bf16.msra.mxu0 0
      %3597 = vmatprep.subr.bf16.mxu0 0
      %3598 = vmatpush1.bf16.msra.mxu0 0
      %3599 = vmatprep.subr.bf16.mxu0 0
      %3600 = vmatpush1.bf16.msra.mxu0 0
      %3601 = vmatprep.subr.bf16.mxu0 0
      %3602 = vmatpush1.bf16.msra.mxu0 0
      %3603 = vmatprep.subr.bf16.mxu0 0
      %3604 = vmatpush1.bf16.msra.mxu0 0
      %3605 = vmatprep.subr.bf16.mxu0 0
      %3606 = vmatpush1.bf16.msra.mxu0 0
      %3607 = vmatprep.subr.bf16.mxu0 0
      %3608 = vmatpush1.bf16.msra.mxu0 0
      %3609 = vmatprep.subr.bf16.mxu0 0
      %3610 = vmatpush1.bf16.msra.mxu0 0
      %3611 = vmatprep.subr.bf16.mxu0 0
      %3612 = vmatpush1.bf16.msra.mxu0 0
      %3613 = vmatprep.subr.bf16.mxu0 0
      %3614 = vmatpush1.bf16.msra.mxu0 0
      %3615 = vmatprep.subr.bf16.mxu0 0
      %3616 = vmatpush1.bf16.msra.mxu0 0
      %3617 = vmatprep.mubr.bf16.mxu0 0
      %3618 = vmatmul.mubr.bf16.gmra.mrb[0].mxu0 %v3580
      %v3619 = vpop.f32.mrb[0].mxu0
      %v3620 = vadd.f32 0.0, %v3619
      %v3621 = vpop.f32.mrb[0].mxu0
      %v3622 = vpop.f32.mrb[0].mxu0
      %v3623 = vadd.f32 0.0, %v3622
      %v3624 = vpop.f32.mrb[0].mxu0
      %3625 = vmatprep.mubr.bf16.mxu0 0
      %3626 = vmatmul.mubr.bf16.gmra.mrb[0].mxu0 %v3583
      %v3627 = vpop.f32.mrb[0].mxu0
      %v3628 = vadd.f32 0.0, %v3627
      %v3629 = vpop.f32.mrb[0].mxu0
      %v3630 = vpop.f32.mrb[0].mxu0
      %v3631 = vadd.f32 0.0, %v3630
      %v3632 = vpop.f32.mrb[0].mxu0
      %3633 = vdwg.mxu0
      %v3634 = vadd.f32 %v3537, %v3620
      %v3635 = vadd.f32 %v3538, %v3623
      %v3636 = vadd.f32 %v3539, %v3628
      %v3637 = vadd.f32 %v3540, %v3631
      %s3638 = scalar_lea.vmem %s730, 224
      %v3639 = vld [vmem:[%s3638] sm:$0xf]
      %v3640 = vld [vmem:[%s3638 + $0x4] sm:$0xf]
      %v3641 = vld [vmem:[%s3638 + $0x8] sm:$0xf]
      %v3642 = vld [vmem:[%s3638 + $0xc] sm:$0xf]
      %v3643 = vld [vmem:[%s3638 + $0x10] sm:$0xf]
      %v3644 = vld [vmem:[%s3638 + $0x14] sm:$0xf]
      %v3645 = vld [vmem:[%s3638 + $0x18] sm:$0xf]
      %v3646 = vld [vmem:[%s3638 + $0x1c] sm:$0xf]
      %v3647 = vrot.slane %v2968, 3
      %v3648 = vrot.slane %v2970, 4
      %v3649 = vor.u32 %v3647, %v3648
      %v3650 = vrot.slane %v2979, 3
      %v3651 = vrot.slane %v2975, 4
      %v3652 = vor.u32 %v3650, %v3651
      %v3653 = vsel %vm1590, %v3649, %v3652
      %v3654 = vrot.slane %v3450, 3
      %v3655 = vrot.slane %v3453, 4
      %v3656 = vor.u32 %v3654, %v3655
      %v3657 = vsel %vm1590, %v3652, %v3656
      %v3666 = vunpack.c.l.b16 %v3639
      %v3667 = vunpack.c.l.b16 %v3640
      %v3668 = vunpack.c.l.b16 %v3641
      %v3669 = vunpack.c.l.b16 %v3642
      %v3670 = vunpack.c.l.b16 %v3643
      %v3671 = vunpack.c.l.b16 %v3644
      %v3672 = vunpack.c.l.b16 %v3645
      %v3673 = vunpack.c.l.b16 %v3646
      %v3674 = vpack.c.b16 %v3667, %v3666
      %v3675 = vpack.c.b16 %v3669, %v3668
      %v3676 = vpack.c.b16 %v3671, %v3670
      %v3677 = vpack.c.b16 %v3673, %v3672
      %v3683 = vsel %vm3006, %v3653, 0
      %v3686 = vsel %vm3006, %v3657, 0
      %3688 = vmatprep.subr.bf16.mxu0 0
      %3689 = vmatpush1.bf16.msra.mxu0 %v3674
      %3690 = vmatprep.subr.bf16.mxu0 0
      %3691 = vmatpush1.bf16.msra.mxu0 %v3675
      %3692 = vmatprep.subr.bf16.mxu0 0
      %3693 = vmatpush1.bf16.msra.mxu0 %v3676
      %3694 = vmatprep.subr.bf16.mxu0 0
      %3695 = vmatpush1.bf16.msra.mxu0 %v3677
      %3696 = vmatprep.subr.bf16.mxu0 0
      %3697 = vmatpush1.bf16.msra.mxu0 0
      %3698 = vmatprep.subr.bf16.mxu0 0
      %3699 = vmatpush1.bf16.msra.mxu0 0
      %3700 = vmatprep.subr.bf16.mxu0 0
      %3701 = vmatpush1.bf16.msra.mxu0 0
      %3702 = vmatprep.subr.bf16.mxu0 0
      %3703 = vmatpush1.bf16.msra.mxu0 0
      %3704 = vmatprep.subr.bf16.mxu0 0
      %3705 = vmatpush1.bf16.msra.mxu0 0
      %3706 = vmatprep.subr.bf16.mxu0 0
      %3707 = vmatpush1.bf16.msra.mxu0 0
      %3708 = vmatprep.subr.bf16.mxu0 0
      %3709 = vmatpush1.bf16.msra.mxu0 0
      %3710 = vmatprep.subr.bf16.mxu0 0
      %3711 = vmatpush1.bf16.msra.mxu0 0
      %3712 = vmatprep.subr.bf16.mxu0 0
      %3713 = vmatpush1.bf16.msra.mxu0 0
      %3714 = vmatprep.subr.bf16.mxu0 0
      %3715 = vmatpush1.bf16.msra.mxu0 0
      %3716 = vmatprep.subr.bf16.mxu0 0
      %3717 = vmatpush1.bf16.msra.mxu0 0
      %3718 = vmatprep.subr.bf16.mxu0 0
      %3719 = vmatpush1.bf16.msra.mxu0 0
      %3720 = vmatprep.mubr.bf16.mxu0 0
      %3721 = vmatmul.mubr.bf16.gmra.mrb[0].mxu0 %v3683
      %v3722 = vpop.f32.mrb[0].mxu0
      %v3723 = vadd.f32 0.0, %v3722
      %v3724 = vpop.f32.mrb[0].mxu0
      %v3725 = vpop.f32.mrb[0].mxu0
      %v3726 = vadd.f32 0.0, %v3725
      %v3727 = vpop.f32.mrb[0].mxu0
      %3728 = vmatprep.mubr.bf16.mxu0 0
      %3729 = vmatmul.mubr.bf16.gmra.mrb[0].mxu0 %v3686
      %v3730 = vpop.f32.mrb[0].mxu0
      %v3731 = vadd.f32 0.0, %v3730
      %v3732 = vpop.f32.mrb[0].mxu0
      %v3733 = vpop.f32.mrb[0].mxu0
      %v3734 = vadd.f32 0.0, %v3733
      %v3735 = vpop.f32.mrb[0].mxu0
      %3736 = vdwg.mxu0
      %v3737 = vadd.f32 %v3634, %v3723
      %v3738 = vadd.f32 %v3635, %v3726
      %v3739 = vadd.f32 %v3636, %v3731
      %v3740 = vadd.f32 %v3637, %v3734
      %v3741 = vld [vmem:[%s733] sm:$0x1]
      %v3743 = vlaneseq
      %v3744 = vshrl.u32 %v3743, 7
      %v3745 = vsub.s32 0, %v3744
      %v3746 = vrot.slane %v3741, %v3745
      %v3748 = vadd.f32 %v3737, %v3746
      %v3749 = vadd.f32 %v3738, %v3746
      %v3750 = vadd.f32 %v3739, %v3746
      %v3751 = vadd.f32 %v3740, %v3746
      %v3752 = vmax.f32 %v3748, 0.0
      %v3753 = vmax.f32 %v3749, 0.0
      %v3754 = vmax.f32 %v3750, 0.0
      %v3755 = vmax.f32 %v3751, 0.0
      %v3756 = vpack.c.bf16 %v3753, %v3752
      %v3757 = vpack.c.bf16 %v3755, %v3754
      %v3758 = vld [vmem:[%s11] sm:$0xf]
      %v3759 = vld [vmem:[%s11 + $0x4] sm:$0x3]
      %v3762 = vunpack.c.l.b16 %v3758
      %v3763 = vunpack.c.l.b16 %v3759
      %v3764 = vpack.c.b16 %v3763, %v3762
      %vm3765 = vcmask 236544
      %v3767 = vsel %vm3765, %v3764, 0
      %vm3769 = vcmask 1046528
      %v3770 = vsel %vm2797, 4294967295, 65535
      %v3771 = vsel %vm3769, %v3770, 0
      %v3773 = vand.u32 %v3757, %v3771
      %3775 = vmatprep.subr.bf16.mxu0 0
      %3776 = vmatpush1.bf16.msra.mxu0 %v3756
      %3777 = vmatprep.subr.bf16.mxu0 0
      %3778 = vmatpush1.bf16.msra.mxu0 %v3773
      %3779 = vmatprep.subr.bf16.mxu0 0
      %3780 = vmatpush1.bf16.msra.mxu0 0
      %3781 = vmatprep.subr.bf16.mxu0 0
      %3782 = vmatpush1.bf16.msra.mxu0 0
      %3783 = vmatprep.subr.bf16.mxu0 0
      %3784 = vmatpush1.bf16.msra.mxu0 0
      %3785 = vmatprep.subr.bf16.mxu0 0
      %3786 = vmatpush1.bf16.msra.mxu0 0
      %3787 = vmatprep.subr.bf16.mxu0 0
      %3788 = vmatpush1.bf16.msra.mxu0 0
      %3789 = vmatprep.subr.bf16.mxu0 0
      %3790 = vmatpush1.bf16.msra.mxu0 0
      %3791 = vmatprep.subr.bf16.mxu0 0
      %3792 = vmatpush1.bf16.msra.mxu0 0
      %3793 = vmatprep.subr.bf16.mxu0 0
      %3794 = vmatpush1.bf16.msra.mxu0 0
      %3795 = vmatprep.subr.bf16.mxu0 0
      %3796 = vmatpush1.bf16.msra.mxu0 0
      %3797 = vmatprep.subr.bf16.mxu0 0
      %3798 = vmatpush1.bf16.msra.mxu0 0
      %3799 = vmatprep.subr.bf16.mxu0 0
      %3800 = vmatpush1.bf16.msra.mxu0 0
      %3801 = vmatprep.subr.bf16.mxu0 0
      %3802 = vmatpush1.bf16.msra.mxu0 0
      %3803 = vmatprep.subr.bf16.mxu0 0
      %3804 = vmatpush1.bf16.msra.mxu0 0
      %3805 = vmatprep.subr.bf16.mxu0 0
      %3806 = vmatpush1.bf16.msra.mxu0 0
      %3807 = vmatprep.mubr.bf16.mxu0 0
      %3808 = vmatmul.mubr.bf16.gmra.mrb[0].mxu0 %v3767
      %v3809 = vpop.f32.mrb[0].mxu0
      %v3810 = vadd.f32 0.0, %v3809
      %v3811 = vpop.f32.mrb[0].mxu0
      %v3812 = vpop.f32.mrb[0].mxu0
      %v3813 = vadd.f32 0.0, %v3812
      %v3814 = vpop.f32.mrb[0].mxu0
      %3815 = vdwg.mxu0
      %v3816 = vld [vmem:[%s12] sm:$0xf]
      %v3817 = vld [vmem:[%s12 + $0x4] sm:$0x3]
      %v3820 = vunpack.c.l.b16 %v3816
      %v3821 = vunpack.c.l.b16 %v3817
      %v3822 = vpack.c.b16 %v3821, %v3820
      %v3824 = vsel %vm3765, %v3822, 0
      %3826 = vmatprep.subr.bf16.mxu0 0
      %3827 = vmatpush1.bf16.msra.mxu0 %v3756
      %3828 = vmatprep.subr.bf16.mxu0 0
      %3829 = vmatpush1.bf16.msra.mxu0 %v3773
      %3830 = vmatprep.subr.bf16.mxu0 0
      %3831 = vmatpush1.bf16.msra.mxu0 0
      %3832 = vmatprep.subr.bf16.mxu0 0
      %3833 = vmatpush1.bf16.msra.mxu0 0
      %3834 = vmatprep.subr.bf16.mxu0 0
      %3835 = vmatpush1.bf16.msra.mxu0 0
      %3836 = vmatprep.subr.bf16.mxu0 0
      %3837 = vmatpush1.bf16.msra.mxu0 0
      %3838 = vmatprep.subr.bf16.mxu0 0
      %3839 = vmatpush1.bf16.msra.mxu0 0
      %3840 = vmatprep.subr.bf16.mxu0 0
      %3841 = vmatpush1.bf16.msra.mxu0 0
      %3842 = vmatprep.subr.bf16.mxu0 0
      %3843 = vmatpush1.bf16.msra.mxu0 0
      %3844 = vmatprep.subr.bf16.mxu0 0
      %3845 = vmatpush1.bf16.msra.mxu0 0
      %3846 = vmatprep.subr.bf16.mxu0 0
      %3847 = vmatpush1.bf16.msra.mxu0 0
      %3848 = vmatprep.subr.bf16.mxu0 0
      %3849 = vmatpush1.bf16.msra.mxu0 0
      %3850 = vmatprep.subr.bf16.mxu0 0
      %3851 = vmatpush1.bf16.msra.mxu0 0
      %3852 = vmatprep.subr.bf16.mxu0 0
      %3853 = vmatpush1.bf16.msra.mxu0 0
      %3854 = vmatprep.subr.bf16.mxu0 0
      %3855 = vmatpush1.bf16.msra.mxu0 0
      %3856 = vmatprep.subr.bf16.mxu0 0
      %3857 = vmatpush1.bf16.msra.mxu0 0
      %3858 = vmatprep.mubr.bf16.mxu0 0
      %3859 = vmatmul.mubr.bf16.gmra.mrb[0].mxu0 %v3824
      %v3860 = vpop.f32.mrb[0].mxu0
      %v3861 = vadd.f32 0.0, %v3860
      %v3862 = vpop.f32.mrb[0].mxu0
      %v3863 = vpop.f32.mrb[0].mxu0
      %v3864 = vadd.f32 0.0, %v3863
      %v3865 = vpop.f32.mrb[0].mxu0
      %3866 = vdwg.mxu0
      %v3867 = vmax.f32 %v3810, %v3861
      %v3868 = vmax.f32 %v3813, %v3864
      %3869 = vst.msk [vmem:[%s755] sm:$0xff] %vm3006, %v3867
      %vm3870 = vcmask 519168
      %3871 = vst.msk [vmem:[%s755 + $0x8] sm:$0xf] %vm3870, %v3868
      %v3872 = vpack.c.bf16 %v3868, %v3867
      %v3873 = vld [vmem:[%s738] sm:$0xff]
      %v3874 = vld [vmem:[%s738 + $0x8] sm:$0xff]
      %v3875 = vld [vmem:[%s738 + $0x10] sm:$0xff]
      %v3876 = vld [vmem:[%s738 + $0x18] sm:$0xff]
      %v3877 = vld [vmem:[%s738 + $0x20] sm:$0xff]
      %v3878 = vld [vmem:[%s738 + $0x28] sm:$0xff]
      %v3879 = vld [vmem:[%s738 + $0x30] sm:$0xff]
      %v3880 = vld [vmem:[%s738 + $0x38] sm:$0xff]
      %s3881 = scalar_lea.vmem %s738, 64
      %v3882 = vld [vmem:[%s3881] sm:$0xff]
      %v3883 = vld [vmem:[%s3881 + $0x8] sm:$0xff]
      %v3884 = vld [vmem:[%s3881 + $0x10] sm:$0xff]
      %v3885 = vld [vmem:[%s3881 + $0x18] sm:$0xff]
      %v3886 = vld [vmem:[%s3881 + $0x20] sm:$0xff]
      %v3887 = vld [vmem:[%s3881 + $0x28] sm:$0xff]
      %v3888 = vld [vmem:[%s3881 + $0x30] sm:$0xff]
      %v3889 = vld [vmem:[%s3881 + $0x38] sm:$0xff]
      %v3891 = vrot.slane %v3872, 1
      %v3900 = vunpack.c.l.b16 %v3882
      %v3901 = vunpack.c.h.b16 %v3882
      %v3902 = vunpack.c.l.b16 %v3883
      %v3903 = vunpack.c.h.b16 %v3883
      %v3904 = vunpack.c.l.b16 %v3884
      %v3905 = vunpack.c.h.b16 %v3884
      %v3906 = vunpack.c.l.b16 %v3885
      %v3907 = vunpack.c.h.b16 %v3885
      %v3908 = vunpack.c.l.b16 %v3886
      %v3909 = vunpack.c.h.b16 %v3886
      %v3910 = vunpack.c.l.b16 %v3887
      %v3911 = vunpack.c.h.b16 %v3887
      %v3912 = vunpack.c.l.b16 %v3888
      %v3913 = vunpack.c.h.b16 %v3888
      %v3914 = vunpack.c.l.b16 %v3889
      %v3915 = vunpack.c.h.b16 %v3889
      %v3916 = vpack.c.b16 %v3902, %v3900
      %v3917 = vpack.c.b16 %v3903, %v3901
      %v3918 = vpack.c.b16 %v3906, %v3904
      %v3919 = vpack.c.b16 %v3907, %v3905
      %v3920 = vpack.c.b16 %v3910, %v3908
      %v3921 = vpack.c.b16 %v3911, %v3909
      %v3922 = vpack.c.b16 %v3914, %v3912
      %v3923 = vpack.c.b16 %v3915, %v3913
      %v3933 = vsel %vm3006, %v3891, 0
      %3935 = vmatprep.subr.bf16.mxu0 %v3917
      %3936 = vmatpush1.bf16.msra.mxu0 %v3916
      %3937 = vmatprep.subr.bf16.mxu0 %v3919
      %3938 = vmatpush1.bf16.msra.mxu0 %v3918
      %3939 = vmatprep.subr.bf16.mxu0 %v3921
      %3940 = vmatpush1.bf16.msra.mxu0 %v3920
      %3941 = vmatprep.subr.bf16.mxu0 %v3923
      %3942 = vmatpush1.bf16.msra.mxu0 %v3922
      %3943 = vmatprep.subr.bf16.mxu0 0
      %3944 = vmatpush1.bf16.msra.mxu0 0
      %3945 = vmatprep.subr.bf16.mxu0 0
      %3946 = vmatpush1.bf16.msra.mxu0 0
      %3947 = vmatprep.subr.bf16.mxu0 0
      %3948 = vmatpush1.bf16.msra.mxu0 0
      %3949 = vmatprep.subr.bf16.mxu0 0
      %3950 = vmatpush1.bf16.msra.mxu0 0
      %3951 = vmatprep.subr.bf16.mxu0 0
      %3952 = vmatpush1.bf16.msra.mxu0 0
      %3953 = vmatprep.subr.bf16.mxu0 0
      %3954 = vmatpush1.bf16.msra.mxu0 0
      %3955 = vmatprep.subr.bf16.mxu0 0
      %3956 = vmatpush1.bf16.msra.mxu0 0
      %3957 = vmatprep.subr.bf16.mxu0 0
      %3958 = vmatpush1.bf16.msra.mxu0 0
      %3959 = vmatprep.subr.bf16.mxu0 0
      %3960 = vmatpush1.bf16.msra.mxu0 0
      %3961 = vmatprep.subr.bf16.mxu0 0
      %3962 = vmatpush1.bf16.msra.mxu0 0
      %3963 = vmatprep.subr.bf16.mxu0 0
      %3964 = vmatpush1.bf16.msra.mxu0 0
      %3965 = vmatprep.subr.bf16.mxu0 0
      %3966 = vmatpush1.bf16.msra.mxu0 0
      %3967 = vmatprep.mubr.bf16.mxu0 0
      %3968 = vmatmul.mubr.bf16.gmra.mrb[0].mxu0 %v3933
      %v3969 = vpop.f32.mrb[0].mxu0
      %v3970 = vadd.f32 0.0, %v3969
      %v3971 = vpop.f32.mrb[0].mxu0
      %v3972 = vadd.f32 0.0, %v3971
      %v3973 = vpop.f32.mrb[0].mxu0
      %v3974 = vpop.f32.mrb[0].mxu0
      %3975 = vdwg.mxu0
      %v3984 = vunpack.c.l.b16 %v3873
      %v3985 = vunpack.c.h.b16 %v3873
      %v3986 = vunpack.c.l.b16 %v3874
      %v3987 = vunpack.c.h.b16 %v3874
      %v3988 = vunpack.c.l.b16 %v3875
      %v3989 = vunpack.c.h.b16 %v3875
      %v3990 = vunpack.c.l.b16 %v3876
      %v3991 = vunpack.c.h.b16 %v3876
      %v3992 = vunpack.c.l.b16 %v3877
      %v3993 = vunpack.c.h.b16 %v3877
      %v3994 = vunpack.c.l.b16 %v3878
      %v3995 = vunpack.c.h.b16 %v3878
      %v3996 = vunpack.c.l.b16 %v3879
      %v3997 = vunpack.c.h.b16 %v3879
      %v3998 = vunpack.c.l.b16 %v3880
      %v3999 = vunpack.c.h.b16 %v3880
      %v4000 = vpack.c.b16 %v3986, %v3984
      %v4001 = vpack.c.b16 %v3987, %v3985
      %v4002 = vpack.c.b16 %v3990, %v3988
      %v4003 = vpack.c.b16 %v3991, %v3989
      %v4004 = vpack.c.b16 %v3994, %v3992
      %v4005 = vpack.c.b16 %v3995, %v3993
      %v4006 = vpack.c.b16 %v3998, %v3996
      %v4007 = vpack.c.b16 %v3999, %v3997
      %v4017 = vsel %vm3006, %v3872, 0
      %4019 = vmatprep.subr.bf16.mxu0 %v4001
      %4020 = vmatpush1.bf16.msra.mxu0 %v4000
      %4021 = vmatprep.subr.bf16.mxu0 %v4003
      %4022 = vmatpush1.bf16.msra.mxu0 %v4002
      %4023 = vmatprep.subr.bf16.mxu0 %v4005
      %4024 = vmatpush1.bf16.msra.mxu0 %v4004
      %4025 = vmatprep.subr.bf16.mxu0 %v4007
      %4026 = vmatpush1.bf16.msra.mxu0 %v4006
      %4027 = vmatprep.subr.bf16.mxu0 0
      %4028 = vmatpush1.bf16.msra.mxu0 0
      %4029 = vmatprep.subr.bf16.mxu0 0
      %4030 = vmatpush1.bf16.msra.mxu0 0
      %4031 = vmatprep.subr.bf16.mxu0 0
      %4032 = vmatpush1.bf16.msra.mxu0 0
      %4033 = vmatprep.subr.bf16.mxu0 0
      %4034 = vmatpush1.bf16.msra.mxu0 0
      %4035 = vmatprep.subr.bf16.mxu0 0
      %4036 = vmatpush1.bf16.msra.mxu0 0
      %4037 = vmatprep.subr.bf16.mxu0 0
      %4038 = vmatpush1.bf16.msra.mxu0 0
      %4039 = vmatprep.subr.bf16.mxu0 0
      %4040 = vmatpush1.bf16.msra.mxu0 0
      %4041 = vmatprep.subr.bf16.mxu0 0
      %4042 = vmatpush1.bf16.msra.mxu0 0
      %4043 = vmatprep.subr.bf16.mxu0 0
      %4044 = vmatpush1.bf16.msra.mxu0 0
      %4045 = vmatprep.subr.bf16.mxu0 0
      %4046 = vmatpush1.bf16.msra.mxu0 0
      %4047 = vmatprep.subr.bf16.mxu0 0
      %4048 = vmatpush1.bf16.msra.mxu0 0
      %4049 = vmatprep.subr.bf16.mxu0 0
      %4050 = vmatpush1.bf16.msra.mxu0 0
      %4051 = vmatprep.mubr.bf16.mxu0 0
      %4052 = vmatmul.mubr.bf16.gmra.mrb[0].mxu0 %v4017
      %v4053 = vpop.f32.mrb[0].mxu0
      %v4054 = vadd.f32 %v3970, %v4053
      %v4055 = vpop.f32.mrb[0].mxu0
      %v4056 = vadd.f32 %v3972, %v4055
      %v4057 = vpop.f32.mrb[0].mxu0
      %v4058 = vpop.f32.mrb[0].mxu0
      %4059 = vdwg.mxu0
      %s4060 = scalar_lea.vmem %s738, 128
      %v4061 = vld [vmem:[%s4060] sm:$0xff]
      %v4062 = vld [vmem:[%s4060 + $0x8] sm:$0xff]
      %v4063 = vld [vmem:[%s4060 + $0x10] sm:$0xff]
      %v4064 = vld [vmem:[%s4060 + $0x18] sm:$0xff]
      %v4065 = vld [vmem:[%s4060 + $0x20] sm:$0xff]
      %v4066 = vld [vmem:[%s4060 + $0x28] sm:$0xff]
      %v4067 = vld [vmem:[%s4060 + $0x30] sm:$0xff]
      %v4068 = vld [vmem:[%s4060 + $0x38] sm:$0xff]
      %v4069 = vrot.slane %v3872, 2
      %v4078 = vunpack.c.l.b16 %v4061
      %v4079 = vunpack.c.h.b16 %v4061
      %v4080 = vunpack.c.l.b16 %v4062
      %v4081 = vunpack.c.h.b16 %v4062
      %v4082 = vunpack.c.l.b16 %v4063
      %v4083 = vunpack.c.h.b16 %v4063
      %v4084 = vunpack.c.l.b16 %v4064
      %v4085 = vunpack.c.h.b16 %v4064
      %v4086 = vunpack.c.l.b16 %v4065
      %v4087 = vunpack.c.h.b16 %v4065
      %v4088 = vunpack.c.l.b16 %v4066
      %v4089 = vunpack.c.h.b16 %v4066
      %v4090 = vunpack.c.l.b16 %v4067
      %v4091 = vunpack.c.h.b16 %v4067
      %v4092 = vunpack.c.l.b16 %v4068
      %v4093 = vunpack.c.h.b16 %v4068
      %v4094 = vpack.c.b16 %v4080, %v4078
      %v4095 = vpack.c.b16 %v4081, %v4079
      %v4096 = vpack.c.b16 %v4084, %v4082
      %v4097 = vpack.c.b16 %v4085, %v4083
      %v4098 = vpack.c.b16 %v4088, %v4086
      %v4099 = vpack.c.b16 %v4089, %v4087
      %v4100 = vpack.c.b16 %v4092, %v4090
      %v4101 = vpack.c.b16 %v4093, %v4091
      %v4111 = vsel %vm3006, %v4069, 0
      %4113 = vmatprep.subr.bf16.mxu0 %v4095
      %4114 = vmatpush1.bf16.msra.mxu0 %v4094
      %4115 = vmatprep.subr.bf16.mxu0 %v4097
      %4116 = vmatpush1.bf16.msra.mxu0 %v4096
      %4117 = vmatprep.subr.bf16.mxu0 %v4099
      %4118 = vmatpush1.bf16.msra.mxu0 %v4098
      %4119 = vmatprep.subr.bf16.mxu0 %v4101
      %4120 = vmatpush1.bf16.msra.mxu0 %v4100
      %4121 = vmatprep.subr.bf16.mxu0 0
      %4122 = vmatpush1.bf16.msra.mxu0 0
      %4123 = vmatprep.subr.bf16.mxu0 0
      %4124 = vmatpush1.bf16.msra.mxu0 0
      %4125 = vmatprep.subr.bf16.mxu0 0
      %4126 = vmatpush1.bf16.msra.mxu0 0
      %4127 = vmatprep.subr.bf16.mxu0 0
      %4128 = vmatpush1.bf16.msra.mxu0 0
      %4129 = vmatprep.subr.bf16.mxu0 0
      %4130 = vmatpush1.bf16.msra.mxu0 0
      %4131 = vmatprep.subr.bf16.mxu0 0
      %4132 = vmatpush1.bf16.msra.mxu0 0
      %4133 = vmatprep.subr.bf16.mxu0 0
      %4134 = vmatpush1.bf16.msra.mxu0 0
      %4135 = vmatprep.subr.bf16.mxu0 0
      %4136 = vmatpush1.bf16.msra.mxu0 0
      %4137 = vmatprep.subr.bf16.mxu0 0
      %4138 = vmatpush1.bf16.msra.mxu0 0
      %4139 = vmatprep.subr.bf16.mxu0 0
      %4140 = vmatpush1.bf16.msra.mxu0 0
      %4141 = vmatprep.subr.bf16.mxu0 0
      %4142 = vmatpush1.bf16.msra.mxu0 0
      %4143 = vmatprep.subr.bf16.mxu0 0
      %4144 = vmatpush1.bf16.msra.mxu0 0
      %4145 = vmatprep.mubr.bf16.mxu0 0
      %4146 = vmatmul.mubr.bf16.gmra.mrb[0].mxu0 %v4111
      %v4147 = vpop.f32.mrb[0].mxu0
      %v4148 = vadd.f32 0.0, %v4147
      %v4149 = vpop.f32.mrb[0].mxu0
      %v4150 = vadd.f32 0.0, %v4149
      %v4151 = vpop.f32.mrb[0].mxu0
      %v4152 = vpop.f32.mrb[0].mxu0
      %4153 = vdwg.mxu0
      %v4154 = vadd.f32 %v4054, %v4148
      %v4155 = vadd.f32 %v4056, %v4150
      %s4156 = scalar_lea.vmem %s738, 192
      %v4157 = vld [vmem:[%s4156] sm:$0xff]
      %v4158 = vld [vmem:[%s4156 + $0x8] sm:$0xff]
      %v4159 = vld [vmem:[%s4156 + $0x10] sm:$0xff]
      %v4160 = vld [vmem:[%s4156 + $0x18] sm:$0xff]
      %v4161 = vld [vmem:[%s4156 + $0x20] sm:$0xff]
      %v4162 = vld [vmem:[%s4156 + $0x28] sm:$0xff]
      %v4163 = vld [vmem:[%s4156 + $0x30] sm:$0xff]
      %v4164 = vld [vmem:[%s4156 + $0x38] sm:$0xff]
      %v4165 = vrot.slane %v3872, 3
      %v4174 = vunpack.c.l.b16 %v4157
      %v4175 = vunpack.c.h.b16 %v4157
      %v4176 = vunpack.c.l.b16 %v4158
      %v4177 = vunpack.c.h.b16 %v4158
      %v4178 = vunpack.c.l.b16 %v4159
      %v4179 = vunpack.c.h.b16 %v4159
      %v4180 = vunpack.c.l.b16 %v4160
      %v4181 = vunpack.c.h.b16 %v4160
      %v4182 = vunpack.c.l.b16 %v4161
      %v4183 = vunpack.c.h.b16 %v4161
      %v4184 = vunpack.c.l.b16 %v4162
      %v4185 = vunpack.c.h.b16 %v4162
      %v4186 = vunpack.c.l.b16 %v4163
      %v4187 = vunpack.c.h.b16 %v4163
      %v4188 = vunpack.c.l.b16 %v4164
      %v4189 = vunpack.c.h.b16 %v4164
      %v4190 = vpack.c.b16 %v4176, %v4174
      %v4191 = vpack.c.b16 %v4177, %v4175
      %v4192 = vpack.c.b16 %v4180, %v4178
      %v4193 = vpack.c.b16 %v4181, %v4179
      %v4194 = vpack.c.b16 %v4184, %v4182
      %v4195 = vpack.c.b16 %v4185, %v4183
      %v4196 = vpack.c.b16 %v4188, %v4186
      %v4197 = vpack.c.b16 %v4189, %v4187
      %v4207 = vsel %vm3006, %v4165, 0
      %4209 = vmatprep.subr.bf16.mxu0 %v4191
      %4210 = vmatpush1.bf16.msra.mxu0 %v4190
      %4211 = vmatprep.subr.bf16.mxu0 %v4193
      %4212 = vmatpush1.bf16.msra.mxu0 %v4192
      %4213 = vmatprep.subr.bf16.mxu0 %v4195
      %4214 = vmatpush1.bf16.msra.mxu0 %v4194
      %4215 = vmatprep.subr.bf16.mxu0 %v4197
      %4216 = vmatpush1.bf16.msra.mxu0 %v4196
      %4217 = vmatprep.subr.bf16.mxu0 0
      %4218 = vmatpush1.bf16.msra.mxu0 0
      %4219 = vmatprep.subr.bf16.mxu0 0
      %4220 = vmatpush1.bf16.msra.mxu0 0
      %4221 = vmatprep.subr.bf16.mxu0 0
      %4222 = vmatpush1.bf16.msra.mxu0 0
      %4223 = vmatprep.subr.bf16.mxu0 0
      %4224 = vmatpush1.bf16.msra.mxu0 0
      %4225 = vmatprep.subr.bf16.mxu0 0
      %4226 = vmatpush1.bf16.msra.mxu0 0
      %4227 = vmatprep.subr.bf16.mxu0 0
      %4228 = vmatpush1.bf16.msra.mxu0 0
      %4229 = vmatprep.subr.bf16.mxu0 0
      %4230 = vmatpush1.bf16.msra.mxu0 0
      %4231 = vmatprep.subr.bf16.mxu0 0
      %4232 = vmatpush1.bf16.msra.mxu0 0
      %4233 = vmatprep.subr.bf16.mxu0 0
      %4234 = vmatpush1.bf16.msra.mxu0 0
      %4235 = vmatprep.subr.bf16.mxu0 0
      %4236 = vmatpush1.bf16.msra.mxu0 0
      %4237 = vmatprep.subr.bf16.mxu0 0
      %4238 = vmatpush1.bf16.msra.mxu0 0
      %4239 = vmatprep.subr.bf16.mxu0 0
      %4240 = vmatpush1.bf16.msra.mxu0 0
      %4241 = vmatprep.mubr.bf16.mxu0 0
      %4242 = vmatmul.mubr.bf16.gmra.mrb[0].mxu0 %v4207
      %v4243 = vpop.f32.mrb[0].mxu0
      %v4244 = vadd.f32 0.0, %v4243
      %v4245 = vpop.f32.mrb[0].mxu0
      %v4246 = vadd.f32 0.0, %v4245
      %v4247 = vpop.f32.mrb[0].mxu0
      %v4248 = vpop.f32.mrb[0].mxu0
      %4249 = vdwg.mxu0
      %v4250 = vadd.f32 %v4154, %v4244
      %v4251 = vadd.f32 %v4155, %v4246
      %s4252 = scalar_lea.vmem %s738, 256
      %v4253 = vld [vmem:[%s4252] sm:$0xff]
      %v4254 = vld [vmem:[%s4252 + $0x8] sm:$0xff]
      %v4255 = vld [vmem:[%s4252 + $0x10] sm:$0xff]
      %v4256 = vld [vmem:[%s4252 + $0x18] sm:$0xff]
      %v4257 = vld [vmem:[%s4252 + $0x20] sm:$0xff]
      %v4258 = vld [vmem:[%s4252 + $0x28] sm:$0xff]
      %v4259 = vld [vmem:[%s4252 + $0x30] sm:$0xff]
      %v4260 = vld [vmem:[%s4252 + $0x38] sm:$0xff]
      %v4261 = vrot.slane %v3872, 4
      %v4270 = vunpack.c.l.b16 %v4253
      %v4271 = vunpack.c.h.b16 %v4253
      %v4272 = vunpack.c.l.b16 %v4254
      %v4273 = vunpack.c.h.b16 %v4254
      %v4274 = vunpack.c.l.b16 %v4255
      %v4275 = vunpack.c.h.b16 %v4255
      %v4276 = vunpack.c.l.b16 %v4256
      %v4277 = vunpack.c.h.b16 %v4256
      %v4278 = vunpack.c.l.b16 %v4257
      %v4279 = vunpack.c.h.b16 %v4257
      %v4280 = vunpack.c.l.b16 %v4258
      %v4281 = vunpack.c.h.b16 %v4258
      %v4282 = vunpack.c.l.b16 %v4259
      %v4283 = vunpack.c.h.b16 %v4259
      %v4284 = vunpack.c.l.b16 %v4260
      %v4285 = vunpack.c.h.b16 %v4260
      %v4286 = vpack.c.b16 %v4272, %v4270
      %v4287 = vpack.c.b16 %v4273, %v4271
      %v4288 = vpack.c.b16 %v4276, %v4274
      %v4289 = vpack.c.b16 %v4277, %v4275
      %v4290 = vpack.c.b16 %v4280, %v4278
      %v4291 = vpack.c.b16 %v4281, %v4279
      %v4292 = vpack.c.b16 %v4284, %v4282
      %v4293 = vpack.c.b16 %v4285, %v4283
      %v4303 = vsel %vm3006, %v4261, 0
      %4305 = vmatprep.subr.bf16.mxu0 %v4287
      %4306 = vmatpush1.bf16.msra.mxu0 %v4286
      %4307 = vmatprep.subr.bf16.mxu0 %v4289
      %4308 = vmatpush1.bf16.msra.mxu0 %v4288
      %4309 = vmatprep.subr.bf16.mxu0 %v4291
      %4310 = vmatpush1.bf16.msra.mxu0 %v4290
      %4311 = vmatprep.subr.bf16.mxu0 %v4293
      %4312 = vmatpush1.bf16.msra.mxu0 %v4292
      %4313 = vmatprep.subr.bf16.mxu0 0
      %4314 = vmatpush1.bf16.msra.mxu0 0
      %4315 = vmatprep.subr.bf16.mxu0 0
      %4316 = vmatpush1.bf16.msra.mxu0 0
      %4317 = vmatprep.subr.bf16.mxu0 0
      %4318 = vmatpush1.bf16.msra.mxu0 0
      %4319 = vmatprep.subr.bf16.mxu0 0
      %4320 = vmatpush1.bf16.msra.mxu0 0
      %4321 = vmatprep.subr.bf16.mxu0 0
      %4322 = vmatpush1.bf16.msra.mxu0 0
      %4323 = vmatprep.subr.bf16.mxu0 0
      %4324 = vmatpush1.bf16.msra.mxu0 0
      %4325 = vmatprep.subr.bf16.mxu0 0
      %4326 = vmatpush1.bf16.msra.mxu0 0
      %4327 = vmatprep.subr.bf16.mxu0 0
      %4328 = vmatpush1.bf16.msra.mxu0 0
      %4329 = vmatprep.subr.bf16.mxu0 0
      %4330 = vmatpush1.bf16.msra.mxu0 0
      %4331 = vmatprep.subr.bf16.mxu0 0
      %4332 = vmatpush1.bf16.msra.mxu0 0
      %4333 = vmatprep.subr.bf16.mxu0 0
      %4334 = vmatpush1.bf16.msra.mxu0 0
      %4335 = vmatprep.subr.bf16.mxu0 0
      %4336 = vmatpush1.bf16.msra.mxu0 0
      %4337 = vmatprep.mubr.bf16.mxu0 0
      %4338 = vmatmul.mubr.bf16.gmra.mrb[0].mxu0 %v4303
      %v4339 = vpop.f32.mrb[0].mxu0
      %v4340 = vadd.f32 0.0, %v4339
      %v4341 = vpop.f32.mrb[0].mxu0
      %v4342 = vadd.f32 0.0, %v4341
      %v4343 = vpop.f32.mrb[0].mxu0
      %v4344 = vpop.f32.mrb[0].mxu0
      %4345 = vdwg.mxu0
      %v4346 = vadd.f32 %v4250, %v4340
      %v4347 = vadd.f32 %v4251, %v4342
      %s4348 = scalar_lea.vmem %s738, 320
      %v4349 = vld [vmem:[%s4348] sm:$0xff]
      %v4350 = vld [vmem:[%s4348 + $0x8] sm:$0xff]
      %v4351 = vld [vmem:[%s4348 + $0x10] sm:$0xff]
      %v4352 = vld [vmem:[%s4348 + $0x18] sm:$0xff]
      %v4353 = vld [vmem:[%s4348 + $0x20] sm:$0xff]
      %v4354 = vld [vmem:[%s4348 + $0x28] sm:$0xff]
      %v4355 = vld [vmem:[%s4348 + $0x30] sm:$0xff]
      %v4356 = vld [vmem:[%s4348 + $0x38] sm:$0xff]
      %v4357 = vrot.slane %v3872, 5
      %v4366 = vunpack.c.l.b16 %v4349
      %v4367 = vunpack.c.h.b16 %v4349
      %v4368 = vunpack.c.l.b16 %v4350
      %v4369 = vunpack.c.h.b16 %v4350
      %v4370 = vunpack.c.l.b16 %v4351
      %v4371 = vunpack.c.h.b16 %v4351
      %v4372 = vunpack.c.l.b16 %v4352
      %v4373 = vunpack.c.h.b16 %v4352
      %v4374 = vunpack.c.l.b16 %v4353
      %v4375 = vunpack.c.h.b16 %v4353
      %v4376 = vunpack.c.l.b16 %v4354
      %v4377 = vunpack.c.h.b16 %v4354
      %v4378 = vunpack.c.l.b16 %v4355
      %v4379 = vunpack.c.h.b16 %v4355
      %v4380 = vunpack.c.l.b16 %v4356
      %v4381 = vunpack.c.h.b16 %v4356
      %v4382 = vpack.c.b16 %v4368, %v4366
      %v4383 = vpack.c.b16 %v4369, %v4367
      %v4384 = vpack.c.b16 %v4372, %v4370
      %v4385 = vpack.c.b16 %v4373, %v4371
      %v4386 = vpack.c.b16 %v4376, %v4374
      %v4387 = vpack.c.b16 %v4377, %v4375
      %v4388 = vpack.c.b16 %v4380, %v4378
      %v4389 = vpack.c.b16 %v4381, %v4379
      %v4399 = vsel %vm3006, %v4357, 0
      %4401 = vmatprep.subr.bf16.mxu0 %v4383
      %4402 = vmatpush1.bf16.msra.mxu0 %v4382
      %4403 = vmatprep.subr.bf16.mxu0 %v4385
      %4404 = vmatpush1.bf16.msra.mxu0 %v4384
      %4405 = vmatprep.subr.bf16.mxu0 %v4387
      %4406 = vmatpush1.bf16.msra.mxu0 %v4386
      %4407 = vmatprep.subr.bf16.mxu0 %v4389
      %4408 = vmatpush1.bf16.msra.mxu0 %v4388
      %4409 = vmatprep.subr.bf16.mxu0 0
      %4410 = vmatpush1.bf16.msra.mxu0 0
      %4411 = vmatprep.subr.bf16.mxu0 0
      %4412 = vmatpush1.bf16.msra.mxu0 0
      %4413 = vmatprep.subr.bf16.mxu0 0
      %4414 = vmatpush1.bf16.msra.mxu0 0
      %4415 = vmatprep.subr.bf16.mxu0 0
      %4416 = vmatpush1.bf16.msra.mxu0 0
      %4417 = vmatprep.subr.bf16.mxu0 0
      %4418 = vmatpush1.bf16.msra.mxu0 0
      %4419 = vmatprep.subr.bf16.mxu0 0
      %4420 = vmatpush1.bf16.msra.mxu0 0
      %4421 = vmatprep.subr.bf16.mxu0 0
      %4422 = vmatpush1.bf16.msra.mxu0 0
      %4423 = vmatprep.subr.bf16.mxu0 0
      %4424 = vmatpush1.bf16.msra.mxu0 0
      %4425 = vmatprep.subr.bf16.mxu0 0
      %4426 = vmatpush1.bf16.msra.mxu0 0
      %4427 = vmatprep.subr.bf16.mxu0 0
      %4428 = vmatpush1.bf16.msra.mxu0 0
      %4429 = vmatprep.subr.bf16.mxu0 0
      %4430 = vmatpush1.bf16.msra.mxu0 0
      %4431 = vmatprep.subr.bf16.mxu0 0
      %4432 = vmatpush1.bf16.msra.mxu0 0
      %4433 = vmatprep.mubr.bf16.mxu0 0
      %4434 = vmatmul.mubr.bf16.gmra.mrb[0].mxu0 %v4399
      %v4435 = vpop.f32.mrb[0].mxu0
      %v4436 = vadd.f32 0.0, %v4435
      %v4437 = vpop.f32.mrb[0].mxu0
      %v4438 = vadd.f32 0.0, %v4437
      %v4439 = vpop.f32.mrb[0].mxu0
      %v4440 = vpop.f32.mrb[0].mxu0
      %4441 = vdwg.mxu0
      %v4442 = vadd.f32 %v4346, %v4436
      %v4443 = vadd.f32 %v4347, %v4438
      %v4444 = vld [vmem:[%s742] sm:$0x3]
      %v4446 = vlaneseq
      %v4447 = vshrl.u32 %v4446, 7
      %v4448 = vsub.s32 0, %v4447
      %v4449 = vrot.slane %v4444, %v4448
      %v4450 = vlaneseq
      %v4451 = vshrl.u32 %v4450, 7
      %v4452 = vsub.s32 1, %v4451
      %v4453 = vrot.slane %v4444, %v4452
      %v4456 = vadd.f32 %v4442, %v4449
      %v4457 = vadd.f32 %v4443, %v4453
      %v4458 = vmax.f32 %v4456, 0.0
      %v4459 = vmax.f32 %v4457, 0.0
      %v4460 = vpack.c.bf16 %v4458, %v4458
      %v4461 = vpack.c.bf16 %v4459, %v4459
      %v4462 = vld [vmem:[%s747] sm:$0xf]
      %v4463 = vld [vmem:[%s747 + $0x4] sm:$0xf]
      %v4464 = vld [vmem:[%s747 + $0x8] sm:$0xf]
      %v4465 = vld [vmem:[%s747 + $0xc] sm:$0xf]
      %v4466 = vld [vmem:[%s747 + $0x10] sm:$0xf]
      %v4467 = vld [vmem:[%s747 + $0x14] sm:$0xf]
      %v4468 = vld [vmem:[%s747 + $0x18] sm:$0xf]
      %v4469 = vld [vmem:[%s747 + $0x1c] sm:$0xf]
      %v4470 = vld [vmem:[%s747 + $0x20] sm:$0xf]
      %v4471 = vld [vmem:[%s747 + $0x24] sm:$0xf]
      %v4472 = vld [vmem:[%s747 + $0x28] sm:$0xf]
      %v4473 = vld [vmem:[%s747 + $0x2c] sm:$0xf]
      %v4474 = vld [vmem:[%s747 + $0x30] sm:$0xf]
      %v4475 = vld [vmem:[%s747 + $0x34] sm:$0xf]
      %v4476 = vld [vmem:[%s747 + $0x38] sm:$0xf]
      %v4477 = vld [vmem:[%s747 + $0x3c] sm:$0xf]
      %v4478 = vld [vmem:[%s747 + $0x40] sm:$0xf]
      %v4479 = vld [vmem:[%s747 + $0x44] sm:$0xf]
      %v4480 = vld [vmem:[%s747 + $0x48] sm:$0xf]
      %v4481 = vld [vmem:[%s747 + $0x4c] sm:$0xf]
      %v4482 = vld [vmem:[%s747 + $0x50] sm:$0xf]
      %v4483 = vld [vmem:[%s747 + $0x54] sm:$0xf]
      %v4484 = vld [vmem:[%s747 + $0x58] sm:$0xf]
      %v4485 = vld [vmem:[%s747 + $0x5c] sm:$0xf]
      %v4486 = vld [vmem:[%s747 + $0x60] sm:$0xf]
      %v4487 = vld [vmem:[%s747 + $0x64] sm:$0xf]
      %v4488 = vld [vmem:[%s747 + $0x68] sm:$0xf]
      %v4489 = vld [vmem:[%s747 + $0x6c] sm:$0xf]
      %v4490 = vld [vmem:[%s747 + $0x70] sm:$0xf]
      %v4491 = vld [vmem:[%s747 + $0x74] sm:$0xf]
      %v4492 = vld [vmem:[%s747 + $0x78] sm:$0xf]
      %v4493 = vld [vmem:[%s747 + $0x7c] sm:$0xf]
      %v4494 = vld [vmem:[%s750] sm:$0x1]
      %v4496 = vlaneseq
      %v4497 = vshrl.u32 %v4496, 7
      %v4498 = vsub.s32 0, %v4497
      %v4499 = vrot.slane %v4494, %v4498
      %v4533 = vunpack.c.l.b16 %v4462
      %v4534 = vunpack.c.l.b16 %v4463
      %v4535 = vunpack.c.l.b16 %v4464
      %v4536 = vunpack.c.l.b16 %v4465
      %v4537 = vunpack.c.l.b16 %v4466
      %v4538 = vunpack.c.l.b16 %v4467
      %v4539 = vunpack.c.l.b16 %v4468
      %v4540 = vunpack.c.l.b16 %v4469
      %v4541 = vunpack.c.l.b16 %v4470
      %v4542 = vunpack.c.l.b16 %v4471
      %v4543 = vunpack.c.l.b16 %v4472
      %v4544 = vunpack.c.l.b16 %v4473
      %v4545 = vunpack.c.l.b16 %v4474
      %v4546 = vunpack.c.l.b16 %v4475
      %v4547 = vunpack.c.l.b16 %v4476
      %v4548 = vunpack.c.l.b16 %v4477
      %v4549 = vunpack.c.l.b16 %v4478
      %v4550 = vunpack.c.l.b16 %v4479
      %v4551 = vunpack.c.l.b16 %v4480
      %v4552 = vunpack.c.l.b16 %v4481
      %v4553 = vunpack.c.l.b16 %v4482
      %v4554 = vunpack.c.l.b16 %v4483
      %v4555 = vunpack.c.l.b16 %v4484
      %v4556 = vunpack.c.l.b16 %v4485
      %v4557 = vunpack.c.l.b16 %v4486
      %v4558 = vunpack.c.l.b16 %v4487
      %v4559 = vunpack.c.l.b16 %v4488
      %v4560 = vunpack.c.l.b16 %v4489
      %v4561 = vunpack.c.l.b16 %v4490
      %v4562 = vunpack.c.l.b16 %v4491
      %v4563 = vunpack.c.l.b16 %v4492
      %v4564 = vunpack.c.l.b16 %v4493
      %v4565 = vpack.c.b16 %v4534, %v4533
      %v4566 = vpack.c.b16 %v4536, %v4535
      %v4567 = vpack.c.b16 %v4538, %v4537
      %v4568 = vpack.c.b16 %v4540, %v4539
      %v4569 = vpack.c.b16 %v4542, %v4541
      %v4570 = vpack.c.b16 %v4544, %v4543
      %v4571 = vpack.c.b16 %v4546, %v4545
      %v4572 = vpack.c.b16 %v4548, %v4547
      %v4573 = vpack.c.b16 %v4550, %v4549
      %v4574 = vpack.c.b16 %v4552, %v4551
      %v4575 = vpack.c.b16 %v4554, %v4553
      %v4576 = vpack.c.b16 %v4556, %v4555
      %v4577 = vpack.c.b16 %v4558, %v4557
      %v4578 = vpack.c.b16 %v4560, %v4559
      %v4579 = vpack.c.b16 %v4562, %v4561
      %v4580 = vpack.c.b16 %v4564, %v4563
      %4597 = vmatprep.subr.bf16.mxu0 0
      %4598 = vmatpush1.bf16.msra.mxu0 %v4565
      %4599 = vmatprep.subr.bf16.mxu0 0
      %4600 = vmatpush1.bf16.msra.mxu0 %v4566
      %4601 = vmatprep.subr.bf16.mxu0 0
      %4602 = vmatpush1.bf16.msra.mxu0 %v4567
      %4603 = vmatprep.subr.bf16.mxu0 0
      %4604 = vmatpush1.bf16.msra.mxu0 %v4568
      %4605 = vmatprep.subr.bf16.mxu0 0
      %4606 = vmatpush1.bf16.msra.mxu0 %v4569
      %4607 = vmatprep.subr.bf16.mxu0 0
      %4608 = vmatpush1.bf16.msra.mxu0 %v4570
      %4609 = vmatprep.subr.bf16.mxu0 0
      %4610 = vmatpush1.bf16.msra.mxu0 %v4571
      %4611 = vmatprep.subr.bf16.mxu0 0
      %4612 = vmatpush1.bf16.msra.mxu0 %v4572
      %4613 = vmatprep.subr.bf16.mxu0 0
      %4614 = vmatpush1.bf16.msra.mxu0 %v4573
      %4615 = vmatprep.subr.bf16.mxu0 0
      %4616 = vmatpush1.bf16.msra.mxu0 %v4574
      %4617 = vmatprep.subr.bf16.mxu0 0
      %4618 = vmatpush1.bf16.msra.mxu0 %v4575
      %4619 = vmatprep.subr.bf16.mxu0 0
      %4620 = vmatpush1.bf16.msra.mxu0 %v4576
      %4621 = vmatprep.subr.bf16.mxu0 0
      %4622 = vmatpush1.bf16.msra.mxu0 %v4577
      %4623 = vmatprep.subr.bf16.mxu0 0
      %4624 = vmatpush1.bf16.msra.mxu0 %v4578
      %4625 = vmatprep.subr.bf16.mxu0 0
      %4626 = vmatpush1.bf16.msra.mxu0 %v4579
      %4627 = vmatprep.subr.bf16.mxu0 0
      %4628 = vmatpush1.bf16.msra.mxu0 %v4580
      %4629 = vmatprep.mubr.bf16.mxu0 %v4461
      %4630 = vmatmul.mubr.bf16.gmra.mrb[0].mxu0 %v4460
      %v4631 = vpop.f32.mrb[0].mxu0
      %v4632 = vadd.f32 %v4499, %v4631
      %v4633 = vpop.f32.mrb[0].mxu0
      %v4634 = vpop.f32.mrb[0].mxu0
      %v4635 = vpop.f32.mrb[0].mxu0
      %4636 = vdwg.mxu0
      %4637 = vst [vmem:[%s759] sm:$0x3] %v4632
      %p4638 = scmp.lt.s32.totalorder %s30, 1
      %s4639 = scalar_select %p4638, %s30, 1
      %s4640 = smul.addr %s4639, 2
      %s4641 = smul.addr %s4640, 8
      %s4642 = scalar_lea.vmem %s17, %s4641
      %p4643 = scmp.lt.s32.totalorder %s30, 1
      %s4644 = scalar_select %p4643, %s30, 1
      %s4645 = smul.addr %s4644, 2
      %s4646 = scalar_lea.vmem %s18, %s4645
      // Predicated region
      $region89: #{tfc_forward.1} parent=87 // pred_check
        %p4647 = pneg %p460
      $region90: #{tfc_forward.1} parent=87 // pred_check_branch
        %4649 = sbr.rel (%p4647) target = $region92
      $region91: #{tfc_forward.1} parent=87 // pred_region
        _
      $region92: #{tfc_forward.1} parent=87 // pred_fallthru
        _
      // Predicated region
      $region93: #{tfc_forward.1} parent=87 // pred_check
        %p4650 = pneg %p486
      $region94: #{tfc_forward.1} parent=87 // pred_check_branch
        %4652 = sbr.rel (%p4650) target = $region96
      $region95: #{tfc_forward.1} parent=87 // pred_region
        _
      $region96: #{tfc_forward.1} parent=87 // pred_fallthru
        _
    $region88: #{tfc_forward.1} parent=5 // pred_fallthru
      _
    %p4653 = scmp.le.s32.totalorder 2, %s25
    // Predicated region
    $region97: #{tfc_forward.1} parent=5 // pred_check
      %p4654 = pneg %p4653
    $region98: #{tfc_forward.1} parent=5 // pred_check_branch
      %4656 = sbr.rel (%p4654) target = $region100
    $region99: #{tfc_forward.1} parent=5 // pred_region
      %s4657 = ssub.s32 %s25, 2
      // Predicated region
      $region101: #{tfc_forward.1} parent=99 // pred_check
        %p4658 = pneg %p466
      $region102: #{tfc_forward.1} parent=99 // pred_check_branch
        %4660 = sbr.rel (%p4658) target = $region104
      $region103: #{tfc_forward.1} parent=99 // pred_region
        %p4661 = scmp.lt.s32.totalorder %s31, 1
        %s4662 = scalar_select %p4661, %s31, 1
        %s4663 = smul.addr %s4662, 2
        %s4664 = smul.addr %s4663, 8
        %s4665 = scalar_lea.vmem %s17, %s4664
      $region104: #{tfc_forward.1} parent=99 // pred_fallthru
        _
      // Predicated region
      $region105: #{tfc_forward.1} parent=99 // pred_check
        %p4666 = pneg %p492
      $region106: #{tfc_forward.1} parent=99 // pred_check_branch
        %4668 = sbr.rel (%p4666) target = $region108
      $region107: #{tfc_forward.1} parent=99 // pred_region
        %p4669 = scmp.lt.s32.totalorder %s31, 1
        %s4670 = scalar_select %p4669, %s31, 1
        %s4671 = smul.addr %s4670, 2
        %s4672 = scalar_lea.vmem %s18, %s4671
      $region108: #{tfc_forward.1} parent=99 // pred_fallthru
        _
    $region100: #{tfc_forward.1} parent=5 // pred_fallthru
      _
  $region6: #{tfc_forward.1} parent=0 // loop_footer
    %s29 = sadd.s32 1, %s25
  $region7: #{tfc_forward.1} parent=0 // loop_footer_branch
    %24 = sbr.rel target = $region3
  $region8: #{tfc_forward.1} parent=0 // loop_exit
    _

</llo_original>
